<compile_context>
chip_gen: v7x
topology: tpu7x:2x2x1
jax: 0.10.0
libtpu: 0.0.40
codegen_flags: <defaults>
</compile_context>

<pallas_src>
import functools

import jax
import jax.numpy as jnp
from jax import lax
from jax.experimental import pallas as pl
from jax.experimental.pallas import tpu as pltpu

LN_EPS = 1e-5
_SQRT_2_OVER_PI = 0.7978845608028654


# ----------------------------- in-kernel helpers -----------------------------

def _layer_norm(x, gamma=None, beta=None):
    mu = jnp.mean(x, axis=-1, keepdims=True)
    xc = x - mu
    var = jnp.mean(xc * xc, axis=-1, keepdims=True)
    y = xc * lax.rsqrt(var + LN_EPS)
    if gamma is not None:
        y = y * gamma + beta
    return y


def _gelu_tanh(x):
    # tanh-form GELU: one EUP op + a few VPU ops.
    return 0.5 * x * (1.0 + jnp.tanh(_SQRT_2_OVER_PI * (x + 0.044715 * (x * x * x))))


def _attend_online(q_scaled, k_ref, v_ref, *, cd, tk, exact_recip):
    """Flash-style attention: online softmax over static KV chunks read from VMEM scratch.

    q_scaled already carries the 1/sqrt(d_k) factor (folded into Wq host-side).
    Scores are computed with lax.dot_general contracting both last dims (no K transpose).
    """
    S, D = k_ref.shape
    nq = q_scaled.shape[0]
    qc = q_scaled.astype(cd)
    m = jnp.full((nq, 1), -jnp.inf, jnp.float32)
    l = jnp.zeros((nq, 1), jnp.float32)
    acc = jnp.zeros((nq, D), jnp.float32)
    for start in range(0, S, tk):
        size = min(tk, S - start)
        k = k_ref[pl.ds(start, size), :]
        v = v_ref[pl.ds(start, size), :]
        s = lax.dot_general(qc, k, dimension_numbers=(((1,), (1,)), ((), ())),
                            preferred_element_type=jnp.float32)
        m_new = jnp.maximum(m, jnp.max(s, axis=-1, keepdims=True))
        alpha = jnp.exp(m - m_new)
        p = jnp.exp(s - m_new)
        l = alpha * l + jnp.sum(p, axis=-1, keepdims=True)
        acc = alpha * acc + jnp.dot(p.astype(cd), v, preferred_element_type=jnp.float32)
        m = m_new
    if exact_recip:                      # strict f32 path (review correctness concern)
        return acc / l
    return acc * pl.reciprocal(l, approx=True)   # EUP slot, off the VALU critical path


# --------------------------------- kernel ------------------------------------

def _decoder_stack_kernel(n_hidn, D, cd, tk, exact_recip,
                          x_q_ref, x_full_ref, mem_ref,
                          wq1, bq1, wkv1, bkv1,
                          wq2, bq2, wkv2, bkv2,
                          ffn_w, ffn_b, ln_g, ln_b,
                          o_ref,
                          k1_scr, v1_scr, k2_scr, v2_scr):
    qi = pl.program_id(1)

    @pl.when(qi == 0)
    def _():
        # Per-batch K/V projections (fused (D, 2D) matmuls).  Stored once in VMEM scratch and
        # reused by every query tile of this batch element (qi axis is sequential per core).
        # The [:, :D]/[:, D:] split is once-per-batch; it is a free tile select when D % 128 == 0.
        kv1 = jnp.dot(x_full_ref[...].astype(cd), wkv1[...],
                      preferred_element_type=jnp.float32) + bkv1[...]
        k1_scr[...] = kv1[:, :D].astype(cd)
        v1_scr[...] = kv1[:, D:].astype(cd)
        kv2 = jnp.dot(mem_ref[...].astype(cd), wkv2[...],
                      preferred_element_type=jnp.float32) + bkv2[...]
        k2_scr[...] = kv2[:, :D].astype(cd)
        v2_scr[...] = kv2[:, D:].astype(cd)

    x = x_q_ref[...]          # (tq, D) f32 query tile (batch dim squeezed by BlockSpec)
    g = ln_g[...]             # (1, D)
    bta = ln_b[...]           # (1, D)

    def proj(a, w_ref, b_ref):
        # Lane-dense projection: f32 accumulation, f32 bias add.
        return jnp.dot(a.astype(cd), w_ref[...],
                       preferred_element_type=jnp.float32) + b_ref[...]

    # --- self-attention block (at1); 1/sqrt(d_k) folded into wq1/bq1 host-side ----
    q1 = proj(x, wq1, bq1)
    ctx = _attend_online(q1, k1_scr, v1_scr, cd=cd, tk=tk, exact_recip=exact_recip)
    h = _layer_norm(ctx + x)                      # F.layer_norm (no affine) inside MHA
    h = _layer_norm(h + x, g, bta)                # self.ln(at1(x) + x)

    # --- cross-attention block (at2): Q from decoder state, K/V from encoder memory ----
    res = h
    q2 = proj(h, wq2, bq2)
    ctx2 = _attend_online(q2, k2_scr, v2_scr, cd=cd, tk=tk, exact_recip=exact_recip)
    h2 = _layer_norm(ctx2 + h)                    # MHA internal LN (residual = query input)
    h = _layer_norm(h2 + res, g, bta)             # self.ln(at2(h, mem) + h)

    # --- FFN stack (n_hidn is small & static -> unrolled) ----
    # dropout(p=0.1) -> identity (eval mode).
    # TODO(synk): on v7x, stream ffn_w one layer at a time (extra grid axis, (1, D, D) blocks)
    # to drop (n_hidn-1)*D^2 resident bytes; the whole stack fits comfortably at these sizes.
    for i in range(n_hidn):
        res = h
        fc = jnp.dot(h.astype(cd), ffn_w[i],
                     preferred_element_type=jnp.float32) + ffn_b[i]
        h = _layer_norm(_gelu_tanh(fc) + res, g, bta)

    # final extra LayerNorm with the residual from the last FFN iteration
    o_ref[...] = _layer_norm(h + res, g, bta)


# -------------------------------- wrapper --------------------------------------

def _pick_tile(n, candidates):
    """Largest candidate that divides n with at least 2 tiles; else the full extent."""
    for c in candidates:
        if n >= 2 * c and n % c == 0:
            return c
    return n


def _vmem_limit_bytes():
    # ~96 MiB on v5e/v6e (128 MiB physical), ~48 MiB on v7x (64 MiB physical); all above the
    # 16/32 MiB default scoped limits that would reject production weight residency.
    try:
        cap = int(pltpu.get_tpu_info().vmem_capacity_bytes)
    except Exception:
        cap = 128 * 1024 * 1024
    lim = min((cap * 3) // 4, 100 * 1024 * 1024)
    return max(lim, 32 * 1024 * 1024)


def decoder_stack(x, mem, params, num_heads, *, matmul_dtype=jnp.bfloat16):
    B, S, D = x.shape
    n_hidn = params["ffn_w"].shape[0]
    inv = 1.0 / float((D // num_heads) ** 0.5)
    cd = matmul_dtype
    exact_recip = (cd == jnp.float32)

    tq = _pick_tile(S, (512, 256, 128))   # query tile -> grid axis; multiple of 8 when < S
    tk = _pick_tile(S, (512, 256, 128))   # KV chunk for the in-kernel online softmax
    num_q = S // tq

    # Host-side packing (once, outside the kernel): fold the 1/sqrt(d_k) scale into the Q
    # projections, fuse K/V into lane-dense (D, 2D) matmuls, cast MXU weight operands to cd.
    # Biases and LayerNorm params stay f32 (applied after f32 accumulation).
    wq1 = (params["wq1"] * inv).astype(cd)
    bq1 = params["bq1"] * inv
    wkv1 = jnp.concatenate([params["wk1"], params["wv1"]], axis=1).astype(cd)
    bkv1 = jnp.concatenate([params["bk1"], params["bv1"]], axis=1)
    wq2 = (params["wq2"] * inv).astype(cd)
    bq2 = params["bq2"] * inv
    wkv2 = jnp.concatenate([params["wk2"], params["wv2"]], axis=1).astype(cd)
    bkv2 = jnp.concatenate([params["bk2"], params["bv2"]], axis=1)
    ffn_w = params["ffn_w"].astype(cd)
    ffn_b = params["ffn_b"]
    ln_g, ln_b = params["ln_g"], params["ln_b"]

    kernel = functools.partial(_decoder_stack_kernel, n_hidn, D, cd, tk, exact_recip)

    def build(weight_pipeline_mode, vmem_limit):
        def wspec(shape):
            kwargs = {}
            if weight_pipeline_mode is not None:
                kwargs["pipeline_mode"] = weight_pipeline_mode
            return pl.BlockSpec(shape, lambda b, q: (0,) * len(shape), **kwargs)

        q_spec = pl.BlockSpec((pl.Squeezed(), tq, D), lambda b, q: (b, q, 0))
        full_spec = pl.BlockSpec((pl.Squeezed(), S, D), lambda b, q: (b, 0, 0))

        in_specs = [
            q_spec,                                    # x query tile
            full_spec,                                 # x full sequence (self-attn K/V source)
            full_spec,                                 # encoder memory (cross-attn K/V source)
            wspec((D, D)), wspec((1, D)),              # self-attn Q (scale folded in)
            wspec((D, 2 * D)), wspec((1, 2 * D)),      # fused self-attn K/V
            wspec((D, D)), wspec((1, D)),              # cross-attn Q (scaled)
            wspec((D, 2 * D)), wspec((1, 2 * D)),      # fused cross-attn K/V
            wspec((n_hidn, D, D)), wspec((n_hidn, 1, D)),   # FFN stack
            wspec((1, D)), wspec((1, D)),              # shared LayerNorm gamma / beta
        ]

        cp_kwargs = dict(
            # Batch iterations are independent -> megacore sharding on v7x.  Query-tile axis is
            # "arbitrary" because the per-batch K/V scratch is filled at qi == 0 and reused.
            dimension_semantics=("parallel", "arbitrary"),
        )
        if vmem_limit is not None:
            cp_kwargs["vmem_limit_bytes"] = vmem_limit

        return pl.pallas_call(
            kernel,
            out_shape=jax.ShapeDtypeStruct((B, S, D), jnp.float32),
            grid_spec=pltpu.PrefetchScalarGridSpec(
                num_scalar_prefetch=0,
                grid=(B, num_q),
                in_specs=in_specs,
                out_specs=pl.BlockSpec((pl.Squeezed(), tq, D), lambda b, q: (b, q, 0)),
                scratch_shapes=[pltpu.VMEM((S, D), cd) for _ in range(4)],  # k1, v1, k2, v2
            ),
            compiler_params=pltpu.CompilerParams(**cp_kwargs),
        )

    args = (x, x, mem, wq1, bq1, wkv1, bkv1, wq2, bq2, wkv2, bkv2,
            ffn_w, ffn_b, ln_g, ln_b)
    try:
        # Buffered(1): constant-index weights need no double buffer -> halves weight VMEM.
        return jax.block_until_ready(build(pl.Buffered(1), _vmem_limit_bytes())(*args))
    except Exception:
        # Fallback for Pallas builds without per-spec pipeline_mode: default double buffering,
        # default scoped VMEM limit (the exact configuration that already ran clean).
        return jax.block_until_ready(build(None, None)(*args))


# ------------------------- plain-JAX reference (check) --------------------------

def decoder_stack_reference(x, mem, p, num_heads):
    D = x.shape[-1]
    inv = 1.0 / float((D // num_heads) ** 0.5)

    def ln(y, g=None, b=None):
        mu = y.mean(-1, keepdims=True)
        var = ((y - mu) ** 2).mean(-1, keepdims=True)
        out = (y - mu) / jnp.sqrt(var + LN_EPS)
        return out if g is None else out * g + b

    def mha(q_in, kv_in, wq, bq, wk, bk, wv, bv):
        Q = q_in @ wq + bq
        K = kv_in @ wk + bk
        V = kv_in @ wv + bv
        s = jnp.einsum("bqd,bkd->bqk", Q, K) * inv
        a = jax.nn.softmax(s, axis=-1)
        return ln(jnp.einsum("bqk,bkd->bqd", a, V) + q_in)

    g, b = p["ln_g"][0], p["ln_b"][0]
    res = x
    h = mha(x, x, p["wq1"], p["bq1"][0], p["wk1"], p["bk1"][0],
            p["wv1"], p["bv1"][0])
    h = ln(h + res, g, b)
    res = h
    h2 = mha(h, mem, p["wq2"], p["bq2"][0], p["wk2"], p["bk2"][0],
             p["wv2"], p["bv2"][0])
    h = ln(h2 + res, g, b)
    for i in range(p["ffn_w"].shape[0]):
        res = h
        fc = h @ p["ffn_w"][i] + p["ffn_b"][i, 0]
        h = ln(jax.nn.gelu(fc, approximate=False) + res, g, b)
    return ln(h + res, g, b)


# ----------------------------------- main ---------------------------------------

if __name__ == "__main__":
    B, S, D = 2, 8, 32
    NUM_HEADS, N_HIDN = 4, 2

    key = jax.random.PRNGKey(0)
    keys = jax.random.split(key, 20)
    scale = 0.05

    def w(k, shape):
        return (scale * jax.random.normal(k, shape)).astype(jnp.float32)

    params = {
        # self-attention (at1)
        "wq1": w(keys[0], (D, D)), "bq1": w(keys[1], (1, D)),
        "wk1": w(keys[2], (D, D)), "bk1": w(keys[3], (1, D)),
        "wv1": w(keys[4], (D, D)), "bv1": w(keys[5], (1, D)),
        # cross-attention (at2)
        "wq2": w(keys[6], (D, D)), "bq2": w(keys[7], (1, D)),
        "wk2": w(keys[8], (D, D)), "bk2": w(keys[9], (1, D)),
        "wv2": w(keys[10], (D, D)), "bv2": w(keys[11], (1, D)),
        # FFN stack
        "ffn_w": w(keys[12], (N_HIDN, D, D)),
        "ffn_b": w(keys[13], (N_HIDN, 1, D)),
        # shared LayerNorm (default nn.LayerNorm init)
        "ln_g": jnp.ones((1, D), jnp.float32),
        "ln_b": jnp.zeros((1, D), jnp.float32),
    }

    x = jax.random.normal(keys[14], (B, S, D), dtype=jnp.float32)     # decoder input
    mem = jax.random.normal(keys[15], (B, S, D), dtype=jnp.float32)   # encoder "output" memory

    ref = decoder_stack_reference(x, mem, params, NUM_HEADS)

    # f32 MXU operands: strict fidelity check (exact softmax reciprocal on this path).
    out_f32 = jax.block_until_ready(
        decoder_stack(x, mem, params, NUM_HEADS, matmul_dtype=jnp.float32))
    assert out_f32.shape == (B, S, D)
    err_f32 = float(jnp.max(jnp.abs(out_f32 - ref)))
    assert err_f32 < 1e-3, err_f32

    # bf16 MXU operands / f32 accumulation: the production fast path.
    out_bf16 = jax.block_until_ready(
        decoder_stack(x, mem, params, NUM_HEADS, matmul_dtype=jnp.bfloat16))
    err_bf16 = float(jnp.max(jnp.abs(out_bf16 - ref)))
    assert err_bf16 < 5e-2, err_bf16

    print("KERNEL_OK")
</pallas_src>

<mosaic_0001>
module attributes {stable_mosaic.version = 11 : i64} {
  func.func @_decoder_stack_kernel(%arg0: i32, %arg1: i32, %arg2: memref<1x8x32xf32, #tpu.memory_space<vmem>>, %arg3: memref<1x8x32xf32, #tpu.memory_space<vmem>>, %arg4: memref<1x8x32xf32, #tpu.memory_space<vmem>>, %arg5: memref<32x32xf32, #tpu.memory_space<vmem>>, %arg6: memref<1x32xf32, #tpu.memory_space<vmem>>, %arg7: memref<32x64xf32, #tpu.memory_space<vmem>>, %arg8: memref<1x64xf32, #tpu.memory_space<vmem>>, %arg9: memref<32x32xf32, #tpu.memory_space<vmem>>, %arg10: memref<1x32xf32, #tpu.memory_space<vmem>>, %arg11: memref<32x64xf32, #tpu.memory_space<vmem>>, %arg12: memref<1x64xf32, #tpu.memory_space<vmem>>, %arg13: memref<2x32x32xf32, #tpu.memory_space<vmem>>, %arg14: memref<2x1x32xf32, #tpu.memory_space<vmem>>, %arg15: memref<1x32xf32, #tpu.memory_space<vmem>>, %arg16: memref<1x32xf32, #tpu.memory_space<vmem>>, %arg17: memref<1x8x32xf32, #tpu.memory_space<vmem>>, %arg18: memref<8x32xf32, #tpu.memory_space<vmem>>, %arg19: memref<8x32xf32, #tpu.memory_space<vmem>>, %arg20: memref<8x32xf32, #tpu.memory_space<vmem>>, %arg21: memref<8x32xf32, #tpu.memory_space<vmem>>) attributes {dimension_semantics = [#tpu.dimension_semantics<parallel>, #tpu.dimension_semantics<arbitrary>], iteration_bounds = array<i64: 2, 1>, scalar_prefetch = 0 : i64, scratch_operands = 4 : i64, tpu.core_type = #tpu.core_type<tc>, window_params = [{transform_indices = @transform_0, window_bounds = array<i64: 1, 8, 32>}, {transform_indices = @transform_1, window_bounds = array<i64: 1, 8, 32>}, {transform_indices = @transform_2, window_bounds = array<i64: 1, 8, 32>}, {pipeline_mode = #tpu.pipeline_mode<synchronous>, transform_indices = @transform_3, window_bounds = array<i64: 32, 32>}, {pipeline_mode = #tpu.pipeline_mode<synchronous>, transform_indices = @transform_4, window_bounds = array<i64: 1, 32>}, {pipeline_mode = #tpu.pipeline_mode<synchronous>, transform_indices = @transform_5, window_bounds = array<i64: 32, 64>}, {pipeline_mode = #tpu.pipeline_mode<synchronous>, transform_indices = @transform_6, window_bounds = array<i64: 1, 64>}, {pipeline_mode = #tpu.pipeline_mode<synchronous>, transform_indices = @transform_7, window_bounds = array<i64: 32, 32>}, {pipeline_mode = #tpu.pipeline_mode<synchronous>, transform_indices = @transform_8, window_bounds = array<i64: 1, 32>}, {pipeline_mode = #tpu.pipeline_mode<synchronous>, transform_indices = @transform_9, window_bounds = array<i64: 32, 64>}, {pipeline_mode = #tpu.pipeline_mode<synchronous>, transform_indices = @transform_10, window_bounds = array<i64: 1, 64>}, {pipeline_mode = #tpu.pipeline_mode<synchronous>, transform_indices = @transform_11, window_bounds = array<i64: 2, 32, 32>}, {pipeline_mode = #tpu.pipeline_mode<synchronous>, transform_indices = @transform_12, window_bounds = array<i64: 2, 1, 32>}, {pipeline_mode = #tpu.pipeline_mode<synchronous>, transform_indices = @transform_13, window_bounds = array<i64: 1, 32>}, {pipeline_mode = #tpu.pipeline_mode<synchronous>, transform_indices = @transform_14, window_bounds = array<i64: 1, 32>}, {transform_indices = @transform_15, window_bounds = array<i64: 1, 8, 32>}]} {
    %c0_i32 = arith.constant 0 : i32
    %0 = arith.cmpi eq, %arg1, %c0_i32 : i32
    %1 = arith.extui %0 : i1 to i32
    %c0_i32_0 = arith.constant 0 : i32
    %2 = arith.cmpi ne, %1, %c0_i32_0 : i32
    scf.if %2 {
      %c0_97 = arith.constant 0 : index
      %c0_98 = arith.constant 0 : index
      %c0_99 = arith.constant 0 : index
      %247 = vector.load %arg3[%c0_97, %c0_98, %c0_99] : memref<1x8x32xf32, #tpu.memory_space<vmem>>, vector<1x8x32xf32>
      %248 = vector.shape_cast %247 : vector<1x8x32xf32> to vector<8x32xf32>
      %c0_100 = arith.constant 0 : index
      %c0_101 = arith.constant 0 : index
      %249 = vector.load %arg7[%c0_100, %c0_101] : memref<32x64xf32, #tpu.memory_space<vmem>>, vector<32x64xf32>
      %cst_102 = arith.constant dense<0.000000e+00> : vector<8x64xf32>
      %250 = tpu.matmul %248, %249, %cst_102 {dimension_numbers = #tpu.dot_dimension_numbers<[1], [0], [0], [1], [0, 0, 1, 1], [], []>} : vector<8x32xf32>, vector<32x64xf32>, vector<8x64xf32> -> vector<8x64xf32>
      %c0_103 = arith.constant 0 : index
      %c0_104 = arith.constant 0 : index
      %251 = vector.load %arg8[%c0_103, %c0_104] : memref<1x64xf32, #tpu.memory_space<vmem>>, vector<1x64xf32>
      %252 = vector.broadcast %251 : vector<1x64xf32> to vector<8x64xf32>
      %253 = arith.addf %250, %252 : vector<8x64xf32>
      %254 = vector.extract_strided_slice %253 {offsets = [0, 0], sizes = [8, 32], strides = [1, 1]} : vector<8x64xf32> to vector<8x32xf32>
      %c0_105 = arith.constant 0 : index
      %c0_106 = arith.constant 0 : index
      %255 = vector.load %arg18[%c0_105, %c0_106] : memref<8x32xf32, #tpu.memory_space<vmem>>, vector<8x32xf32>
      tpu.vector_store %arg18[%c0_105, %c0_106], %254 {strides = array<i32>} : memref<8x32xf32, #tpu.memory_space<vmem>>, vector<8x32xf32>,
      %256 = vector.extract_strided_slice %253 {offsets = [0, 32], sizes = [8, 32], strides = [1, 1]} : vector<8x64xf32> to vector<8x32xf32>
      %c0_107 = arith.constant 0 : index
      %c0_108 = arith.constant 0 : index
      %257 = vector.load %arg19[%c0_107, %c0_108] : memref<8x32xf32, #tpu.memory_space<vmem>>, vector<8x32xf32>
      tpu.vector_store %arg19[%c0_107, %c0_108], %256 {strides = array<i32>} : memref<8x32xf32, #tpu.memory_space<vmem>>, vector<8x32xf32>,
      %c0_109 = arith.constant 0 : index
      %c0_110 = arith.constant 0 : index
      %c0_111 = arith.constant 0 : index
      %258 = vector.load %arg4[%c0_109, %c0_110, %c0_111] : memref<1x8x32xf32, #tpu.memory_space<vmem>>, vector<1x8x32xf32>
      %259 = vector.shape_cast %258 : vector<1x8x32xf32> to vector<8x32xf32>
      %c0_112 = arith.constant 0 : index
      %c0_113 = arith.constant 0 : index
      %260 = vector.load %arg11[%c0_112, %c0_113] : memref<32x64xf32, #tpu.memory_space<vmem>>, vector<32x64xf32>
      %cst_114 = arith.constant dense<0.000000e+00> : vector<8x64xf32>
      %261 = tpu.matmul %259, %260, %cst_114 {dimension_numbers = #tpu.dot_dimension_numbers<[1], [0], [0], [1], [0, 0, 1, 1], [], []>} : vector<8x32xf32>, vector<32x64xf32>, vector<8x64xf32> -> vector<8x64xf32>
      %c0_115 = arith.constant 0 : index
      %c0_116 = arith.constant 0 : index
      %262 = vector.load %arg12[%c0_115, %c0_116] : memref<1x64xf32, #tpu.memory_space<vmem>>, vector<1x64xf32>
      %263 = vector.broadcast %262 : vector<1x64xf32> to vector<8x64xf32>
      %264 = arith.addf %261, %263 : vector<8x64xf32>
      %265 = vector.extract_strided_slice %264 {offsets = [0, 0], sizes = [8, 32], strides = [1, 1]} : vector<8x64xf32> to vector<8x32xf32>
      %c0_117 = arith.constant 0 : index
      %c0_118 = arith.constant 0 : index
      %266 = vector.load %arg20[%c0_117, %c0_118] : memref<8x32xf32, #tpu.memory_space<vmem>>, vector<8x32xf32>
      tpu.vector_store %arg20[%c0_117, %c0_118], %265 {strides = array<i32>} : memref<8x32xf32, #tpu.memory_space<vmem>>, vector<8x32xf32>,
      %267 = vector.extract_strided_slice %264 {offsets = [0, 32], sizes = [8, 32], strides = [1, 1]} : vector<8x64xf32> to vector<8x32xf32>
      %c0_119 = arith.constant 0 : index
      %c0_120 = arith.constant 0 : index
      %268 = vector.load %arg21[%c0_119, %c0_120] : memref<8x32xf32, #tpu.memory_space<vmem>>, vector<8x32xf32>
      tpu.vector_store %arg21[%c0_119, %c0_120], %267 {strides = array<i32>} : memref<8x32xf32, #tpu.memory_space<vmem>>, vector<8x32xf32>,
    } else {
    }
    %c0 = arith.constant 0 : index
    %c0_1 = arith.constant 0 : index
    %c0_2 = arith.constant 0 : index
    %3 = vector.load %arg2[%c0, %c0_1, %c0_2] : memref<1x8x32xf32, #tpu.memory_space<vmem>>, vector<1x8x32xf32>
    %4 = vector.shape_cast %3 : vector<1x8x32xf32> to vector<8x32xf32>
    %c0_3 = arith.constant 0 : index
    %c0_4 = arith.constant 0 : index
    %5 = vector.load %arg15[%c0_3, %c0_4] : memref<1x32xf32, #tpu.memory_space<vmem>>, vector<1x32xf32>
    %c0_5 = arith.constant 0 : index
    %c0_6 = arith.constant 0 : index
    %6 = vector.load %arg16[%c0_5, %c0_6] : memref<1x32xf32, #tpu.memory_space<vmem>>, vector<1x32xf32>
    %c0_7 = arith.constant 0 : index
    %c0_8 = arith.constant 0 : index
    %7 = vector.load %arg5[%c0_7, %c0_8] : memref<32x32xf32, #tpu.memory_space<vmem>>, vector<32x32xf32>
    %cst = arith.constant dense<0.000000e+00> : vector<8x32xf32>
    %8 = tpu.matmul %4, %7, %cst {dimension_numbers = #tpu.dot_dimension_numbers<[1], [0], [0], [1], [0, 0, 1, 1], [], []>} : vector<8x32xf32>, vector<32x32xf32>, vector<8x32xf32> -> vector<8x32xf32>
    %c0_9 = arith.constant 0 : index
    %c0_10 = arith.constant 0 : index
    %9 = vector.load %arg6[%c0_9, %c0_10] : memref<1x32xf32, #tpu.memory_space<vmem>>, vector<1x32xf32>
    %10 = vector.broadcast %9 : vector<1x32xf32> to vector<8x32xf32>
    %11 = arith.addf %8, %10 : vector<8x32xf32>
    %cst_11 = arith.constant 0xFF800000 : f32
    %12 = vector.broadcast %cst_11 : f32 to vector<8x1xf32>
    %cst_12 = arith.constant 0.000000e+00 : f32
    %13 = vector.broadcast %cst_12 : f32 to vector<8x1xf32>
    %cst_13 = arith.constant 0.000000e+00 : f32
    %14 = vector.broadcast %cst_13 : f32 to vector<8x32xf32>
    %c0_14 = arith.constant 0 : index
    %c0_15 = arith.constant 0 : index
    %15 = vector.load %arg18[%c0_14, %c0_15] : memref<8x32xf32, #tpu.memory_space<vmem>>, vector<8x32xf32>
    %c0_16 = arith.constant 0 : index
    %c0_17 = arith.constant 0 : index
    %16 = vector.load %arg19[%c0_16, %c0_17] : memref<8x32xf32, #tpu.memory_space<vmem>>, vector<8x32xf32>
    %cst_18 = arith.constant dense<0.000000e+00> : vector<8x8xf32>
    %17 = tpu.matmul %11, %15, %cst_18 {dimension_numbers = #tpu.dot_dimension_numbers<[1], [1], [0], [0], [0, 0, 1, 0], [], []>} : vector<8x32xf32>, vector<8x32xf32>, vector<8x8xf32> -> vector<8x8xf32>
    %cst_19 = arith.constant dense<0xFF800000> : vector<8xf32>
    %18 = vector.multi_reduction <maximumf>, %17, %cst_19 [1] : vector<8x8xf32> to vector<8xf32>
    %19 = vector.shape_cast %18 : vector<8xf32> to vector<8x1xf32>
    %20 = arith.maximumf %12, %19 : vector<8x1xf32>
    %21 = arith.subf %12, %20 : vector<8x1xf32>
    %22 = math.exp %21 : vector<8x1xf32>
    %23 = vector.broadcast %20 : vector<8x1xf32> to vector<8x8xf32>
    %24 = arith.subf %17, %23 : vector<8x8xf32>
    %25 = math.exp %24 : vector<8x8xf32>
    %26 = arith.mulf %22, %13 : vector<8x1xf32>
    %cst_20 = arith.constant dense<0.000000e+00> : vector<8xf32>
    %27 = vector.multi_reduction <add>, %25, %cst_20 [1] : vector<8x8xf32> to vector<8xf32>
    %28 = vector.shape_cast %27 : vector<8xf32> to vector<8x1xf32>
    %29 = arith.addf %26, %28 : vector<8x1xf32>
    %30 = vector.broadcast %22 : vector<8x1xf32> to vector<8x32xf32>
    %31 = arith.mulf %30, %14 : vector<8x32xf32>
    %cst_21 = arith.constant dense<0.000000e+00> : vector<8x32xf32>
    %32 = tpu.matmul %25, %16, %cst_21 {dimension_numbers = #tpu.dot_dimension_numbers<[1], [0], [0], [1], [0, 0, 1, 1], [], []>} : vector<8x8xf32>, vector<8x32xf32>, vector<8x32xf32> -> vector<8x32xf32>
    %33 = arith.addf %31, %32 : vector<8x32xf32>
    %34 = vector.broadcast %29 : vector<8x1xf32> to vector<8x32xf32>
    %35 = arith.divf %33, %34 : vector<8x32xf32>
    %36 = arith.addf %35, %4 : vector<8x32xf32>
    %cst_22 = arith.constant dense<0.000000e+00> : vector<8xf32>
    %37 = vector.multi_reduction <add>, %36, %cst_22 [1] : vector<8x32xf32> to vector<8xf32>
    %38 = vector.shape_cast %37 : vector<8xf32> to vector<8x1xf32>
    %cst_23 = arith.constant 3.200000e+01 : f32
    %39 = vector.broadcast %cst_23 : f32 to vector<8x1xf32>
    %40 = arith.divf %38, %39 : vector<8x1xf32>
    %41 = vector.broadcast %40 : vector<8x1xf32> to vector<8x32xf32>
    %42 = arith.subf %36, %41 : vector<8x32xf32>
    %43 = arith.mulf %42, %42 : vector<8x32xf32>
    %cst_24 = arith.constant dense<0.000000e+00> : vector<8xf32>
    %44 = vector.multi_reduction <add>, %43, %cst_24 [1] : vector<8x32xf32> to vector<8xf32>
    %45 = vector.shape_cast %44 : vector<8xf32> to vector<8x1xf32>
    %cst_25 = arith.constant 3.200000e+01 : f32
    %46 = vector.broadcast %cst_25 : f32 to vector<8x1xf32>
    %47 = arith.divf %45, %46 : vector<8x1xf32>
    %cst_26 = arith.constant 9.99999974E-6 : f32
    %48 = vector.broadcast %cst_26 : f32 to vector<8x1xf32>
    %49 = arith.addf %47, %48 : vector<8x1xf32>
    %50 = math.rsqrt %49 : vector<8x1xf32>
    %51 = vector.broadcast %50 : vector<8x1xf32> to vector<8x32xf32>
    %52 = arith.mulf %42, %51 : vector<8x32xf32>
    %53 = arith.addf %52, %4 : vector<8x32xf32>
    %cst_27 = arith.constant dense<0.000000e+00> : vector<8xf32>
    %54 = vector.multi_reduction <add>, %53, %cst_27 [1] : vector<8x32xf32> to vector<8xf32>
    %55 = vector.shape_cast %54 : vector<8xf32> to vector<8x1xf32>
    %cst_28 = arith.constant 3.200000e+01 : f32
    %56 = vector.broadcast %cst_28 : f32 to vector<8x1xf32>
    %57 = arith.divf %55, %56 : vector<8x1xf32>
    %58 = vector.broadcast %57 : vector<8x1xf32> to vector<8x32xf32>
    %59 = arith.subf %53, %58 : vector<8x32xf32>
    %60 = arith.mulf %59, %59 : vector<8x32xf32>
    %cst_29 = arith.constant dense<0.000000e+00> : vector<8xf32>
    %61 = vector.multi_reduction <add>, %60, %cst_29 [1] : vector<8x32xf32> to vector<8xf32>
    %62 = vector.shape_cast %61 : vector<8xf32> to vector<8x1xf32>
    %cst_30 = arith.constant 3.200000e+01 : f32
    %63 = vector.broadcast %cst_30 : f32 to vector<8x1xf32>
    %64 = arith.divf %62, %63 : vector<8x1xf32>
    %cst_31 = arith.constant 9.99999974E-6 : f32
    %65 = vector.broadcast %cst_31 : f32 to vector<8x1xf32>
    %66 = arith.addf %64, %65 : vector<8x1xf32>
    %67 = math.rsqrt %66 : vector<8x1xf32>
    %68 = vector.broadcast %67 : vector<8x1xf32> to vector<8x32xf32>
    %69 = arith.mulf %59, %68 : vector<8x32xf32>
    %70 = vector.broadcast %5 : vector<1x32xf32> to vector<8x32xf32>
    %71 = arith.mulf %69, %70 : vector<8x32xf32>
    %72 = vector.broadcast %6 : vector<1x32xf32> to vector<8x32xf32>
    %73 = arith.addf %71, %72 : vector<8x32xf32>
    %c0_32 = arith.constant 0 : index
    %c0_33 = arith.constant 0 : index
    %74 = vector.load %arg9[%c0_32, %c0_33] : memref<32x32xf32, #tpu.memory_space<vmem>>, vector<32x32xf32>
    %cst_34 = arith.constant dense<0.000000e+00> : vector<8x32xf32>
    %75 = tpu.matmul %73, %74, %cst_34 {dimension_numbers = #tpu.dot_dimension_numbers<[1], [0], [0], [1], [0, 0, 1, 1], [], []>} : vector<8x32xf32>, vector<32x32xf32>, vector<8x32xf32> -> vector<8x32xf32>
    %c0_35 = arith.constant 0 : index
    %c0_36 = arith.constant 0 : index
    %76 = vector.load %arg10[%c0_35, %c0_36] : memref<1x32xf32, #tpu.memory_space<vmem>>, vector<1x32xf32>
    %77 = vector.broadcast %76 : vector<1x32xf32> to vector<8x32xf32>
    %78 = arith.addf %75, %77 : vector<8x32xf32>
    %cst_37 = arith.constant 0xFF800000 : f32
    %79 = vector.broadcast %cst_37 : f32 to vector<8x1xf32>
    %cst_38 = arith.constant 0.000000e+00 : f32
    %80 = vector.broadcast %cst_38 : f32 to vector<8x1xf32>
    %cst_39 = arith.constant 0.000000e+00 : f32
    %81 = vector.broadcast %cst_39 : f32 to vector<8x32xf32>
    %c0_40 = arith.constant 0 : index
    %c0_41 = arith.constant 0 : index
    %82 = vector.load %arg20[%c0_40, %c0_41] : memref<8x32xf32, #tpu.memory_space<vmem>>, vector<8x32xf32>
    %c0_42 = arith.constant 0 : index
    %c0_43 = arith.constant 0 : index
    %83 = vector.load %arg21[%c0_42, %c0_43] : memref<8x32xf32, #tpu.memory_space<vmem>>, vector<8x32xf32>
    %cst_44 = arith.constant dense<0.000000e+00> : vector<8x8xf32>
    %84 = tpu.matmul %78, %82, %cst_44 {dimension_numbers = #tpu.dot_dimension_numbers<[1], [1], [0], [0], [0, 0, 1, 0], [], []>} : vector<8x32xf32>, vector<8x32xf32>, vector<8x8xf32> -> vector<8x8xf32>
    %cst_45 = arith.constant dense<0xFF800000> : vector<8xf32>
    %85 = vector.multi_reduction <maximumf>, %84, %cst_45 [1] : vector<8x8xf32> to vector<8xf32>
    %86 = vector.shape_cast %85 : vector<8xf32> to vector<8x1xf32>
    %87 = arith.maximumf %79, %86 : vector<8x1xf32>
    %88 = arith.subf %79, %87 : vector<8x1xf32>
    %89 = math.exp %88 : vector<8x1xf32>
    %90 = vector.broadcast %87 : vector<8x1xf32> to vector<8x8xf32>
    %91 = arith.subf %84, %90 : vector<8x8xf32>
    %92 = math.exp %91 : vector<8x8xf32>
    %93 = arith.mulf %89, %80 : vector<8x1xf32>
    %cst_46 = arith.constant dense<0.000000e+00> : vector<8xf32>
    %94 = vector.multi_reduction <add>, %92, %cst_46 [1] : vector<8x8xf32> to vector<8xf32>
    %95 = vector.shape_cast %94 : vector<8xf32> to vector<8x1xf32>
    %96 = arith.addf %93, %95 : vector<8x1xf32>
    %97 = vector.broadcast %89 : vector<8x1xf32> to vector<8x32xf32>
    %98 = arith.mulf %97, %81 : vector<8x32xf32>
    %cst_47 = arith.constant dense<0.000000e+00> : vector<8x32xf32>
    %99 = tpu.matmul %92, %83, %cst_47 {dimension_numbers = #tpu.dot_dimension_numbers<[1], [0], [0], [1], [0, 0, 1, 1], [], []>} : vector<8x8xf32>, vector<8x32xf32>, vector<8x32xf32> -> vector<8x32xf32>
    %100 = arith.addf %98, %99 : vector<8x32xf32>
    %101 = vector.broadcast %96 : vector<8x1xf32> to vector<8x32xf32>
    %102 = arith.divf %100, %101 : vector<8x32xf32>
    %103 = arith.addf %102, %73 : vector<8x32xf32>
    %cst_48 = arith.constant dense<0.000000e+00> : vector<8xf32>
    %104 = vector.multi_reduction <add>, %103, %cst_48 [1] : vector<8x32xf32> to vector<8xf32>
    %105 = vector.shape_cast %104 : vector<8xf32> to vector<8x1xf32>
    %cst_49 = arith.constant 3.200000e+01 : f32
    %106 = vector.broadcast %cst_49 : f32 to vector<8x1xf32>
    %107 = arith.divf %105, %106 : vector<8x1xf32>
    %108 = vector.broadcast %107 : vector<8x1xf32> to vector<8x32xf32>
    %109 = arith.subf %103, %108 : vector<8x32xf32>
    %110 = arith.mulf %109, %109 : vector<8x32xf32>
    %cst_50 = arith.constant dense<0.000000e+00> : vector<8xf32>
    %111 = vector.multi_reduction <add>, %110, %cst_50 [1] : vector<8x32xf32> to vector<8xf32>
    %112 = vector.shape_cast %111 : vector<8xf32> to vector<8x1xf32>
    %cst_51 = arith.constant 3.200000e+01 : f32
    %113 = vector.broadcast %cst_51 : f32 to vector<8x1xf32>
    %114 = arith.divf %112, %113 : vector<8x1xf32>
    %cst_52 = arith.constant 9.99999974E-6 : f32
    %115 = vector.broadcast %cst_52 : f32 to vector<8x1xf32>
    %116 = arith.addf %114, %115 : vector<8x1xf32>
    %117 = math.rsqrt %116 : vector<8x1xf32>
    %118 = vector.broadcast %117 : vector<8x1xf32> to vector<8x32xf32>
    %119 = arith.mulf %109, %118 : vector<8x32xf32>
    %120 = arith.addf %119, %73 : vector<8x32xf32>
    %cst_53 = arith.constant dense<0.000000e+00> : vector<8xf32>
    %121 = vector.multi_reduction <add>, %120, %cst_53 [1] : vector<8x32xf32> to vector<8xf32>
    %122 = vector.shape_cast %121 : vector<8xf32> to vector<8x1xf32>
    %cst_54 = arith.constant 3.200000e+01 : f32
    %123 = vector.broadcast %cst_54 : f32 to vector<8x1xf32>
    %124 = arith.divf %122, %123 : vector<8x1xf32>
    %125 = vector.broadcast %124 : vector<8x1xf32> to vector<8x32xf32>
    %126 = arith.subf %120, %125 : vector<8x32xf32>
    %127 = arith.mulf %126, %126 : vector<8x32xf32>
    %cst_55 = arith.constant dense<0.000000e+00> : vector<8xf32>
    %128 = vector.multi_reduction <add>, %127, %cst_55 [1] : vector<8x32xf32> to vector<8xf32>
    %129 = vector.shape_cast %128 : vector<8xf32> to vector<8x1xf32>
    %cst_56 = arith.constant 3.200000e+01 : f32
    %130 = vector.broadcast %cst_56 : f32 to vector<8x1xf32>
    %131 = arith.divf %129, %130 : vector<8x1xf32>
    %cst_57 = arith.constant 9.99999974E-6 : f32
    %132 = vector.broadcast %cst_57 : f32 to vector<8x1xf32>
    %133 = arith.addf %131, %132 : vector<8x1xf32>
    %134 = math.rsqrt %133 : vector<8x1xf32>
    %135 = vector.broadcast %134 : vector<8x1xf32> to vector<8x32xf32>
    %136 = arith.mulf %126, %135 : vector<8x32xf32>
    %137 = vector.broadcast %5 : vector<1x32xf32> to vector<8x32xf32>
    %138 = arith.mulf %136, %137 : vector<8x32xf32>
    %139 = vector.broadcast %6 : vector<1x32xf32> to vector<8x32xf32>
    %140 = arith.addf %138, %139 : vector<8x32xf32>
    %c0_58 = arith.constant 0 : index
    %c0_59 = arith.constant 0 : index
    %c0_60 = arith.constant 0 : index
    %141 = vector.load %arg13[%c0_58, %c0_59, %c0_60] : memref<2x32x32xf32, #tpu.memory_space<vmem>>, vector<1x32x32xf32>
    %142 = vector.shape_cast %141 : vector<1x32x32xf32> to vector<32x32xf32>
    %cst_61 = arith.constant dense<0.000000e+00> : vector<8x32xf32>
    %143 = tpu.matmul %140, %142, %cst_61 {dimension_numbers = #tpu.dot_dimension_numbers<[1], [0], [0], [1], [0, 0, 1, 1], [], []>} : vector<8x32xf32>, vector<32x32xf32>, vector<8x32xf32> -> vector<8x32xf32>
    %c0_62 = arith.constant 0 : index
    %c0_63 = arith.constant 0 : index
    %c0_64 = arith.constant 0 : index
    %144 = vector.load %arg14[%c0_62, %c0_63, %c0_64] : memref<2x1x32xf32, #tpu.memory_space<vmem>>, vector<1x1x32xf32>
    %145 = vector.shape_cast %144 : vector<1x1x32xf32> to vector<1x32xf32>
    %146 = vector.broadcast %145 : vector<1x32xf32> to vector<8x32xf32>
    %147 = arith.addf %143, %146 : vector<8x32xf32>
    %cst_65 = arith.constant 5.000000e-01 : f32
    %148 = vector.broadcast %cst_65 : f32 to vector<8x32xf32>
    %149 = arith.mulf %148, %147 : vector<8x32xf32>
    %150 = arith.mulf %147, %147 : vector<8x32xf32>
    %151 = arith.mulf %150, %147 : vector<8x32xf32>
    %cst_66 = arith.constant 4.471500e-02 : f32
    %152 = vector.broadcast %cst_66 : f32 to vector<8x32xf32>
    %153 = arith.mulf %152, %151 : vector<8x32xf32>
    %154 = arith.addf %147, %153 : vector<8x32xf32>
    %cst_67 = arith.constant 0.797884583 : f32
    %155 = vector.broadcast %cst_67 : f32 to vector<8x32xf32>
    %156 = arith.mulf %155, %154 : vector<8x32xf32>
    %157 = math.tanh %156 : vector<8x32xf32>
    %cst_68 = arith.constant 1.000000e+00 : f32
    %158 = vector.broadcast %cst_68 : f32 to vector<8x32xf32>
    %159 = arith.addf %158, %157 : vector<8x32xf32>
    %160 = arith.mulf %149, %159 : vector<8x32xf32>
    %161 = arith.addf %160, %140 : vector<8x32xf32>
    %cst_69 = arith.constant dense<0.000000e+00> : vector<8xf32>
    %162 = vector.multi_reduction <add>, %161, %cst_69 [1] : vector<8x32xf32> to vector<8xf32>
    %163 = vector.shape_cast %162 : vector<8xf32> to vector<8x1xf32>
    %cst_70 = arith.constant 3.200000e+01 : f32
    %164 = vector.broadcast %cst_70 : f32 to vector<8x1xf32>
    %165 = arith.divf %163, %164 : vector<8x1xf32>
    %166 = vector.broadcast %165 : vector<8x1xf32> to vector<8x32xf32>
    %167 = arith.subf %161, %166 : vector<8x32xf32>
    %168 = arith.mulf %167, %167 : vector<8x32xf32>
    %cst_71 = arith.constant dense<0.000000e+00> : vector<8xf32>
    %169 = vector.multi_reduction <add>, %168, %cst_71 [1] : vector<8x32xf32> to vector<8xf32>
    %170 = vector.shape_cast %169 : vector<8xf32> to vector<8x1xf32>
    %cst_72 = arith.constant 3.200000e+01 : f32
    %171 = vector.broadcast %cst_72 : f32 to vector<8x1xf32>
    %172 = arith.divf %170, %171 : vector<8x1xf32>
    %cst_73 = arith.constant 9.99999974E-6 : f32
    %173 = vector.broadcast %cst_73 : f32 to vector<8x1xf32>
    %174 = arith.addf %172, %173 : vector<8x1xf32>
    %175 = math.rsqrt %174 : vector<8x1xf32>
    %176 = vector.broadcast %175 : vector<8x1xf32> to vector<8x32xf32>
    %177 = arith.mulf %167, %176 : vector<8x32xf32>
    %178 = vector.broadcast %5 : vector<1x32xf32> to vector<8x32xf32>
    %179 = arith.mulf %177, %178 : vector<8x32xf32>
    %180 = vector.broadcast %6 : vector<1x32xf32> to vector<8x32xf32>
    %181 = arith.addf %179, %180 : vector<8x32xf32>
    %c1 = arith.constant 1 : index
    %c0_74 = arith.constant 0 : index
    %c0_75 = arith.constant 0 : index
    %182 = vector.load %arg13[%c1, %c0_74, %c0_75] : memref<2x32x32xf32, #tpu.memory_space<vmem>>, vector<1x32x32xf32>
    %183 = vector.shape_cast %182 : vector<1x32x32xf32> to vector<32x32xf32>
    %cst_76 = arith.constant dense<0.000000e+00> : vector<8x32xf32>
    %184 = tpu.matmul %181, %183, %cst_76 {dimension_numbers = #tpu.dot_dimension_numbers<[1], [0], [0], [1], [0, 0, 1, 1], [], []>} : vector<8x32xf32>, vector<32x32xf32>, vector<8x32xf32> -> vector<8x32xf32>
    %c1_77 = arith.constant 1 : index
    %c0_78 = arith.constant 0 : index
    %c0_79 = arith.constant 0 : index
    %185 = vector.load %arg14[%c1_77, %c0_78, %c0_79] : memref<2x1x32xf32, #tpu.memory_space<vmem>>, vector<1x1x32xf32>
    %186 = vector.shape_cast %185 : vector<1x1x32xf32> to vector<1x32xf32>
    %187 = vector.broadcast %186 : vector<1x32xf32> to vector<8x32xf32>
    %188 = arith.addf %184, %187 : vector<8x32xf32>
    %cst_80 = arith.constant 5.000000e-01 : f32
    %189 = vector.broadcast %cst_80 : f32 to vector<8x32xf32>
    %190 = arith.mulf %189, %188 : vector<8x32xf32>
    %191 = arith.mulf %188, %188 : vector<8x32xf32>
    %192 = arith.mulf %191, %188 : vector<8x32xf32>
    %cst_81 = arith.constant 4.471500e-02 : f32
    %193 = vector.broadcast %cst_81 : f32 to vector<8x32xf32>
    %194 = arith.mulf %193, %192 : vector<8x32xf32>
    %195 = arith.addf %188, %194 : vector<8x32xf32>
    %cst_82 = arith.constant 0.797884583 : f32
    %196 = vector.broadcast %cst_82 : f32 to vector<8x32xf32>
    %197 = arith.mulf %196, %195 : vector<8x32xf32>
    %198 = math.tanh %197 : vector<8x32xf32>
    %cst_83 = arith.constant 1.000000e+00 : f32
    %199 = vector.broadcast %cst_83 : f32 to vector<8x32xf32>
    %200 = arith.addf %199, %198 : vector<8x32xf32>
    %201 = arith.mulf %190, %200 : vector<8x32xf32>
    %202 = arith.addf %201, %181 : vector<8x32xf32>
    %cst_84 = arith.constant dense<0.000000e+00> : vector<8xf32>
    %203 = vector.multi_reduction <add>, %202, %cst_84 [1] : vector<8x32xf32> to vector<8xf32>
    %204 = vector.shape_cast %203 : vector<8xf32> to vector<8x1xf32>
    %cst_85 = arith.constant 3.200000e+01 : f32
    %205 = vector.broadcast %cst_85 : f32 to vector<8x1xf32>
    %206 = arith.divf %204, %205 : vector<8x1xf32>
    %207 = vector.broadcast %206 : vector<8x1xf32> to vector<8x32xf32>
    %208 = arith.subf %202, %207 : vector<8x32xf32>
    %209 = arith.mulf %208, %208 : vector<8x32xf32>
    %cst_86 = arith.constant dense<0.000000e+00> : vector<8xf32>
    %210 = vector.multi_reduction <add>, %209, %cst_86 [1] : vector<8x32xf32> to vector<8xf32>
    %211 = vector.shape_cast %210 : vector<8xf32> to vector<8x1xf32>
    %cst_87 = arith.constant 3.200000e+01 : f32
    %212 = vector.broadcast %cst_87 : f32 to vector<8x1xf32>
    %213 = arith.divf %211, %212 : vector<8x1xf32>
    %cst_88 = arith.constant 9.99999974E-6 : f32
    %214 = vector.broadcast %cst_88 : f32 to vector<8x1xf32>
    %215 = arith.addf %213, %214 : vector<8x1xf32>
    %216 = math.rsqrt %215 : vector<8x1xf32>
    %217 = vector.broadcast %216 : vector<8x1xf32> to vector<8x32xf32>
    %218 = arith.mulf %208, %217 : vector<8x32xf32>
    %219 = vector.broadcast %5 : vector<1x32xf32> to vector<8x32xf32>
    %220 = arith.mulf %218, %219 : vector<8x32xf32>
    %221 = vector.broadcast %6 : vector<1x32xf32> to vector<8x32xf32>
    %222 = arith.addf %220, %221 : vector<8x32xf32>
    %223 = arith.addf %222, %181 : vector<8x32xf32>
    %cst_89 = arith.constant dense<0.000000e+00> : vector<8xf32>
    %224 = vector.multi_reduction <add>, %223, %cst_89 [1] : vector<8x32xf32> to vector<8xf32>
    %225 = vector.shape_cast %224 : vector<8xf32> to vector<8x1xf32>
    %cst_90 = arith.constant 3.200000e+01 : f32
    %226 = vector.broadcast %cst_90 : f32 to vector<8x1xf32>
    %227 = arith.divf %225, %226 : vector<8x1xf32>
    %228 = vector.broadcast %227 : vector<8x1xf32> to vector<8x32xf32>
    %229 = arith.subf %223, %228 : vector<8x32xf32>
    %230 = arith.mulf %229, %229 : vector<8x32xf32>
    %cst_91 = arith.constant dense<0.000000e+00> : vector<8xf32>
    %231 = vector.multi_reduction <add>, %230, %cst_91 [1] : vector<8x32xf32> to vector<8xf32>
    %232 = vector.shape_cast %231 : vector<8xf32> to vector<8x1xf32>
    %cst_92 = arith.constant 3.200000e+01 : f32
    %233 = vector.broadcast %cst_92 : f32 to vector<8x1xf32>
    %234 = arith.divf %232, %233 : vector<8x1xf32>
    %cst_93 = arith.constant 9.99999974E-6 : f32
    %235 = vector.broadcast %cst_93 : f32 to vector<8x1xf32>
    %236 = arith.addf %234, %235 : vector<8x1xf32>
    %237 = math.rsqrt %236 : vector<8x1xf32>
    %238 = vector.broadcast %237 : vector<8x1xf32> to vector<8x32xf32>
    %239 = arith.mulf %229, %238 : vector<8x32xf32>
    %240 = vector.broadcast %5 : vector<1x32xf32> to vector<8x32xf32>
    %241 = arith.mulf %239, %240 : vector<8x32xf32>
    %242 = vector.broadcast %6 : vector<1x32xf32> to vector<8x32xf32>
    %243 = arith.addf %241, %242 : vector<8x32xf32>
    %c0_94 = arith.constant 0 : index
    %c0_95 = arith.constant 0 : index
    %c0_96 = arith.constant 0 : index
    %244 = vector.load %arg17[%c0_94, %c0_95, %c0_96] : memref<1x8x32xf32, #tpu.memory_space<vmem>>, vector<1x8x32xf32>
    %245 = vector.shape_cast %244 : vector<1x8x32xf32> to vector<8x32xf32>
    %246 = vector.shape_cast %243 : vector<8x32xf32> to vector<1x8x32xf32>
    tpu.vector_store %arg17[%c0_94, %c0_95, %c0_96], %246 {strides = array<i32>} : memref<1x8x32xf32, #tpu.memory_space<vmem>>, vector<1x8x32xf32>,
    return
  }
  func.func @transform_0(%arg0: i32, %arg1: i32) -> (i32, i32, i32) {
    %c0_i32 = arith.constant 0 : i32
    %c0_i32_0 = arith.constant 0 : i32
    return %arg0, %arg1, %c0_i32 : i32, i32, i32
  }
  func.func @transform_1(%arg0: i32, %arg1: i32) -> (i32, i32, i32) {
    %c0_i32 = arith.constant 0 : i32
    %c0_i32_0 = arith.constant 0 : i32
    %c0_i32_1 = arith.constant 0 : i32
    return %arg0, %c0_i32, %c0_i32_0 : i32, i32, i32
  }
  func.func @transform_2(%arg0: i32, %arg1: i32) -> (i32, i32, i32) {
    %c0_i32 = arith.constant 0 : i32
    %c0_i32_0 = arith.constant 0 : i32
    %c0_i32_1 = arith.constant 0 : i32
    return %arg0, %c0_i32, %c0_i32_0 : i32, i32, i32
  }
  func.func @transform_3(%arg0: i32, %arg1: i32) -> (i32, i32) {
    %c0_i32 = arith.constant 0 : i32
    %c0_i32_0 = arith.constant 0 : i32
    %c0_i32_1 = arith.constant 0 : i32
    return %c0_i32, %c0_i32_0 : i32, i32
  }
  func.func @transform_4(%arg0: i32, %arg1: i32) -> (i32, i32) {
    %c0_i32 = arith.constant 0 : i32
    %c0_i32_0 = arith.constant 0 : i32
    %c0_i32_1 = arith.constant 0 : i32
    return %c0_i32, %c0_i32_0 : i32, i32
  }
  func.func @transform_5(%arg0: i32, %arg1: i32) -> (i32, i32) {
    %c0_i32 = arith.constant 0 : i32
    %c0_i32_0 = arith.constant 0 : i32
    %c0_i32_1 = arith.constant 0 : i32
    return %c0_i32, %c0_i32_0 : i32, i32
  }
  func.func @transform_6(%arg0: i32, %arg1: i32) -> (i32, i32) {
    %c0_i32 = arith.constant 0 : i32
    %c0_i32_0 = arith.constant 0 : i32
    %c0_i32_1 = arith.constant 0 : i32
    return %c0_i32, %c0_i32_0 : i32, i32
  }
  func.func @transform_7(%arg0: i32, %arg1: i32) -> (i32, i32) {
    %c0_i32 = arith.constant 0 : i32
    %c0_i32_0 = arith.constant 0 : i32
    %c0_i32_1 = arith.constant 0 : i32
    return %c0_i32, %c0_i32_0 : i32, i32
  }
  func.func @transform_8(%arg0: i32, %arg1: i32) -> (i32, i32) {
    %c0_i32 = arith.constant 0 : i32
    %c0_i32_0 = arith.constant 0 : i32
    %c0_i32_1 = arith.constant 0 : i32
    return %c0_i32, %c0_i32_0 : i32, i32
  }
  func.func @transform_9(%arg0: i32, %arg1: i32) -> (i32, i32) {
    %c0_i32 = arith.constant 0 : i32
    %c0_i32_0 = arith.constant 0 : i32
    %c0_i32_1 = arith.constant 0 : i32
    return %c0_i32, %c0_i32_0 : i32, i32
  }
  func.func @transform_10(%arg0: i32, %arg1: i32) -> (i32, i32) {
    %c0_i32 = arith.constant 0 : i32
    %c0_i32_0 = arith.constant 0 : i32
    %c0_i32_1 = arith.constant 0 : i32
    return %c0_i32, %c0_i32_0 : i32, i32
  }
  func.func @transform_11(%arg0: i32, %arg1: i32) -> (i32, i32, i32) {
    %c0_i32 = arith.constant 0 : i32
    %c0_i32_0 = arith.constant 0 : i32
    %c0_i32_1 = arith.constant 0 : i32
    %c0_i32_2 = arith.constant 0 : i32
    return %c0_i32, %c0_i32_0, %c0_i32_1 : i32, i32, i32
  }
  func.func @transform_12(%arg0: i32, %arg1: i32) -> (i32, i32, i32) {
    %c0_i32 = arith.constant 0 : i32
    %c0_i32_0 = arith.constant 0 : i32
    %c0_i32_1 = arith.constant 0 : i32
    %c0_i32_2 = arith.constant 0 : i32
    return %c0_i32, %c0_i32_0, %c0_i32_1 : i32, i32, i32
  }
  func.func @transform_13(%arg0: i32, %arg1: i32) -> (i32, i32) {
    %c0_i32 = arith.constant 0 : i32
    %c0_i32_0 = arith.constant 0 : i32
    %c0_i32_1 = arith.constant 0 : i32
    return %c0_i32, %c0_i32_0 : i32, i32
  }
  func.func @transform_14(%arg0: i32, %arg1: i32) -> (i32, i32) {
    %c0_i32 = arith.constant 0 : i32
    %c0_i32_0 = arith.constant 0 : i32
    %c0_i32_1 = arith.constant 0 : i32
    return %c0_i32, %c0_i32_0 : i32, i32
  }
  func.func @transform_15(%arg0: i32, %arg1: i32) -> (i32, i32, i32) {
    %c0_i32 = arith.constant 0 : i32
    %c0_i32_0 = arith.constant 0 : i32
    return %arg0, %arg1, %c0_i32 : i32, i32, i32
  }
}

module attributes {stable_mosaic.version = 11 : i64} {
  func.func @_decoder_stack_kernel(%arg0: i32, %arg1: i32, %arg2: memref<1x8x32xf32, #tpu.memory_space<vmem>>, %arg3: memref<1x8x32xf32, #tpu.memory_space<vmem>>, %arg4: memref<1x8x32xf32, #tpu.memory_space<vmem>>, %arg5: memref<32x32xf32, #tpu.memory_space<vmem>>, %arg6: memref<1x32xf32, #tpu.memory_space<vmem>>, %arg7: memref<32x64xf32, #tpu.memory_space<vmem>>, %arg8: memref<1x64xf32, #tpu.memory_space<vmem>>, %arg9: memref<32x32xf32, #tpu.memory_space<vmem>>, %arg10: memref<1x32xf32, #tpu.memory_space<vmem>>, %arg11: memref<32x64xf32, #tpu.memory_space<vmem>>, %arg12: memref<1x64xf32, #tpu.memory_space<vmem>>, %arg13: memref<2x32x32xf32, #tpu.memory_space<vmem>>, %arg14: memref<2x1x32xf32, #tpu.memory_space<vmem>>, %arg15: memref<1x32xf32, #tpu.memory_space<vmem>>, %arg16: memref<1x32xf32, #tpu.memory_space<vmem>>, %arg17: memref<1x8x32xf32, #tpu.memory_space<vmem>>, %arg18: memref<8x32xf32, #tpu.memory_space<vmem>>, %arg19: memref<8x32xf32, #tpu.memory_space<vmem>>, %arg20: memref<8x32xf32, #tpu.memory_space<vmem>>, %arg21: memref<8x32xf32, #tpu.memory_space<vmem>>) attributes {dimension_semantics = [#tpu.dimension_semantics<parallel>, #tpu.dimension_semantics<arbitrary>], iteration_bounds = array<i64: 2, 1>, scalar_prefetch = 0 : i64, scratch_operands = 4 : i64, tpu.core_type = #tpu.core_type<tc>, window_params = [{transform_indices = @transform_0, window_bounds = array<i64: 1, 8, 32>}, {transform_indices = @transform_1, window_bounds = array<i64: 1, 8, 32>}, {transform_indices = @transform_2, window_bounds = array<i64: 1, 8, 32>}, {pipeline_mode = #tpu.pipeline_mode<synchronous>, transform_indices = @transform_3, window_bounds = array<i64: 32, 32>}, {pipeline_mode = #tpu.pipeline_mode<synchronous>, transform_indices = @transform_4, window_bounds = array<i64: 1, 32>}, {pipeline_mode = #tpu.pipeline_mode<synchronous>, transform_indices = @transform_5, window_bounds = array<i64: 32, 64>}, {pipeline_mode = #tpu.pipeline_mode<synchronous>, transform_indices = @transform_6, window_bounds = array<i64: 1, 64>}, {pipeline_mode = #tpu.pipeline_mode<synchronous>, transform_indices = @transform_7, window_bounds = array<i64: 32, 32>}, {pipeline_mode = #tpu.pipeline_mode<synchronous>, transform_indices = @transform_8, window_bounds = array<i64: 1, 32>}, {pipeline_mode = #tpu.pipeline_mode<synchronous>, transform_indices = @transform_9, window_bounds = array<i64: 32, 64>}, {pipeline_mode = #tpu.pipeline_mode<synchronous>, transform_indices = @transform_10, window_bounds = array<i64: 1, 64>}, {pipeline_mode = #tpu.pipeline_mode<synchronous>, transform_indices = @transform_11, window_bounds = array<i64: 2, 32, 32>}, {pipeline_mode = #tpu.pipeline_mode<synchronous>, transform_indices = @transform_12, window_bounds = array<i64: 2, 1, 32>}, {pipeline_mode = #tpu.pipeline_mode<synchronous>, transform_indices = @transform_13, window_bounds = array<i64: 1, 32>}, {pipeline_mode = #tpu.pipeline_mode<synchronous>, transform_indices = @transform_14, window_bounds = array<i64: 1, 32>}, {transform_indices = @transform_15, window_bounds = array<i64: 1, 8, 32>}]} {
    %c0_i32 = arith.constant 0 : i32
    %0 = arith.cmpi eq, %arg1, %c0_i32 : i32
    %1 = arith.extui %0 : i1 to i32
    %c0_i32_0 = arith.constant 0 : i32
    %2 = arith.cmpi ne, %1, %c0_i32_0 : i32
    scf.if %2 {
      %c0_97 = arith.constant 0 : index
      %c0_98 = arith.constant 0 : index
      %c0_99 = arith.constant 0 : index
      %247 = vector.load %arg3[%c0_97, %c0_98, %c0_99] : memref<1x8x32xf32, #tpu.memory_space<vmem>>, vector<1x8x32xf32>
      %248 = vector.shape_cast %247 : vector<1x8x32xf32> to vector<8x32xf32>
      %c0_100 = arith.constant 0 : index
      %c0_101 = arith.constant 0 : index
      %249 = vector.load %arg7[%c0_100, %c0_101] : memref<32x64xf32, #tpu.memory_space<vmem>>, vector<32x64xf32>
      %cst_102 = arith.constant dense<0.000000e+00> : vector<8x64xf32>
      %250 = tpu.matmul %248, %249, %cst_102 {dimension_numbers = #tpu.dot_dimension_numbers<[1], [0], [0], [1], [0, 0, 1, 1], [], []>} : vector<8x32xf32>, vector<32x64xf32>, vector<8x64xf32> -> vector<8x64xf32>
      %c0_103 = arith.constant 0 : index
      %c0_104 = arith.constant 0 : index
      %251 = vector.load %arg8[%c0_103, %c0_104] : memref<1x64xf32, #tpu.memory_space<vmem>>, vector<1x64xf32>
      %252 = vector.broadcast %251 : vector<1x64xf32> to vector<8x64xf32>
      %253 = arith.addf %250, %252 : vector<8x64xf32>
      %254 = vector.extract_strided_slice %253 {offsets = [0, 0], sizes = [8, 32], strides = [1, 1]} : vector<8x64xf32> to vector<8x32xf32>
      %c0_105 = arith.constant 0 : index
      %c0_106 = arith.constant 0 : index
      %255 = vector.load %arg18[%c0_105, %c0_106] : memref<8x32xf32, #tpu.memory_space<vmem>>, vector<8x32xf32>
      tpu.vector_store %arg18[%c0_105, %c0_106], %254 {strides = array<i32>} : memref<8x32xf32, #tpu.memory_space<vmem>>, vector<8x32xf32>,
      %256 = vector.extract_strided_slice %253 {offsets = [0, 32], sizes = [8, 32], strides = [1, 1]} : vector<8x64xf32> to vector<8x32xf32>
      %c0_107 = arith.constant 0 : index
      %c0_108 = arith.constant 0 : index
      %257 = vector.load %arg19[%c0_107, %c0_108] : memref<8x32xf32, #tpu.memory_space<vmem>>, vector<8x32xf32>
      tpu.vector_store %arg19[%c0_107, %c0_108], %256 {strides = array<i32>} : memref<8x32xf32, #tpu.memory_space<vmem>>, vector<8x32xf32>,
      %c0_109 = arith.constant 0 : index
      %c0_110 = arith.constant 0 : index
      %c0_111 = arith.constant 0 : index
      %258 = vector.load %arg4[%c0_109, %c0_110, %c0_111] : memref<1x8x32xf32, #tpu.memory_space<vmem>>, vector<1x8x32xf32>
      %259 = vector.shape_cast %258 : vector<1x8x32xf32> to vector<8x32xf32>
      %c0_112 = arith.constant 0 : index
      %c0_113 = arith.constant 0 : index
      %260 = vector.load %arg11[%c0_112, %c0_113] : memref<32x64xf32, #tpu.memory_space<vmem>>, vector<32x64xf32>
      %cst_114 = arith.constant dense<0.000000e+00> : vector<8x64xf32>
      %261 = tpu.matmul %259, %260, %cst_114 {dimension_numbers = #tpu.dot_dimension_numbers<[1], [0], [0], [1], [0, 0, 1, 1], [], []>} : vector<8x32xf32>, vector<32x64xf32>, vector<8x64xf32> -> vector<8x64xf32>
      %c0_115 = arith.constant 0 : index
      %c0_116 = arith.constant 0 : index
      %262 = vector.load %arg12[%c0_115, %c0_116] : memref<1x64xf32, #tpu.memory_space<vmem>>, vector<1x64xf32>
      %263 = vector.broadcast %262 : vector<1x64xf32> to vector<8x64xf32>
      %264 = arith.addf %261, %263 : vector<8x64xf32>
      %265 = vector.extract_strided_slice %264 {offsets = [0, 0], sizes = [8, 32], strides = [1, 1]} : vector<8x64xf32> to vector<8x32xf32>
      %c0_117 = arith.constant 0 : index
      %c0_118 = arith.constant 0 : index
      %266 = vector.load %arg20[%c0_117, %c0_118] : memref<8x32xf32, #tpu.memory_space<vmem>>, vector<8x32xf32>
      tpu.vector_store %arg20[%c0_117, %c0_118], %265 {strides = array<i32>} : memref<8x32xf32, #tpu.memory_space<vmem>>, vector<8x32xf32>,
      %267 = vector.extract_strided_slice %264 {offsets = [0, 32], sizes = [8, 32], strides = [1, 1]} : vector<8x64xf32> to vector<8x32xf32>
      %c0_119 = arith.constant 0 : index
      %c0_120 = arith.constant 0 : index
      %268 = vector.load %arg21[%c0_119, %c0_120] : memref<8x32xf32, #tpu.memory_space<vmem>>, vector<8x32xf32>
      tpu.vector_store %arg21[%c0_119, %c0_120], %267 {strides = array<i32>} : memref<8x32xf32, #tpu.memory_space<vmem>>, vector<8x32xf32>,
    } else {
    }
    %c0 = arith.constant 0 : index
    %c0_1 = arith.constant 0 : index
    %c0_2 = arith.constant 0 : index
    %3 = vector.load %arg2[%c0, %c0_1, %c0_2] : memref<1x8x32xf32, #tpu.memory_space<vmem>>, vector<1x8x32xf32>
    %4 = vector.shape_cast %3 : vector<1x8x32xf32> to vector<8x32xf32>
    %c0_3 = arith.constant 0 : index
    %c0_4 = arith.constant 0 : index
    %5 = vector.load %arg15[%c0_3, %c0_4] : memref<1x32xf32, #tpu.memory_space<vmem>>, vector<1x32xf32>
    %c0_5 = arith.constant 0 : index
    %c0_6 = arith.constant 0 : index
    %6 = vector.load %arg16[%c0_5, %c0_6] : memref<1x32xf32, #tpu.memory_space<vmem>>, vector<1x32xf32>
    %c0_7 = arith.constant 0 : index
    %c0_8 = arith.constant 0 : index
    %7 = vector.load %arg5[%c0_7, %c0_8] : memref<32x32xf32, #tpu.memory_space<vmem>>, vector<32x32xf32>
    %cst = arith.constant dense<0.000000e+00> : vector<8x32xf32>
    %8 = tpu.matmul %4, %7, %cst {dimension_numbers = #tpu.dot_dimension_numbers<[1], [0], [0], [1], [0, 0, 1, 1], [], []>} : vector<8x32xf32>, vector<32x32xf32>, vector<8x32xf32> -> vector<8x32xf32>
    %c0_9 = arith.constant 0 : index
    %c0_10 = arith.constant 0 : index
    %9 = vector.load %arg6[%c0_9, %c0_10] : memref<1x32xf32, #tpu.memory_space<vmem>>, vector<1x32xf32>
    %10 = vector.broadcast %9 : vector<1x32xf32> to vector<8x32xf32>
    %11 = arith.addf %8, %10 : vector<8x32xf32>
    %cst_11 = arith.constant 0xFF800000 : f32
    %12 = vector.broadcast %cst_11 : f32 to vector<8x1xf32>
    %cst_12 = arith.constant 0.000000e+00 : f32
    %13 = vector.broadcast %cst_12 : f32 to vector<8x1xf32>
    %cst_13 = arith.constant 0.000000e+00 : f32
    %14 = vector.broadcast %cst_13 : f32 to vector<8x32xf32>
    %c0_14 = arith.constant 0 : index
    %c0_15 = arith.constant 0 : index
    %15 = vector.load %arg18[%c0_14, %c0_15] : memref<8x32xf32, #tpu.memory_space<vmem>>, vector<8x32xf32>
    %c0_16 = arith.constant 0 : index
    %c0_17 = arith.constant 0 : index
    %16 = vector.load %arg19[%c0_16, %c0_17] : memref<8x32xf32, #tpu.memory_space<vmem>>, vector<8x32xf32>
    %cst_18 = arith.constant dense<0.000000e+00> : vector<8x8xf32>
    %17 = tpu.matmul %11, %15, %cst_18 {dimension_numbers = #tpu.dot_dimension_numbers<[1], [1], [0], [0], [0, 0, 1, 0], [], []>} : vector<8x32xf32>, vector<8x32xf32>, vector<8x8xf32> -> vector<8x8xf32>
    %cst_19 = arith.constant dense<0xFF800000> : vector<8xf32>
    %18 = vector.multi_reduction <maximumf>, %17, %cst_19 [1] : vector<8x8xf32> to vector<8xf32>
    %19 = vector.shape_cast %18 : vector<8xf32> to vector<8x1xf32>
    %20 = arith.maximumf %12, %19 : vector<8x1xf32>
    %21 = arith.subf %12, %20 : vector<8x1xf32>
    %22 = math.exp %21 : vector<8x1xf32>
    %23 = vector.broadcast %20 : vector<8x1xf32> to vector<8x8xf32>
    %24 = arith.subf %17, %23 : vector<8x8xf32>
    %25 = math.exp %24 : vector<8x8xf32>
    %26 = arith.mulf %22, %13 : vector<8x1xf32>
    %cst_20 = arith.constant dense<0.000000e+00> : vector<8xf32>
    %27 = vector.multi_reduction <add>, %25, %cst_20 [1] : vector<8x8xf32> to vector<8xf32>
    %28 = vector.shape_cast %27 : vector<8xf32> to vector<8x1xf32>
    %29 = arith.addf %26, %28 : vector<8x1xf32>
    %30 = vector.broadcast %22 : vector<8x1xf32> to vector<8x32xf32>
    %31 = arith.mulf %30, %14 : vector<8x32xf32>
    %cst_21 = arith.constant dense<0.000000e+00> : vector<8x32xf32>
    %32 = tpu.matmul %25, %16, %cst_21 {dimension_numbers = #tpu.dot_dimension_numbers<[1], [0], [0], [1], [0, 0, 1, 1], [], []>} : vector<8x8xf32>, vector<8x32xf32>, vector<8x32xf32> -> vector<8x32xf32>
    %33 = arith.addf %31, %32 : vector<8x32xf32>
    %34 = vector.broadcast %29 : vector<8x1xf32> to vector<8x32xf32>
    %35 = arith.divf %33, %34 : vector<8x32xf32>
    %36 = arith.addf %35, %4 : vector<8x32xf32>
    %cst_22 = arith.constant dense<0.000000e+00> : vector<8xf32>
    %37 = vector.multi_reduction <add>, %36, %cst_22 [1] : vector<8x32xf32> to vector<8xf32>
    %38 = vector.shape_cast %37 : vector<8xf32> to vector<8x1xf32>
    %cst_23 = arith.constant 3.200000e+01 : f32
    %39 = vector.broadcast %cst_23 : f32 to vector<8x1xf32>
    %40 = arith.divf %38, %39 : vector<8x1xf32>
    %41 = vector.broadcast %40 : vector<8x1xf32> to vector<8x32xf32>
    %42 = arith.subf %36, %41 : vector<8x32xf32>
    %43 = arith.mulf %42, %42 : vector<8x32xf32>
    %cst_24 = arith.constant dense<0.000000e+00> : vector<8xf32>
    %44 = vector.multi_reduction <add>, %43, %cst_24 [1] : vector<8x32xf32> to vector<8xf32>
    %45 = vector.shape_cast %44 : vector<8xf32> to vector<8x1xf32>
    %cst_25 = arith.constant 3.200000e+01 : f32
    %46 = vector.broadcast %cst_25 : f32 to vector<8x1xf32>
    %47 = arith.divf %45, %46 : vector<8x1xf32>
    %cst_26 = arith.constant 9.99999974E-6 : f32
    %48 = vector.broadcast %cst_26 : f32 to vector<8x1xf32>
    %49 = arith.addf %47, %48 : vector<8x1xf32>
    %50 = math.rsqrt %49 : vector<8x1xf32>
    %51 = vector.broadcast %50 : vector<8x1xf32> to vector<8x32xf32>
    %52 = arith.mulf %42, %51 : vector<8x32xf32>
    %53 = arith.addf %52, %4 : vector<8x32xf32>
    %cst_27 = arith.constant dense<0.000000e+00> : vector<8xf32>
    %54 = vector.multi_reduction <add>, %53, %cst_27 [1] : vector<8x32xf32> to vector<8xf32>
    %55 = vector.shape_cast %54 : vector<8xf32> to vector<8x1xf32>
    %cst_28 = arith.constant 3.200000e+01 : f32
    %56 = vector.broadcast %cst_28 : f32 to vector<8x1xf32>
    %57 = arith.divf %55, %56 : vector<8x1xf32>
    %58 = vector.broadcast %57 : vector<8x1xf32> to vector<8x32xf32>
    %59 = arith.subf %53, %58 : vector<8x32xf32>
    %60 = arith.mulf %59, %59 : vector<8x32xf32>
    %cst_29 = arith.constant dense<0.000000e+00> : vector<8xf32>
    %61 = vector.multi_reduction <add>, %60, %cst_29 [1] : vector<8x32xf32> to vector<8xf32>
    %62 = vector.shape_cast %61 : vector<8xf32> to vector<8x1xf32>
    %cst_30 = arith.constant 3.200000e+01 : f32
    %63 = vector.broadcast %cst_30 : f32 to vector<8x1xf32>
    %64 = arith.divf %62, %63 : vector<8x1xf32>
    %cst_31 = arith.constant 9.99999974E-6 : f32
    %65 = vector.broadcast %cst_31 : f32 to vector<8x1xf32>
    %66 = arith.addf %64, %65 : vector<8x1xf32>
    %67 = math.rsqrt %66 : vector<8x1xf32>
    %68 = vector.broadcast %67 : vector<8x1xf32> to vector<8x32xf32>
    %69 = arith.mulf %59, %68 : vector<8x32xf32>
    %70 = vector.broadcast %5 : vector<1x32xf32> to vector<8x32xf32>
    %71 = arith.mulf %69, %70 : vector<8x32xf32>
    %72 = vector.broadcast %6 : vector<1x32xf32> to vector<8x32xf32>
    %73 = arith.addf %71, %72 : vector<8x32xf32>
    %c0_32 = arith.constant 0 : index
    %c0_33 = arith.constant 0 : index
    %74 = vector.load %arg9[%c0_32, %c0_33] : memref<32x32xf32, #tpu.memory_space<vmem>>, vector<32x32xf32>
    %cst_34 = arith.constant dense<0.000000e+00> : vector<8x32xf32>
    %75 = tpu.matmul %73, %74, %cst_34 {dimension_numbers = #tpu.dot_dimension_numbers<[1], [0], [0], [1], [0, 0, 1, 1], [], []>} : vector<8x32xf32>, vector<32x32xf32>, vector<8x32xf32> -> vector<8x32xf32>
    %c0_35 = arith.constant 0 : index
    %c0_36 = arith.constant 0 : index
    %76 = vector.load %arg10[%c0_35, %c0_36] : memref<1x32xf32, #tpu.memory_space<vmem>>, vector<1x32xf32>
    %77 = vector.broadcast %76 : vector<1x32xf32> to vector<8x32xf32>
    %78 = arith.addf %75, %77 : vector<8x32xf32>
    %cst_37 = arith.constant 0xFF800000 : f32
    %79 = vector.broadcast %cst_37 : f32 to vector<8x1xf32>
    %cst_38 = arith.constant 0.000000e+00 : f32
    %80 = vector.broadcast %cst_38 : f32 to vector<8x1xf32>
    %cst_39 = arith.constant 0.000000e+00 : f32
    %81 = vector.broadcast %cst_39 : f32 to vector<8x32xf32>
    %c0_40 = arith.constant 0 : index
    %c0_41 = arith.constant 0 : index
    %82 = vector.load %arg20[%c0_40, %c0_41] : memref<8x32xf32, #tpu.memory_space<vmem>>, vector<8x32xf32>
    %c0_42 = arith.constant 0 : index
    %c0_43 = arith.constant 0 : index
    %83 = vector.load %arg21[%c0_42, %c0_43] : memref<8x32xf32, #tpu.memory_space<vmem>>, vector<8x32xf32>
    %cst_44 = arith.constant dense<0.000000e+00> : vector<8x8xf32>
    %84 = tpu.matmul %78, %82, %cst_44 {dimension_numbers = #tpu.dot_dimension_numbers<[1], [1], [0], [0], [0, 0, 1, 0], [], []>} : vector<8x32xf32>, vector<8x32xf32>, vector<8x8xf32> -> vector<8x8xf32>
    %cst_45 = arith.constant dense<0xFF800000> : vector<8xf32>
    %85 = vector.multi_reduction <maximumf>, %84, %cst_45 [1] : vector<8x8xf32> to vector<8xf32>
    %86 = vector.shape_cast %85 : vector<8xf32> to vector<8x1xf32>
    %87 = arith.maximumf %79, %86 : vector<8x1xf32>
    %88 = arith.subf %79, %87 : vector<8x1xf32>
    %89 = math.exp %88 : vector<8x1xf32>
    %90 = vector.broadcast %87 : vector<8x1xf32> to vector<8x8xf32>
    %91 = arith.subf %84, %90 : vector<8x8xf32>
    %92 = math.exp %91 : vector<8x8xf32>
    %93 = arith.mulf %89, %80 : vector<8x1xf32>
    %cst_46 = arith.constant dense<0.000000e+00> : vector<8xf32>
    %94 = vector.multi_reduction <add>, %92, %cst_46 [1] : vector<8x8xf32> to vector<8xf32>
    %95 = vector.shape_cast %94 : vector<8xf32> to vector<8x1xf32>
    %96 = arith.addf %93, %95 : vector<8x1xf32>
    %97 = vector.broadcast %89 : vector<8x1xf32> to vector<8x32xf32>
    %98 = arith.mulf %97, %81 : vector<8x32xf32>
    %cst_47 = arith.constant dense<0.000000e+00> : vector<8x32xf32>
    %99 = tpu.matmul %92, %83, %cst_47 {dimension_numbers = #tpu.dot_dimension_numbers<[1], [0], [0], [1], [0, 0, 1, 1], [], []>} : vector<8x8xf32>, vector<8x32xf32>, vector<8x32xf32> -> vector<8x32xf32>
    %100 = arith.addf %98, %99 : vector<8x32xf32>
    %101 = vector.broadcast %96 : vector<8x1xf32> to vector<8x32xf32>
    %102 = arith.divf %100, %101 : vector<8x32xf32>
    %103 = arith.addf %102, %73 : vector<8x32xf32>
    %cst_48 = arith.constant dense<0.000000e+00> : vector<8xf32>
    %104 = vector.multi_reduction <add>, %103, %cst_48 [1] : vector<8x32xf32> to vector<8xf32>
    %105 = vector.shape_cast %104 : vector<8xf32> to vector<8x1xf32>
    %cst_49 = arith.constant 3.200000e+01 : f32
    %106 = vector.broadcast %cst_49 : f32 to vector<8x1xf32>
    %107 = arith.divf %105, %106 : vector<8x1xf32>
    %108 = vector.broadcast %107 : vector<8x1xf32> to vector<8x32xf32>
    %109 = arith.subf %103, %108 : vector<8x32xf32>
    %110 = arith.mulf %109, %109 : vector<8x32xf32>
    %cst_50 = arith.constant dense<0.000000e+00> : vector<8xf32>
    %111 = vector.multi_reduction <add>, %110, %cst_50 [1] : vector<8x32xf32> to vector<8xf32>
    %112 = vector.shape_cast %111 : vector<8xf32> to vector<8x1xf32>
    %cst_51 = arith.constant 3.200000e+01 : f32
    %113 = vector.broadcast %cst_51 : f32 to vector<8x1xf32>
    %114 = arith.divf %112, %113 : vector<8x1xf32>
    %cst_52 = arith.constant 9.99999974E-6 : f32
    %115 = vector.broadcast %cst_52 : f32 to vector<8x1xf32>
    %116 = arith.addf %114, %115 : vector<8x1xf32>
    %117 = math.rsqrt %116 : vector<8x1xf32>
    %118 = vector.broadcast %117 : vector<8x1xf32> to vector<8x32xf32>
    %119 = arith.mulf %109, %118 : vector<8x32xf32>
    %120 = arith.addf %119, %73 : vector<8x32xf32>
    %cst_53 = arith.constant dense<0.000000e+00> : vector<8xf32>
    %121 = vector.multi_reduction <add>, %120, %cst_53 [1] : vector<8x32xf32> to vector<8xf32>
    %122 = vector.shape_cast %121 : vector<8xf32> to vector<8x1xf32>
    %cst_54 = arith.constant 3.200000e+01 : f32
    %123 = vector.broadcast %cst_54 : f32 to vector<8x1xf32>
    %124 = arith.divf %122, %123 : vector<8x1xf32>
    %125 = vector.broadcast %124 : vector<8x1xf32> to vector<8x32xf32>
    %126 = arith.subf %120, %125 : vector<8x32xf32>
    %127 = arith.mulf %126, %126 : vector<8x32xf32>
    %cst_55 = arith.constant dense<0.000000e+00> : vector<8xf32>
    %128 = vector.multi_reduction <add>, %127, %cst_55 [1] : vector<8x32xf32> to vector<8xf32>
    %129 = vector.shape_cast %128 : vector<8xf32> to vector<8x1xf32>
    %cst_56 = arith.constant 3.200000e+01 : f32
    %130 = vector.broadcast %cst_56 : f32 to vector<8x1xf32>
    %131 = arith.divf %129, %130 : vector<8x1xf32>
    %cst_57 = arith.constant 9.99999974E-6 : f32
    %132 = vector.broadcast %cst_57 : f32 to vector<8x1xf32>
    %133 = arith.addf %131, %132 : vector<8x1xf32>
    %134 = math.rsqrt %133 : vector<8x1xf32>
    %135 = vector.broadcast %134 : vector<8x1xf32> to vector<8x32xf32>
    %136 = arith.mulf %126, %135 : vector<8x32xf32>
    %137 = vector.broadcast %5 : vector<1x32xf32> to vector<8x32xf32>
    %138 = arith.mulf %136, %137 : vector<8x32xf32>
    %139 = vector.broadcast %6 : vector<1x32xf32> to vector<8x32xf32>
    %140 = arith.addf %138, %139 : vector<8x32xf32>
    %c0_58 = arith.constant 0 : index
    %c0_59 = arith.constant 0 : index
    %c0_60 = arith.constant 0 : index
    %141 = vector.load %arg13[%c0_58, %c0_59, %c0_60] : memref<2x32x32xf32, #tpu.memory_space<vmem>>, vector<1x32x32xf32>
    %142 = vector.shape_cast %141 : vector<1x32x32xf32> to vector<32x32xf32>
    %cst_61 = arith.constant dense<0.000000e+00> : vector<8x32xf32>
    %143 = tpu.matmul %140, %142, %cst_61 {dimension_numbers = #tpu.dot_dimension_numbers<[1], [0], [0], [1], [0, 0, 1, 1], [], []>} : vector<8x32xf32>, vector<32x32xf32>, vector<8x32xf32> -> vector<8x32xf32>
    %c0_62 = arith.constant 0 : index
    %c0_63 = arith.constant 0 : index
    %c0_64 = arith.constant 0 : index
    %144 = vector.load %arg14[%c0_62, %c0_63, %c0_64] : memref<2x1x32xf32, #tpu.memory_space<vmem>>, vector<1x1x32xf32>
    %145 = vector.shape_cast %144 : vector<1x1x32xf32> to vector<1x32xf32>
    %146 = vector.broadcast %145 : vector<1x32xf32> to vector<8x32xf32>
    %147 = arith.addf %143, %146 : vector<8x32xf32>
    %cst_65 = arith.constant 5.000000e-01 : f32
    %148 = vector.broadcast %cst_65 : f32 to vector<8x32xf32>
    %149 = arith.mulf %148, %147 : vector<8x32xf32>
    %150 = arith.mulf %147, %147 : vector<8x32xf32>
    %151 = arith.mulf %150, %147 : vector<8x32xf32>
    %cst_66 = arith.constant 4.471500e-02 : f32
    %152 = vector.broadcast %cst_66 : f32 to vector<8x32xf32>
    %153 = arith.mulf %152, %151 : vector<8x32xf32>
    %154 = arith.addf %147, %153 : vector<8x32xf32>
    %cst_67 = arith.constant 0.797884583 : f32
    %155 = vector.broadcast %cst_67 : f32 to vector<8x32xf32>
    %156 = arith.mulf %155, %154 : vector<8x32xf32>
    %157 = math.tanh %156 : vector<8x32xf32>
    %cst_68 = arith.constant 1.000000e+00 : f32
    %158 = vector.broadcast %cst_68 : f32 to vector<8x32xf32>
    %159 = arith.addf %158, %157 : vector<8x32xf32>
    %160 = arith.mulf %149, %159 : vector<8x32xf32>
    %161 = arith.addf %160, %140 : vector<8x32xf32>
    %cst_69 = arith.constant dense<0.000000e+00> : vector<8xf32>
    %162 = vector.multi_reduction <add>, %161, %cst_69 [1] : vector<8x32xf32> to vector<8xf32>
    %163 = vector.shape_cast %162 : vector<8xf32> to vector<8x1xf32>
    %cst_70 = arith.constant 3.200000e+01 : f32
    %164 = vector.broadcast %cst_70 : f32 to vector<8x1xf32>
    %165 = arith.divf %163, %164 : vector<8x1xf32>
    %166 = vector.broadcast %165 : vector<8x1xf32> to vector<8x32xf32>
    %167 = arith.subf %161, %166 : vector<8x32xf32>
    %168 = arith.mulf %167, %167 : vector<8x32xf32>
    %cst_71 = arith.constant dense<0.000000e+00> : vector<8xf32>
    %169 = vector.multi_reduction <add>, %168, %cst_71 [1] : vector<8x32xf32> to vector<8xf32>
    %170 = vector.shape_cast %169 : vector<8xf32> to vector<8x1xf32>
    %cst_72 = arith.constant 3.200000e+01 : f32
    %171 = vector.broadcast %cst_72 : f32 to vector<8x1xf32>
    %172 = arith.divf %170, %171 : vector<8x1xf32>
    %cst_73 = arith.constant 9.99999974E-6 : f32
    %173 = vector.broadcast %cst_73 : f32 to vector<8x1xf32>
    %174 = arith.addf %172, %173 : vector<8x1xf32>
    %175 = math.rsqrt %174 : vector<8x1xf32>
    %176 = vector.broadcast %175 : vector<8x1xf32> to vector<8x32xf32>
    %177 = arith.mulf %167, %176 : vector<8x32xf32>
    %178 = vector.broadcast %5 : vector<1x32xf32> to vector<8x32xf32>
    %179 = arith.mulf %177, %178 : vector<8x32xf32>
    %180 = vector.broadcast %6 : vector<1x32xf32> to vector<8x32xf32>
    %181 = arith.addf %179, %180 : vector<8x32xf32>
    %c1 = arith.constant 1 : index
    %c0_74 = arith.constant 0 : index
    %c0_75 = arith.constant 0 : index
    %182 = vector.load %arg13[%c1, %c0_74, %c0_75] : memref<2x32x32xf32, #tpu.memory_space<vmem>>, vector<1x32x32xf32>
    %183 = vector.shape_cast %182 : vector<1x32x32xf32> to vector<32x32xf32>
    %cst_76 = arith.constant dense<0.000000e+00> : vector<8x32xf32>
    %184 = tpu.matmul %181, %183, %cst_76 {dimension_numbers = #tpu.dot_dimension_numbers<[1], [0], [0], [1], [0, 0, 1, 1], [], []>} : vector<8x32xf32>, vector<32x32xf32>, vector<8x32xf32> -> vector<8x32xf32>
    %c1_77 = arith.constant 1 : index
    %c0_78 = arith.constant 0 : index
    %c0_79 = arith.constant 0 : index
    %185 = vector.load %arg14[%c1_77, %c0_78, %c0_79] : memref<2x1x32xf32, #tpu.memory_space<vmem>>, vector<1x1x32xf32>
    %186 = vector.shape_cast %185 : vector<1x1x32xf32> to vector<1x32xf32>
    %187 = vector.broadcast %186 : vector<1x32xf32> to vector<8x32xf32>
    %188 = arith.addf %184, %187 : vector<8x32xf32>
    %cst_80 = arith.constant 5.000000e-01 : f32
    %189 = vector.broadcast %cst_80 : f32 to vector<8x32xf32>
    %190 = arith.mulf %189, %188 : vector<8x32xf32>
    %191 = arith.mulf %188, %188 : vector<8x32xf32>
    %192 = arith.mulf %191, %188 : vector<8x32xf32>
    %cst_81 = arith.constant 4.471500e-02 : f32
    %193 = vector.broadcast %cst_81 : f32 to vector<8x32xf32>
    %194 = arith.mulf %193, %192 : vector<8x32xf32>
    %195 = arith.addf %188, %194 : vector<8x32xf32>
    %cst_82 = arith.constant 0.797884583 : f32
    %196 = vector.broadcast %cst_82 : f32 to vector<8x32xf32>
    %197 = arith.mulf %196, %195 : vector<8x32xf32>
    %198 = math.tanh %197 : vector<8x32xf32>
    %cst_83 = arith.constant 1.000000e+00 : f32
    %199 = vector.broadcast %cst_83 : f32 to vector<8x32xf32>
    %200 = arith.addf %199, %198 : vector<8x32xf32>
    %201 = arith.mulf %190, %200 : vector<8x32xf32>
    %202 = arith.addf %201, %181 : vector<8x32xf32>
    %cst_84 = arith.constant dense<0.000000e+00> : vector<8xf32>
    %203 = vector.multi_reduction <add>, %202, %cst_84 [1] : vector<8x32xf32> to vector<8xf32>
    %204 = vector.shape_cast %203 : vector<8xf32> to vector<8x1xf32>
    %cst_85 = arith.constant 3.200000e+01 : f32
    %205 = vector.broadcast %cst_85 : f32 to vector<8x1xf32>
    %206 = arith.divf %204, %205 : vector<8x1xf32>
    %207 = vector.broadcast %206 : vector<8x1xf32> to vector<8x32xf32>
    %208 = arith.subf %202, %207 : vector<8x32xf32>
    %209 = arith.mulf %208, %208 : vector<8x32xf32>
    %cst_86 = arith.constant dense<0.000000e+00> : vector<8xf32>
    %210 = vector.multi_reduction <add>, %209, %cst_86 [1] : vector<8x32xf32> to vector<8xf32>
    %211 = vector.shape_cast %210 : vector<8xf32> to vector<8x1xf32>
    %cst_87 = arith.constant 3.200000e+01 : f32
    %212 = vector.broadcast %cst_87 : f32 to vector<8x1xf32>
    %213 = arith.divf %211, %212 : vector<8x1xf32>
    %cst_88 = arith.constant 9.99999974E-6 : f32
    %214 = vector.broadcast %cst_88 : f32 to vector<8x1xf32>
    %215 = arith.addf %213, %214 : vector<8x1xf32>
    %216 = math.rsqrt %215 : vector<8x1xf32>
    %217 = vector.broadcast %216 : vector<8x1xf32> to vector<8x32xf32>
    %218 = arith.mulf %208, %217 : vector<8x32xf32>
    %219 = vector.broadcast %5 : vector<1x32xf32> to vector<8x32xf32>
    %220 = arith.mulf %218, %219 : vector<8x32xf32>
    %221 = vector.broadcast %6 : vector<1x32xf32> to vector<8x32xf32>
    %222 = arith.addf %220, %221 : vector<8x32xf32>
    %223 = arith.addf %222, %181 : vector<8x32xf32>
    %cst_89 = arith.constant dense<0.000000e+00> : vector<8xf32>
    %224 = vector.multi_reduction <add>, %223, %cst_89 [1] : vector<8x32xf32> to vector<8xf32>
    %225 = vector.shape_cast %224 : vector<8xf32> to vector<8x1xf32>
    %cst_90 = arith.constant 3.200000e+01 : f32
    %226 = vector.broadcast %cst_90 : f32 to vector<8x1xf32>
    %227 = arith.divf %225, %226 : vector<8x1xf32>
    %228 = vector.broadcast %227 : vector<8x1xf32> to vector<8x32xf32>
    %229 = arith.subf %223, %228 : vector<8x32xf32>
    %230 = arith.mulf %229, %229 : vector<8x32xf32>
    %cst_91 = arith.constant dense<0.000000e+00> : vector<8xf32>
    %231 = vector.multi_reduction <add>, %230, %cst_91 [1] : vector<8x32xf32> to vector<8xf32>
    %232 = vector.shape_cast %231 : vector<8xf32> to vector<8x1xf32>
    %cst_92 = arith.constant 3.200000e+01 : f32
    %233 = vector.broadcast %cst_92 : f32 to vector<8x1xf32>
    %234 = arith.divf %232, %233 : vector<8x1xf32>
    %cst_93 = arith.constant 9.99999974E-6 : f32
    %235 = vector.broadcast %cst_93 : f32 to vector<8x1xf32>
    %236 = arith.addf %234, %235 : vector<8x1xf32>
    %237 = math.rsqrt %236 : vector<8x1xf32>
    %238 = vector.broadcast %237 : vector<8x1xf32> to vector<8x32xf32>
    %239 = arith.mulf %229, %238 : vector<8x32xf32>
    %240 = vector.broadcast %5 : vector<1x32xf32> to vector<8x32xf32>
    %241 = arith.mulf %239, %240 : vector<8x32xf32>
    %242 = vector.broadcast %6 : vector<1x32xf32> to vector<8x32xf32>
    %243 = arith.addf %241, %242 : vector<8x32xf32>
    %c0_94 = arith.constant 0 : index
    %c0_95 = arith.constant 0 : index
    %c0_96 = arith.constant 0 : index
    %244 = vector.load %arg17[%c0_94, %c0_95, %c0_96] : memref<1x8x32xf32, #tpu.memory_space<vmem>>, vector<1x8x32xf32>
    %245 = vector.shape_cast %244 : vector<1x8x32xf32> to vector<8x32xf32>
    %246 = vector.shape_cast %243 : vector<8x32xf32> to vector<1x8x32xf32>
    tpu.vector_store %arg17[%c0_94, %c0_95, %c0_96], %246 {strides = array<i32>} : memref<1x8x32xf32, #tpu.memory_space<vmem>>, vector<1x8x32xf32>,
    return
  }
  func.func @transform_0(%arg0: i32, %arg1: i32) -> (i32, i32, i32) {
    %c0_i32 = arith.constant 0 : i32
    %c0_i32_0 = arith.constant 0 : i32
    return %arg0, %arg1, %c0_i32 : i32, i32, i32
  }
  func.func @transform_1(%arg0: i32, %arg1: i32) -> (i32, i32, i32) {
    %c0_i32 = arith.constant 0 : i32
    %c0_i32_0 = arith.constant 0 : i32
    %c0_i32_1 = arith.constant 0 : i32
    return %arg0, %c0_i32, %c0_i32_0 : i32, i32, i32
  }
  func.func @transform_2(%arg0: i32, %arg1: i32) -> (i32, i32, i32) {
    %c0_i32 = arith.constant 0 : i32
    %c0_i32_0 = arith.constant 0 : i32
    %c0_i32_1 = arith.constant 0 : i32
    return %arg0, %c0_i32, %c0_i32_0 : i32, i32, i32
  }
  func.func @transform_3(%arg0: i32, %arg1: i32) -> (i32, i32) {
    %c0_i32 = arith.constant 0 : i32
    %c0_i32_0 = arith.constant 0 : i32
    %c0_i32_1 = arith.constant 0 : i32
    return %c0_i32, %c0_i32_0 : i32, i32
  }
  func.func @transform_4(%arg0: i32, %arg1: i32) -> (i32, i32) {
    %c0_i32 = arith.constant 0 : i32
    %c0_i32_0 = arith.constant 0 : i32
    %c0_i32_1 = arith.constant 0 : i32
    return %c0_i32, %c0_i32_0 : i32, i32
  }
  func.func @transform_5(%arg0: i32, %arg1: i32) -> (i32, i32) {
    %c0_i32 = arith.constant 0 : i32
    %c0_i32_0 = arith.constant 0 : i32
    %c0_i32_1 = arith.constant 0 : i32
    return %c0_i32, %c0_i32_0 : i32, i32
  }
  func.func @transform_6(%arg0: i32, %arg1: i32) -> (i32, i32) {
    %c0_i32 = arith.constant 0 : i32
    %c0_i32_0 = arith.constant 0 : i32
    %c0_i32_1 = arith.constant 0 : i32
    return %c0_i32, %c0_i32_0 : i32, i32
  }
  func.func @transform_7(%arg0: i32, %arg1: i32) -> (i32, i32) {
    %c0_i32 = arith.constant 0 : i32
    %c0_i32_0 = arith.constant 0 : i32
    %c0_i32_1 = arith.constant 0 : i32
    return %c0_i32, %c0_i32_0 : i32, i32
  }
  func.func @transform_8(%arg0: i32, %arg1: i32) -> (i32, i32) {
    %c0_i32 = arith.constant 0 : i32
    %c0_i32_0 = arith.constant 0 : i32
    %c0_i32_1 = arith.constant 0 : i32
    return %c0_i32, %c0_i32_0 : i32, i32
  }
  func.func @transform_9(%arg0: i32, %arg1: i32) -> (i32, i32) {
    %c0_i32 = arith.constant 0 : i32
    %c0_i32_0 = arith.constant 0 : i32
    %c0_i32_1 = arith.constant 0 : i32
    return %c0_i32, %c0_i32_0 : i32, i32
  }
  func.func @transform_10(%arg0: i32, %arg1: i32) -> (i32, i32) {
    %c0_i32 = arith.constant 0 : i32
    %c0_i32_0 = arith.constant 0 : i32
    %c0_i32_1 = arith.constant 0 : i32
    return %c0_i32, %c0_i32_0 : i32, i32
  }
  func.func @transform_11(%arg0: i32, %arg1: i32) -> (i32, i32, i32) {
    %c0_i32 = arith.constant 0 : i32
    %c0_i32_0 = arith.constant 0 : i32
    %c0_i32_1 = arith.constant 0 : i32
    %c0_i32_2 = arith.constant 0 : i32
    return %c0_i32, %c0_i32_0, %c0_i32_1 : i32, i32, i32
  }
  func.func @transform_12(%arg0: i32, %arg1: i32) -> (i32, i32, i32) {
    %c0_i32 = arith.constant 0 : i32
    %c0_i32_0 = arith.constant 0 : i32
    %c0_i32_1 = arith.constant 0 : i32
    %c0_i32_2 = arith.constant 0 : i32
    return %c0_i32, %c0_i32_0, %c0_i32_1 : i32, i32, i32
  }
  func.func @transform_13(%arg0: i32, %arg1: i32) -> (i32, i32) {
    %c0_i32 = arith.constant 0 : i32
    %c0_i32_0 = arith.constant 0 : i32
    %c0_i32_1 = arith.constant 0 : i32
    return %c0_i32, %c0_i32_0 : i32, i32
  }
  func.func @transform_14(%arg0: i32, %arg1: i32) -> (i32, i32) {
    %c0_i32 = arith.constant 0 : i32
    %c0_i32_0 = arith.constant 0 : i32
    %c0_i32_1 = arith.constant 0 : i32
    return %c0_i32, %c0_i32_0 : i32, i32
  }
  func.func @transform_15(%arg0: i32, %arg1: i32) -> (i32, i32, i32) {
    %c0_i32 = arith.constant 0 : i32
    %c0_i32_0 = arith.constant 0 : i32
    return %arg0, %arg1, %c0_i32 : i32, i32, i32
  }
}

</mosaic_0001>

<llo_original>
// kernel: tpu_custom_call.1
$region0: #{tpu_custom_call.1}
  #allocation0 [shape = 'u32[]', space=smem, size = 0x4, offset = 0x4, fixed_abs, tag = 'smem constant byte address 0x4 - core index']
  #allocation1 [shape = 'u32[144,128]{1,0:T(1,128)}', space=vmem, size = 0x12000, scoped, tag = 'internal scratch']
  #allocation2 [shape = 'f32[8,32]{1,0:T(8,128)}', space=vmem, size = 0x1000, scoped, tag = 'scratch operand']
  #allocation3 [shape = 'f32[8,32]{1,0:T(8,128)}', space=vmem, size = 0x1000, scoped, tag = 'scratch operand']
  #allocation4 [shape = 'f32[8,32]{1,0:T(8,128)}', space=vmem, size = 0x1000, scoped, tag = 'scratch operand']
  #allocation5 [shape = 'f32[8,32]{1,0:T(8,128)}', space=vmem, size = 0x1000, scoped, tag = 'scratch operand']
  %s0 = inlined_call_operand.hbm [shape: f32[2,8,32], index: 0, kind: input, shape index: {}]
  %s1 = inlined_call_operand.hbm [shape: f32[2,8,32], index: 1, kind: input, shape index: {}]
  %s2 = inlined_call_operand.hbm [shape: f32[2,8,32], index: 2, kind: input, shape index: {}]
  %s3 = inlined_call_operand.hbm [shape: f32[32,32], index: 3, kind: input, shape index: {}]
  %s4 = inlined_call_operand.hbm [shape: f32[1,32], index: 4, kind: input, shape index: {}]
  %s5 = inlined_call_operand.hbm [shape: f32[32,64], index: 5, kind: input, shape index: {}]
  %s6 = inlined_call_operand.hbm [shape: f32[1,64], index: 6, kind: input, shape index: {}]
  %s7 = inlined_call_operand.hbm [shape: f32[32,32], index: 7, kind: input, shape index: {}]
  %s8 = inlined_call_operand.hbm [shape: f32[1,32], index: 8, kind: input, shape index: {}]
  %s9 = inlined_call_operand.hbm [shape: f32[32,64], index: 9, kind: input, shape index: {}]
  %s10 = inlined_call_operand.hbm [shape: f32[1,64], index: 10, kind: input, shape index: {}]
  %s11 = inlined_call_operand.hbm [shape: f32[2,32,32], index: 11, kind: input, shape index: {}]
  %s12 = inlined_call_operand.hbm [shape: f32[2,1,32], index: 12, kind: input, shape index: {}]
  %s13 = inlined_call_operand.hbm [shape: f32[1,32], index: 13, kind: input, shape index: {}]
  %s14 = inlined_call_operand.hbm [shape: f32[1,32], index: 14, kind: input, shape index: {}]
  %s15 = inlined_call_operand.hbm [shape: f32[2,8,32], index: 15, kind: output, shape index: {}]
  %s16 = sld [smem:[#allocation0]]
  $region157: #{tpu_custom_call.1} parent=0
    _
  %s18 = ssub.s32 1, %s16
  %s19 = scalar_select 0, %s18, %s16
  $region1: #{tpu_custom_call.1} parent=0
    #allocation6 [shape = 'u8[8192]{0}', space=vmem, size = 0x2000, scoped, tag = 'input window, operand 0']
    #allocation7 [shape = 's32[2]{0}', space=sflag, size = 0x8, scoped, tag = 'scoped memory for tpu_custom_call.1']
    #allocation8 [shape = 's32[2]{0}', space=sflag, size = 0x8, scoped, tag = 'scoped memory for tpu_custom_call.1']
    #allocation9 [shape = 'u8[8192]{0}', space=vmem, size = 0x2000, scoped, tag = 'input window, operand 1']
    #allocation10 [shape = 's32[2]{0}', space=sflag, size = 0x8, scoped, tag = 'scoped memory for tpu_custom_call.1']
    #allocation11 [shape = 'u8[8192]{0}', space=vmem, size = 0x2000, scoped, tag = 'input window, operand 2']
    #allocation12 [shape = 'u8[16384]{0}', space=vmem, size = 0x4000, scoped, tag = 'input window, operand 3, single buffered']
    #allocation13 [shape = 's32[1]{0}', space=sflag, size = 0x4, scoped, tag = 'scoped memory for tpu_custom_call.1']
    #allocation14 [shape = 'u8[512]{0}', space=vmem, size = 0x400, scoped, tag = 'input window, operand 4, single buffered']
    #allocation15 [shape = 'u8[16384]{0}', space=vmem, size = 0x4000, scoped, tag = 'input window, operand 5, single buffered']
    #allocation16 [shape = 's32[1]{0}', space=sflag, size = 0x4, scoped, tag = 'scoped memory for tpu_custom_call.1']
    #allocation17 [shape = 'u8[512]{0}', space=vmem, size = 0x400, scoped, tag = 'input window, operand 6, single buffered']
    #allocation18 [shape = 'u8[16384]{0}', space=vmem, size = 0x4000, scoped, tag = 'input window, operand 7, single buffered']
    #allocation19 [shape = 's32[1]{0}', space=sflag, size = 0x4, scoped, tag = 'scoped memory for tpu_custom_call.1']
    #allocation20 [shape = 'u8[512]{0}', space=vmem, size = 0x400, scoped, tag = 'input window, operand 8, single buffered']
    #allocation21 [shape = 'u8[16384]{0}', space=vmem, size = 0x4000, scoped, tag = 'input window, operand 9, single buffered']
    #allocation22 [shape = 's32[1]{0}', space=sflag, size = 0x4, scoped, tag = 'scoped memory for tpu_custom_call.1']
    #allocation23 [shape = 'u8[512]{0}', space=vmem, size = 0x400, scoped, tag = 'input window, operand 10, single buffered']
    #allocation24 [shape = 'u8[32768]{0}', space=vmem, size = 0x8000, scoped, tag = 'input window, operand 11, single buffered']
    #allocation25 [shape = 's32[1]{0}', space=sflag, size = 0x4, scoped, tag = 'scoped memory for tpu_custom_call.1']
    #allocation26 [shape = 'u8[1024]{0}', space=vmem, size = 0x400, scoped, tag = 'input window, operand 12, single buffered']
    #allocation27 [shape = 'u8[512]{0}', space=vmem, size = 0x400, scoped, tag = 'input window, operand 13, single buffered']
    #allocation28 [shape = 's32[1]{0}', space=sflag, size = 0x4, scoped, tag = 'scoped memory for tpu_custom_call.1']
    #allocation29 [shape = 'u8[512]{0}', space=vmem, size = 0x400, scoped, tag = 'input window, operand 14, single buffered']
    #allocation30 [shape = 'u8[8192]{0}', space=vmem, size = 0x2000, scoped, tag = 'output window, operand 0']
    %20 = vsyncpa [#allocation7], 0
    %s21 = scalar_lea.sflag [#allocation7], 1
    %22 = vsyncpa %s21, 0
    %23 = vsyncpa [#allocation10], 0
    %s24 = scalar_lea.sflag [#allocation10], 1
    %25 = vsyncpa %s24, 0
    %26 = vsyncpa [#allocation13], 0
    %27 = vsyncpa [#allocation16], 0
    %28 = vsyncpa [#allocation19], 0
    %29 = vsyncpa [#allocation22], 0
    %30 = vsyncpa [#allocation25], 0
    %31 = vsyncpa [#allocation28], 0
    %32 = vsyncpa [#allocation8], 0
    %s33 = scalar_lea.sflag [#allocation8], 1
    %34 = vsyncpa %s33, 0
    loop: start=0, step=1, limit=4
    $region2: #{tpu_custom_call.1} parent=1 // loop_pre_header
      _
    $region3: #{tpu_custom_call.1} parent=1 // loop_header
      %s36 = sphi 0, %s40
      %p37 = scmp.ge.s32.totalorder %s36, 4
      %s43 = sphi 0, %s55
      %s44 = sphi 0, %s51
      %s45 = sphi 0, %s43
      %s46 = sphi 0, %s44
      %s47 = sphi 0, %s45
      %s48 = sphi 0, %s46
      %s60 = sphi 0, %s62
      %s63 = sphi 0, %s60
      %s64 = sphi 0, %s63
      %s80 = sphi 0, %s64
      %s86 = sphi 0, %s88
      %s89 = sphi 0, %s86
      %s90 = sphi 0, %s89
      %s106 = sphi 0, %s90
      %s112 = sphi 0, %s114
      %s115 = sphi 0, %s112
      %s116 = sphi 0, %s115
      %s132 = sphi 0, %s116
      %s136 = sphi 0, %s136
      %s138 = sphi 0, %s136
      %s139 = sphi 0, %s138
      %s153 = sphi 0, %s139
      %s157 = sphi 0, %s157
      %s159 = sphi 0, %s157
      %s160 = sphi 0, %s159
      %s174 = sphi 0, %s160
      %s178 = sphi 0, %s178
      %s180 = sphi 0, %s178
      %s181 = sphi 0, %s180
      %s195 = sphi 0, %s181
      %s199 = sphi 0, %s199
      %s201 = sphi 0, %s199
      %s202 = sphi 0, %s201
      %s216 = sphi 0, %s202
      %s220 = sphi 0, %s220
      %s222 = sphi 0, %s220
      %s223 = sphi 0, %s222
      %s237 = sphi 0, %s223
      %s241 = sphi 0, %s241
      %s243 = sphi 0, %s241
      %s244 = sphi 0, %s243
      %s258 = sphi 0, %s244
      %s262 = sphi 0, %s262
      %s264 = sphi 0, %s262
      %s265 = sphi 0, %s264
      %s279 = sphi 0, %s265
      %s283 = sphi 0, %s283
      %s285 = sphi 0, %s283
      %s286 = sphi 0, %s285
      %s300 = sphi 0, %s286
      %s304 = sphi 0, %s304
      %s306 = sphi 0, %s304
      %s307 = sphi 0, %s306
      %s321 = sphi 0, %s307
      %s325 = sphi 0, %s325
      %s327 = sphi 0, %s325
      %s328 = sphi 0, %s327
      %s342 = sphi 0, %s328
      %s346 = sphi 0, %s346
      %s348 = sphi 0, %s346
      %s349 = sphi 0, %s348
      %s363 = sphi 0, %s349
      %s367 = sphi 0, %s367
      %s369 = sphi 0, %s367
      %s370 = sphi 0, %s369
      %s384 = sphi 0, %s370
      %s392 = sphi 0, %s394
      %s395 = sphi 0, %s392
      %s396 = sphi 0, %s395
      %s412 = sphi 0, %s396
    $region4: #{tpu_custom_call.1} parent=1 // loop_header_branch
      %39 = sbr.rel (%p37) target = $region8
    $region5: #{tpu_custom_call.1} parent=1 // loop_body
      %s41 = ssub.s32 %s36, 1
      %s42 = ssub.s32 %s36, 2
      %s49 = sadd.s32 1, %s44
      %p50 = scmp.ge.s32.totalorder %s49, 1
      %s51 = scalar_select %p50, 0, %s49
      %s52 = sadd.s32 1, %s43
      %s53 = scalar_select %p50, %s52, %s43
      %p54 = scmp.ge.s32.totalorder %s53, 2
      %s55 = scalar_select %p54, 0, %s53
      %s56 = ssub.s32 %s43, %s55
      %s57 = ssub.s32 %s44, %s51
      %s58 = sor.u32 %s56, %s57
      %p59 = scmp.eq.s32.totalorder %s58, 0
      %s61 = sadd.s32 %s60, 1
      %s62 = scalar_select %p59, %s60, %s61
      %p65 = pneg %p59
      %p66 = scmp.eq.s32.totalorder %s36, 1
      %p67 = por %p65, %p66
      %p68 = scmp.ne.s32.totalorder %s60, %s63
      %p69 = scmp.eq.s32.totalorder %s36, 0
      %p70 = por %p68, %p69
      %p71 = scmp.ne.s32.totalorder %s60, %s63
      %p72 = scmp.eq.s32.totalorder %s41, 1
      %p73 = por %p71, %p72
      %p74 = scmp.ne.s32.totalorder %s63, %s64
      %p75 = scmp.eq.s32.totalorder %s41, 0
      %p76 = por %p74, %p75
      %p77 = scmp.ne.s32.totalorder %s63, %s64
      %p78 = scmp.eq.s32.totalorder %s42, 1
      %p79 = por %p77, %p78
      %p81 = scmp.ne.s32.totalorder %s64, %s80
      %p82 = scmp.eq.s32.totalorder %s42, 0
      %p83 = por %p81, %p82
      %s84 = ssub.s32 %s43, %s55
      %p85 = scmp.eq.s32.totalorder %s84, 0
      %s87 = sadd.s32 %s86, 1
      %s88 = scalar_select %p85, %s86, %s87
      %p91 = pneg %p85
      %p92 = scmp.eq.s32.totalorder %s36, 1
      %p93 = por %p91, %p92
      %p94 = scmp.ne.s32.totalorder %s86, %s89
      %p95 = scmp.eq.s32.totalorder %s36, 0
      %p96 = por %p94, %p95
      %p97 = scmp.ne.s32.totalorder %s86, %s89
      %p98 = scmp.eq.s32.totalorder %s41, 1
      %p99 = por %p97, %p98
      %p100 = scmp.ne.s32.totalorder %s89, %s90
      %p101 = scmp.eq.s32.totalorder %s41, 0
      %p102 = por %p100, %p101
      %p103 = scmp.ne.s32.totalorder %s89, %s90
      %p104 = scmp.eq.s32.totalorder %s42, 1
      %p105 = por %p103, %p104
      %p107 = scmp.ne.s32.totalorder %s90, %s106
      %p108 = scmp.eq.s32.totalorder %s42, 0
      %p109 = por %p107, %p108
      %s110 = ssub.s32 %s43, %s55
      %p111 = scmp.eq.s32.totalorder %s110, 0
      %s113 = sadd.s32 %s112, 1
      %s114 = scalar_select %p111, %s112, %s113
      %p117 = pneg %p111
      %p118 = scmp.eq.s32.totalorder %s36, 1
      %p119 = por %p117, %p118
      %p120 = scmp.ne.s32.totalorder %s112, %s115
      %p121 = scmp.eq.s32.totalorder %s36, 0
      %p122 = por %p120, %p121
      %p123 = scmp.ne.s32.totalorder %s112, %s115
      %p124 = scmp.eq.s32.totalorder %s41, 1
      %p125 = por %p123, %p124
      %p126 = scmp.ne.s32.totalorder %s115, %s116
      %p127 = scmp.eq.s32.totalorder %s41, 0
      %p128 = por %p126, %p127
      %p129 = scmp.ne.s32.totalorder %s115, %s116
      %p130 = scmp.eq.s32.totalorder %s42, 1
      %p131 = por %p129, %p130
      %p133 = scmp.ne.s32.totalorder %s116, %s132
      %p134 = scmp.eq.s32.totalorder %s42, 0
      %p135 = por %p133, %p134
      %s137 = sadd.s32 %s136, 1
      %p140 = scmp.eq.s32.totalorder %s36, 1
      %p141 = scmp.ne.s32.totalorder %s136, %s138
      %p142 = scmp.eq.s32.totalorder %s36, 0
      %p143 = por %p141, %p142
      %p144 = scmp.ne.s32.totalorder %s136, %s138
      %p145 = scmp.eq.s32.totalorder %s41, 1
      %p146 = por %p144, %p145
      %p147 = scmp.ne.s32.totalorder %s138, %s139
      %p148 = scmp.eq.s32.totalorder %s41, 0
      %p149 = por %p147, %p148
      %p150 = scmp.ne.s32.totalorder %s138, %s139
      %p151 = scmp.eq.s32.totalorder %s42, 1
      %p152 = por %p150, %p151
      %p154 = scmp.ne.s32.totalorder %s139, %s153
      %p155 = scmp.eq.s32.totalorder %s42, 0
      %p156 = por %p154, %p155
      %s158 = sadd.s32 %s157, 1
      %p161 = scmp.eq.s32.totalorder %s36, 1
      %p162 = scmp.ne.s32.totalorder %s157, %s159
      %p163 = scmp.eq.s32.totalorder %s36, 0
      %p164 = por %p162, %p163
      %p165 = scmp.ne.s32.totalorder %s157, %s159
      %p166 = scmp.eq.s32.totalorder %s41, 1
      %p167 = por %p165, %p166
      %p168 = scmp.ne.s32.totalorder %s159, %s160
      %p169 = scmp.eq.s32.totalorder %s41, 0
      %p170 = por %p168, %p169
      %p171 = scmp.ne.s32.totalorder %s159, %s160
      %p172 = scmp.eq.s32.totalorder %s42, 1
      %p173 = por %p171, %p172
      %p175 = scmp.ne.s32.totalorder %s160, %s174
      %p176 = scmp.eq.s32.totalorder %s42, 0
      %p177 = por %p175, %p176
      %s179 = sadd.s32 %s178, 1
      %p182 = scmp.eq.s32.totalorder %s36, 1
      %p183 = scmp.ne.s32.totalorder %s178, %s180
      %p184 = scmp.eq.s32.totalorder %s36, 0
      %p185 = por %p183, %p184
      %p186 = scmp.ne.s32.totalorder %s178, %s180
      %p187 = scmp.eq.s32.totalorder %s41, 1
      %p188 = por %p186, %p187
      %p189 = scmp.ne.s32.totalorder %s180, %s181
      %p190 = scmp.eq.s32.totalorder %s41, 0
      %p191 = por %p189, %p190
      %p192 = scmp.ne.s32.totalorder %s180, %s181
      %p193 = scmp.eq.s32.totalorder %s42, 1
      %p194 = por %p192, %p193
      %p196 = scmp.ne.s32.totalorder %s181, %s195
      %p197 = scmp.eq.s32.totalorder %s42, 0
      %p198 = por %p196, %p197
      %s200 = sadd.s32 %s199, 1
      %p203 = scmp.eq.s32.totalorder %s36, 1
      %p204 = scmp.ne.s32.totalorder %s199, %s201
      %p205 = scmp.eq.s32.totalorder %s36, 0
      %p206 = por %p204, %p205
      %p207 = scmp.ne.s32.totalorder %s199, %s201
      %p208 = scmp.eq.s32.totalorder %s41, 1
      %p209 = por %p207, %p208
      %p210 = scmp.ne.s32.totalorder %s201, %s202
      %p211 = scmp.eq.s32.totalorder %s41, 0
      %p212 = por %p210, %p211
      %p213 = scmp.ne.s32.totalorder %s201, %s202
      %p214 = scmp.eq.s32.totalorder %s42, 1
      %p215 = por %p213, %p214
      %p217 = scmp.ne.s32.totalorder %s202, %s216
      %p218 = scmp.eq.s32.totalorder %s42, 0
      %p219 = por %p217, %p218
      %s221 = sadd.s32 %s220, 1
      %p224 = scmp.eq.s32.totalorder %s36, 1
      %p225 = scmp.ne.s32.totalorder %s220, %s222
      %p226 = scmp.eq.s32.totalorder %s36, 0
      %p227 = por %p225, %p226
      %p228 = scmp.ne.s32.totalorder %s220, %s222
      %p229 = scmp.eq.s32.totalorder %s41, 1
      %p230 = por %p228, %p229
      %p231 = scmp.ne.s32.totalorder %s222, %s223
      %p232 = scmp.eq.s32.totalorder %s41, 0
      %p233 = por %p231, %p232
      %p234 = scmp.ne.s32.totalorder %s222, %s223
      %p235 = scmp.eq.s32.totalorder %s42, 1
      %p236 = por %p234, %p235
      %p238 = scmp.ne.s32.totalorder %s223, %s237
      %p239 = scmp.eq.s32.totalorder %s42, 0
      %p240 = por %p238, %p239
      %s242 = sadd.s32 %s241, 1
      %p245 = scmp.eq.s32.totalorder %s36, 1
      %p246 = scmp.ne.s32.totalorder %s241, %s243
      %p247 = scmp.eq.s32.totalorder %s36, 0
      %p248 = por %p246, %p247
      %p249 = scmp.ne.s32.totalorder %s241, %s243
      %p250 = scmp.eq.s32.totalorder %s41, 1
      %p251 = por %p249, %p250
      %p252 = scmp.ne.s32.totalorder %s243, %s244
      %p253 = scmp.eq.s32.totalorder %s41, 0
      %p254 = por %p252, %p253
      %p255 = scmp.ne.s32.totalorder %s243, %s244
      %p256 = scmp.eq.s32.totalorder %s42, 1
      %p257 = por %p255, %p256
      %p259 = scmp.ne.s32.totalorder %s244, %s258
      %p260 = scmp.eq.s32.totalorder %s42, 0
      %p261 = por %p259, %p260
      %s263 = sadd.s32 %s262, 1
      %p266 = scmp.eq.s32.totalorder %s36, 1
      %p267 = scmp.ne.s32.totalorder %s262, %s264
      %p268 = scmp.eq.s32.totalorder %s36, 0
      %p269 = por %p267, %p268
      %p270 = scmp.ne.s32.totalorder %s262, %s264
      %p271 = scmp.eq.s32.totalorder %s41, 1
      %p272 = por %p270, %p271
      %p273 = scmp.ne.s32.totalorder %s264, %s265
      %p274 = scmp.eq.s32.totalorder %s41, 0
      %p275 = por %p273, %p274
      %p276 = scmp.ne.s32.totalorder %s264, %s265
      %p277 = scmp.eq.s32.totalorder %s42, 1
      %p278 = por %p276, %p277
      %p280 = scmp.ne.s32.totalorder %s265, %s279
      %p281 = scmp.eq.s32.totalorder %s42, 0
      %p282 = por %p280, %p281
      %s284 = sadd.s32 %s283, 1
      %p287 = scmp.eq.s32.totalorder %s36, 1
      %p288 = scmp.ne.s32.totalorder %s283, %s285
      %p289 = scmp.eq.s32.totalorder %s36, 0
      %p290 = por %p288, %p289
      %p291 = scmp.ne.s32.totalorder %s283, %s285
      %p292 = scmp.eq.s32.totalorder %s41, 1
      %p293 = por %p291, %p292
      %p294 = scmp.ne.s32.totalorder %s285, %s286
      %p295 = scmp.eq.s32.totalorder %s41, 0
      %p296 = por %p294, %p295
      %p297 = scmp.ne.s32.totalorder %s285, %s286
      %p298 = scmp.eq.s32.totalorder %s42, 1
      %p299 = por %p297, %p298
      %p301 = scmp.ne.s32.totalorder %s286, %s300
      %p302 = scmp.eq.s32.totalorder %s42, 0
      %p303 = por %p301, %p302
      %s305 = sadd.s32 %s304, 1
      %p308 = scmp.eq.s32.totalorder %s36, 1
      %p309 = scmp.ne.s32.totalorder %s304, %s306
      %p310 = scmp.eq.s32.totalorder %s36, 0
      %p311 = por %p309, %p310
      %p312 = scmp.ne.s32.totalorder %s304, %s306
      %p313 = scmp.eq.s32.totalorder %s41, 1
      %p314 = por %p312, %p313
      %p315 = scmp.ne.s32.totalorder %s306, %s307
      %p316 = scmp.eq.s32.totalorder %s41, 0
      %p317 = por %p315, %p316
      %p318 = scmp.ne.s32.totalorder %s306, %s307
      %p319 = scmp.eq.s32.totalorder %s42, 1
      %p320 = por %p318, %p319
      %p322 = scmp.ne.s32.totalorder %s307, %s321
      %p323 = scmp.eq.s32.totalorder %s42, 0
      %p324 = por %p322, %p323
      %s326 = sadd.s32 %s325, 1
      %p329 = scmp.eq.s32.totalorder %s36, 1
      %p330 = scmp.ne.s32.totalorder %s325, %s327
      %p331 = scmp.eq.s32.totalorder %s36, 0
      %p332 = por %p330, %p331
      %p333 = scmp.ne.s32.totalorder %s325, %s327
      %p334 = scmp.eq.s32.totalorder %s41, 1
      %p335 = por %p333, %p334
      %p336 = scmp.ne.s32.totalorder %s327, %s328
      %p337 = scmp.eq.s32.totalorder %s41, 0
      %p338 = por %p336, %p337
      %p339 = scmp.ne.s32.totalorder %s327, %s328
      %p340 = scmp.eq.s32.totalorder %s42, 1
      %p341 = por %p339, %p340
      %p343 = scmp.ne.s32.totalorder %s328, %s342
      %p344 = scmp.eq.s32.totalorder %s42, 0
      %p345 = por %p343, %p344
      %s347 = sadd.s32 %s346, 1
      %p350 = scmp.eq.s32.totalorder %s36, 1
      %p351 = scmp.ne.s32.totalorder %s346, %s348
      %p352 = scmp.eq.s32.totalorder %s36, 0
      %p353 = por %p351, %p352
      %p354 = scmp.ne.s32.totalorder %s346, %s348
      %p355 = scmp.eq.s32.totalorder %s41, 1
      %p356 = por %p354, %p355
      %p357 = scmp.ne.s32.totalorder %s348, %s349
      %p358 = scmp.eq.s32.totalorder %s41, 0
      %p359 = por %p357, %p358
      %p360 = scmp.ne.s32.totalorder %s348, %s349
      %p361 = scmp.eq.s32.totalorder %s42, 1
      %p362 = por %p360, %p361
      %p364 = scmp.ne.s32.totalorder %s349, %s363
      %p365 = scmp.eq.s32.totalorder %s42, 0
      %p366 = por %p364, %p365
      %s368 = sadd.s32 %s367, 1
      %p371 = scmp.eq.s32.totalorder %s36, 1
      %p372 = scmp.ne.s32.totalorder %s367, %s369
      %p373 = scmp.eq.s32.totalorder %s36, 0
      %p374 = por %p372, %p373
      %p375 = scmp.ne.s32.totalorder %s367, %s369
      %p376 = scmp.eq.s32.totalorder %s41, 1
      %p377 = por %p375, %p376
      %p378 = scmp.ne.s32.totalorder %s369, %s370
      %p379 = scmp.eq.s32.totalorder %s41, 0
      %p380 = por %p378, %p379
      %p381 = scmp.ne.s32.totalorder %s369, %s370
      %p382 = scmp.eq.s32.totalorder %s42, 1
      %p383 = por %p381, %p382
      %p385 = scmp.ne.s32.totalorder %s370, %s384
      %p386 = scmp.eq.s32.totalorder %s42, 0
      %p387 = por %p385, %p386
      %s388 = ssub.s32 %s43, %s55
      %s389 = ssub.s32 %s44, %s51
      %s390 = sor.u32 %s388, %s389
      %p391 = scmp.eq.s32.totalorder %s390, 0
      %s393 = sadd.s32 %s392, 1
      %s394 = scalar_select %p391, %s392, %s393
      %p397 = pneg %p391
      %p398 = scmp.eq.s32.totalorder %s36, 1
      %p399 = por %p397, %p398
      %p400 = scmp.ne.s32.totalorder %s392, %s395
      %p401 = scmp.eq.s32.totalorder %s36, 0
      %p402 = por %p400, %p401
      %p403 = scmp.ne.s32.totalorder %s392, %s395
      %p404 = scmp.eq.s32.totalorder %s41, 1
      %p405 = por %p403, %p404
      %p406 = scmp.ne.s32.totalorder %s395, %s396
      %p407 = scmp.eq.s32.totalorder %s41, 0
      %p408 = por %p406, %p407
      %p409 = scmp.ne.s32.totalorder %s395, %s396
      %p410 = scmp.eq.s32.totalorder %s42, 1
      %p411 = por %p409, %p410
      %p413 = scmp.ne.s32.totalorder %s396, %s412
      %p414 = scmp.eq.s32.totalorder %s42, 0
      %p415 = por %p413, %p414
      %p416 = scmp.le.s32.totalorder 1, %s36
      %p417 = scmp.lt.s32.totalorder %s36, 3
      %p418 = pnand %p416, %p417
      %p419 = pneg %p418
      // Predicated region
      $region9: #{tpu_custom_call.1} parent=5 // pred_check
        _
      $region10: #{tpu_custom_call.1} parent=5 // pred_check_branch
        %421 = sbr.rel (%p418) target = $region12
      $region11: #{tpu_custom_call.1} parent=5 // pred_region
        %s422 = ssub.s32 %s36, 1
        // Predicated region
        $region13: #{tpu_custom_call.1} parent=11 // pred_check
          %p423 = pneg %p149
        $region14: #{tpu_custom_call.1} parent=11 // pred_check_branch
          %425 = sbr.rel (%p423) target = $region16
        $region15: #{tpu_custom_call.1} parent=11 // pred_region
          %s427 = ssub.s32 512, 512
          %428 = vsyncadd [#allocation13], %s427
          %s429 = sshll.u32 [#allocation12], 4
          %s430 = int_to_ptr.vmem [resolvable:$true] %s429
          %435 = dma.hbm_to_vmem [thread:$0]  %s3, 512, %s430, [#allocation13], 128, 128, 8
        $region16: #{tpu_custom_call.1} parent=11 // pred_fallthru
          _
        // Predicated region
        $region17: #{tpu_custom_call.1} parent=11 // pred_check
          %p436 = pneg %p170
        $region18: #{tpu_custom_call.1} parent=11 // pred_check_branch
          %438 = sbr.rel (%p436) target = $region20
        $region19: #{tpu_custom_call.1} parent=11 // pred_region
          %s440 = ssub.s32 16, 16
          %441 = vsyncadd [#allocation13], %s440
          %s443 = sshll.u32 [#allocation14], 4
          %s444 = int_to_ptr.vmem [resolvable:$true] %s443
          %446 = dma.hbm_to_vmem [thread:$0]  %s4, 16, %s444, [#allocation13]
        $region20: #{tpu_custom_call.1} parent=11 // pred_fallthru
          _
        // Predicated region
        $region21: #{tpu_custom_call.1} parent=11 // pred_check
          %p447 = pneg %p191
        $region22: #{tpu_custom_call.1} parent=11 // pred_check_branch
          %449 = sbr.rel (%p447) target = $region24
        $region23: #{tpu_custom_call.1} parent=11 // pred_region
          %s451 = ssub.s32 512, 512
          %452 = vsyncadd [#allocation16], %s451
          %s453 = sshll.u32 [#allocation15], 4
          %s454 = int_to_ptr.vmem [resolvable:$true] %s453
          %459 = dma.hbm_to_vmem [thread:$0]  %s5, 512, %s454, [#allocation16], 128, 128, 8
        $region24: #{tpu_custom_call.1} parent=11 // pred_fallthru
          _
        // Predicated region
        $region25: #{tpu_custom_call.1} parent=11 // pred_check
          %p460 = pneg %p212
        $region26: #{tpu_custom_call.1} parent=11 // pred_check_branch
          %462 = sbr.rel (%p460) target = $region28
        $region27: #{tpu_custom_call.1} parent=11 // pred_region
          %s464 = ssub.s32 16, 16
          %465 = vsyncadd [#allocation16], %s464
          %s467 = sshll.u32 [#allocation17], 4
          %s468 = int_to_ptr.vmem [resolvable:$true] %s467
          %470 = dma.hbm_to_vmem [thread:$0]  %s6, 16, %s468, [#allocation16]
        $region28: #{tpu_custom_call.1} parent=11 // pred_fallthru
          _
        // Predicated region
        $region29: #{tpu_custom_call.1} parent=11 // pred_check
          %p471 = pneg %p233
        $region30: #{tpu_custom_call.1} parent=11 // pred_check_branch
          %473 = sbr.rel (%p471) target = $region32
        $region31: #{tpu_custom_call.1} parent=11 // pred_region
          %s475 = ssub.s32 512, 512
          %476 = vsyncadd [#allocation19], %s475
          %s477 = sshll.u32 [#allocation18], 4
          %s478 = int_to_ptr.vmem [resolvable:$true] %s477
          %483 = dma.hbm_to_vmem [thread:$0]  %s7, 512, %s478, [#allocation19], 128, 128, 8
        $region32: #{tpu_custom_call.1} parent=11 // pred_fallthru
          _
        // Predicated region
        $region33: #{tpu_custom_call.1} parent=11 // pred_check
          %p484 = pneg %p254
        $region34: #{tpu_custom_call.1} parent=11 // pred_check_branch
          %486 = sbr.rel (%p484) target = $region36
        $region35: #{tpu_custom_call.1} parent=11 // pred_region
          %s488 = ssub.s32 16, 16
          %489 = vsyncadd [#allocation19], %s488
          %s491 = sshll.u32 [#allocation20], 4
          %s492 = int_to_ptr.vmem [resolvable:$true] %s491
          %494 = dma.hbm_to_vmem [thread:$0]  %s8, 16, %s492, [#allocation19]
        $region36: #{tpu_custom_call.1} parent=11 // pred_fallthru
          _
        // Predicated region
        $region37: #{tpu_custom_call.1} parent=11 // pred_check
          %p495 = pneg %p275
        $region38: #{tpu_custom_call.1} parent=11 // pred_check_branch
          %497 = sbr.rel (%p495) target = $region40
        $region39: #{tpu_custom_call.1} parent=11 // pred_region
          %s499 = ssub.s32 512, 512
          %500 = vsyncadd [#allocation22], %s499
          %s501 = sshll.u32 [#allocation21], 4
          %s502 = int_to_ptr.vmem [resolvable:$true] %s501
          %507 = dma.hbm_to_vmem [thread:$0]  %s9, 512, %s502, [#allocation22], 128, 128, 8
        $region40: #{tpu_custom_call.1} parent=11 // pred_fallthru
          _
        // Predicated region
        $region41: #{tpu_custom_call.1} parent=11 // pred_check
          %p508 = pneg %p296
        $region42: #{tpu_custom_call.1} parent=11 // pred_check_branch
          %510 = sbr.rel (%p508) target = $region44
        $region43: #{tpu_custom_call.1} parent=11 // pred_region
          %s512 = ssub.s32 16, 16
          %513 = vsyncadd [#allocation22], %s512
          %s515 = sshll.u32 [#allocation23], 4
          %s516 = int_to_ptr.vmem [resolvable:$true] %s515
          %518 = dma.hbm_to_vmem [thread:$0]  %s10, 16, %s516, [#allocation22]
        $region44: #{tpu_custom_call.1} parent=11 // pred_fallthru
          _
        // Predicated region
        $region45: #{tpu_custom_call.1} parent=11 // pred_check
          %p519 = pneg %p317
        $region46: #{tpu_custom_call.1} parent=11 // pred_check_branch
          %521 = sbr.rel (%p519) target = $region48
        $region47: #{tpu_custom_call.1} parent=11 // pred_region
          %s523 = ssub.s32 1024, 1024
          %524 = vsyncadd [#allocation25], %s523
          %s525 = sshll.u32 [#allocation24], 4
          %s526 = int_to_ptr.vmem [resolvable:$true] %s525
          %531 = dma.hbm_to_vmem [thread:$0]  %s11, 1024, %s526, [#allocation25], 128, 128, 8
        $region48: #{tpu_custom_call.1} parent=11 // pred_fallthru
          _
        // Predicated region
        $region49: #{tpu_custom_call.1} parent=11 // pred_check
          %p532 = pneg %p338
        $region50: #{tpu_custom_call.1} parent=11 // pred_check_branch
          %534 = sbr.rel (%p532) target = $region52
        $region51: #{tpu_custom_call.1} parent=11 // pred_region
          %s536 = ssub.s32 32, 32
          %537 = vsyncadd [#allocation25], %s536
          %s538 = sshll.u32 [#allocation26], 4
          %s539 = int_to_ptr.vmem [resolvable:$true] %s538
          %544 = dma.hbm_to_vmem [thread:$0]  %s12, 32, %s539, [#allocation25], 16, 16, 1
        $region52: #{tpu_custom_call.1} parent=11 // pred_fallthru
          _
        // Predicated region
        $region53: #{tpu_custom_call.1} parent=11 // pred_check
          %p545 = pneg %p359
        $region54: #{tpu_custom_call.1} parent=11 // pred_check_branch
          %547 = sbr.rel (%p545) target = $region56
        $region55: #{tpu_custom_call.1} parent=11 // pred_region
          %s549 = ssub.s32 16, 16
          %550 = vsyncadd [#allocation28], %s549
          %s552 = sshll.u32 [#allocation27], 4
          %s553 = int_to_ptr.vmem [resolvable:$true] %s552
          %555 = dma.hbm_to_vmem [thread:$0]  %s13, 16, %s553, [#allocation28]
        $region56: #{tpu_custom_call.1} parent=11 // pred_fallthru
          _
        // Predicated region
        $region57: #{tpu_custom_call.1} parent=11 // pred_check
          %p556 = pneg %p380
        $region58: #{tpu_custom_call.1} parent=11 // pred_check_branch
          %558 = sbr.rel (%p556) target = $region60
        $region59: #{tpu_custom_call.1} parent=11 // pred_region
          %s560 = ssub.s32 16, 16
          %561 = vsyncadd [#allocation28], %s560
          %s563 = sshll.u32 [#allocation29], 4
          %s564 = int_to_ptr.vmem [resolvable:$true] %s563
          %566 = dma.hbm_to_vmem [thread:$0]  %s14, 16, %s564, [#allocation28]
        $region60: #{tpu_custom_call.1} parent=11 // pred_fallthru
          _
      $region12: #{tpu_custom_call.1} parent=5 // pred_fallthru
        _
      %p567 = scmp.lt.s32.totalorder %s36, 2
      // Predicated region
      $region61: #{tpu_custom_call.1} parent=5 // pred_check
        %p568 = pneg %p567
      $region62: #{tpu_custom_call.1} parent=5 // pred_check_branch
        %570 = sbr.rel (%p568) target = $region64
      $region63: #{tpu_custom_call.1} parent=5 // pred_region
        // Predicated region
        $region65: #{tpu_custom_call.1} parent=63 // pred_check
          %p571 = pneg %p70
        $region66: #{tpu_custom_call.1} parent=63 // pred_check_branch
          %573 = sbr.rel (%p571) target = $region68
        $region67: #{tpu_custom_call.1} parent=63 // pred_region
          %s574 = sand.u32 %s60, 1
          %s575 = scalar_lea.sflag [#allocation7], %s574
          %s576 = sand.u32 %s60, 1
          %s577 = smul.addr %s576, 8
          %s578 = scalar_lea.vmem [#allocation6], %s577
          %s580 = ssub.s32 128, 128
          %581 = vsyncadd %s575, %s580
          %s582 = sadd.s32 %s44, %s43
          %s583 = smul.addr %s582, 128
          %s584 = scalar_lea.hbm %s0, %s583
          %s586 = sshll.u32 %s578, 4
          %s587 = int_to_ptr.vmem [resolvable:$true] %s586
          %589 = dma.hbm_to_vmem [thread:$0]  %s584, 128, %s587, %s575
        $region68: #{tpu_custom_call.1} parent=63 // pred_fallthru
          _
        // Predicated region
        $region69: #{tpu_custom_call.1} parent=63 // pred_check
          %p590 = pneg %p96
        $region70: #{tpu_custom_call.1} parent=63 // pred_check_branch
          %592 = sbr.rel (%p590) target = $region72
        $region71: #{tpu_custom_call.1} parent=63 // pred_region
          %s593 = sand.u32 %s36, 1
          %s594 = scalar_lea.sflag [#allocation10], %s593
          %s595 = sand.u32 %s86, 1
          %s596 = smul.addr %s595, 8
          %s597 = scalar_lea.vmem [#allocation9], %s596
          %s599 = ssub.s32 128, 128
          %600 = vsyncadd %s594, %s599
          %s601 = smul.addr %s43, 128
          %s602 = scalar_lea.hbm %s1, %s601
          %s604 = sshll.u32 %s597, 4
          %s605 = int_to_ptr.vmem [resolvable:$true] %s604
          %607 = dma.hbm_to_vmem [thread:$0]  %s602, 128, %s605, %s594
        $region72: #{tpu_custom_call.1} parent=63 // pred_fallthru
          _
        // Predicated region
        $region73: #{tpu_custom_call.1} parent=63 // pred_check
          %p608 = pneg %p122
        $region74: #{tpu_custom_call.1} parent=63 // pred_check_branch
          %610 = sbr.rel (%p608) target = $region76
        $region75: #{tpu_custom_call.1} parent=63 // pred_region
          %s611 = sand.u32 %s36, 1
          %s612 = scalar_lea.sflag [#allocation10], %s611
          %s613 = sand.u32 %s112, 1
          %s614 = smul.addr %s613, 8
          %s615 = scalar_lea.vmem [#allocation11], %s614
          %s617 = ssub.s32 128, 128
          %618 = vsyncadd %s612, %s617
          %s619 = smul.addr %s43, 128
          %s620 = scalar_lea.hbm %s2, %s619
          %s622 = sshll.u32 %s615, 4
          %s623 = int_to_ptr.vmem [resolvable:$true] %s622
          %625 = dma.hbm_to_vmem [thread:$0]  %s620, 128, %s623, %s612
        $region76: #{tpu_custom_call.1} parent=63 // pred_fallthru
          _
      $region64: #{tpu_custom_call.1} parent=5 // pred_fallthru
        _
      %p626 = scmp.le.s32.totalorder 1, %s36
      %p627 = scmp.lt.s32.totalorder %s36, 3
      %p628 = pnand %p626, %p627
      %p629 = pneg %p628
      // Predicated region
      $region77: #{tpu_custom_call.1} parent=5 // pred_check
        _
      $region78: #{tpu_custom_call.1} parent=5 // pred_check_branch
        %631 = sbr.rel (%p628) target = $region80
      $region79: #{tpu_custom_call.1} parent=5 // pred_region
        %s632 = ssub.s32 %s36, 1
        %s633 = sand.u32 %s63, 1
        %s634 = scalar_lea.sflag [#allocation7], %s633
        %s635 = sand.u32 %s63, 1
        %s636 = smul.addr %s635, 8
        %s637 = scalar_lea.vmem [#allocation6], %s636
        // Predicated region
        $region81: #{tpu_custom_call.1} parent=79 // pred_check
          %p638 = pneg %p76
        $region82: #{tpu_custom_call.1} parent=79 // pred_check_branch
          %640 = sbr.rel (%p638) target = $region84
        $region83: #{tpu_custom_call.1} parent=79 // pred_region
          %641 = dma.done %s634, 128
        $region84: #{tpu_custom_call.1} parent=79 // pred_fallthru
          _
        %s642 = sand.u32 %s41, 1
        %s643 = scalar_lea.sflag [#allocation10], %s642
        %s644 = sand.u32 %s89, 1
        %s645 = smul.addr %s644, 8
        %s646 = scalar_lea.vmem [#allocation9], %s645
        // Predicated region
        $region85: #{tpu_custom_call.1} parent=79 // pred_check
          %p647 = pneg %p102
        $region86: #{tpu_custom_call.1} parent=79 // pred_check_branch
          %649 = sbr.rel (%p647) target = $region88
        $region87: #{tpu_custom_call.1} parent=79 // pred_region
          %650 = dma.done %s643, 128
        $region88: #{tpu_custom_call.1} parent=79 // pred_fallthru
          _
        %s651 = sand.u32 %s41, 1
        %s652 = scalar_lea.sflag [#allocation10], %s651
        %s653 = sand.u32 %s115, 1
        %s654 = smul.addr %s653, 8
        %s655 = scalar_lea.vmem [#allocation11], %s654
        // Predicated region
        $region89: #{tpu_custom_call.1} parent=79 // pred_check
          %p656 = pneg %p128
        $region90: #{tpu_custom_call.1} parent=79 // pred_check_branch
          %658 = sbr.rel (%p656) target = $region92
        $region91: #{tpu_custom_call.1} parent=79 // pred_region
          %659 = dma.done %s652, 128
        $region92: #{tpu_custom_call.1} parent=79 // pred_fallthru
          _
        // Predicated region
        $region93: #{tpu_custom_call.1} parent=79 // pred_check
          %p660 = pneg %p149
        $region94: #{tpu_custom_call.1} parent=79 // pred_check_branch
          %662 = sbr.rel (%p660) target = $region96
        $region95: #{tpu_custom_call.1} parent=79 // pred_region
          %663 = dma.done [#allocation13], 512
        $region96: #{tpu_custom_call.1} parent=79 // pred_fallthru
          _
        // Predicated region
        $region97: #{tpu_custom_call.1} parent=79 // pred_check
          %p664 = pneg %p170
        $region98: #{tpu_custom_call.1} parent=79 // pred_check_branch
          %666 = sbr.rel (%p664) target = $region100
        $region99: #{tpu_custom_call.1} parent=79 // pred_region
          %667 = dma.done [#allocation13], 16
        $region100: #{tpu_custom_call.1} parent=79 // pred_fallthru
          _
        // Predicated region
        $region101: #{tpu_custom_call.1} parent=79 // pred_check
          %p668 = pneg %p191
        $region102: #{tpu_custom_call.1} parent=79 // pred_check_branch
          %670 = sbr.rel (%p668) target = $region104
        $region103: #{tpu_custom_call.1} parent=79 // pred_region
          %671 = dma.done [#allocation16], 512
        $region104: #{tpu_custom_call.1} parent=79 // pred_fallthru
          _
        // Predicated region
        $region105: #{tpu_custom_call.1} parent=79 // pred_check
          %p672 = pneg %p212
        $region106: #{tpu_custom_call.1} parent=79 // pred_check_branch
          %674 = sbr.rel (%p672) target = $region108
        $region107: #{tpu_custom_call.1} parent=79 // pred_region
          %675 = dma.done [#allocation16], 16
        $region108: #{tpu_custom_call.1} parent=79 // pred_fallthru
          _
        // Predicated region
        $region109: #{tpu_custom_call.1} parent=79 // pred_check
          %p676 = pneg %p233
        $region110: #{tpu_custom_call.1} parent=79 // pred_check_branch
          %678 = sbr.rel (%p676) target = $region112
        $region111: #{tpu_custom_call.1} parent=79 // pred_region
          %679 = dma.done [#allocation19], 512
        $region112: #{tpu_custom_call.1} parent=79 // pred_fallthru
          _
        // Predicated region
        $region113: #{tpu_custom_call.1} parent=79 // pred_check
          %p680 = pneg %p254
        $region114: #{tpu_custom_call.1} parent=79 // pred_check_branch
          %682 = sbr.rel (%p680) target = $region116
        $region115: #{tpu_custom_call.1} parent=79 // pred_region
          %683 = dma.done [#allocation19], 16
        $region116: #{tpu_custom_call.1} parent=79 // pred_fallthru
          _
        // Predicated region
        $region117: #{tpu_custom_call.1} parent=79 // pred_check
          %p684 = pneg %p275
        $region118: #{tpu_custom_call.1} parent=79 // pred_check_branch
          %686 = sbr.rel (%p684) target = $region120
        $region119: #{tpu_custom_call.1} parent=79 // pred_region
          %687 = dma.done [#allocation22], 512
        $region120: #{tpu_custom_call.1} parent=79 // pred_fallthru
          _
        // Predicated region
        $region121: #{tpu_custom_call.1} parent=79 // pred_check
          %p688 = pneg %p296
        $region122: #{tpu_custom_call.1} parent=79 // pred_check_branch
          %690 = sbr.rel (%p688) target = $region124
        $region123: #{tpu_custom_call.1} parent=79 // pred_region
          %691 = dma.done [#allocation22], 16
        $region124: #{tpu_custom_call.1} parent=79 // pred_fallthru
          _
        // Predicated region
        $region125: #{tpu_custom_call.1} parent=79 // pred_check
          %p692 = pneg %p317
        $region126: #{tpu_custom_call.1} parent=79 // pred_check_branch
          %694 = sbr.rel (%p692) target = $region128
        $region127: #{tpu_custom_call.1} parent=79 // pred_region
          %695 = dma.done [#allocation25], 1024
        $region128: #{tpu_custom_call.1} parent=79 // pred_fallthru
          _
        // Predicated region
        $region129: #{tpu_custom_call.1} parent=79 // pred_check
          %p696 = pneg %p338
        $region130: #{tpu_custom_call.1} parent=79 // pred_check_branch
          %698 = sbr.rel (%p696) target = $region132
        $region131: #{tpu_custom_call.1} parent=79 // pred_region
          %699 = dma.done [#allocation25], 32
        $region132: #{tpu_custom_call.1} parent=79 // pred_fallthru
          _
        // Predicated region
        $region133: #{tpu_custom_call.1} parent=79 // pred_check
          %p700 = pneg %p359
        $region134: #{tpu_custom_call.1} parent=79 // pred_check_branch
          %702 = sbr.rel (%p700) target = $region136
        $region135: #{tpu_custom_call.1} parent=79 // pred_region
          %703 = dma.done [#allocation28], 16
        $region136: #{tpu_custom_call.1} parent=79 // pred_fallthru
          _
        // Predicated region
        $region137: #{tpu_custom_call.1} parent=79 // pred_check
          %p704 = pneg %p380
        $region138: #{tpu_custom_call.1} parent=79 // pred_check_branch
          %706 = sbr.rel (%p704) target = $region140
        $region139: #{tpu_custom_call.1} parent=79 // pred_region
          %707 = dma.done [#allocation28], 16
        $region140: #{tpu_custom_call.1} parent=79 // pred_fallthru
          _
        %s708 = sand.u32 %s63, 1
        %s709 = scalar_lea.sflag [#allocation7], %s708
        %s710 = sand.u32 %s63, 1
        %s711 = smul.addr %s710, 8
        %s712 = scalar_lea.vmem [#allocation6], %s711
        %p713 = pneg %p76
        %p714 = pneg %p73
        %s715 = sand.u32 %s41, 1
        %s716 = scalar_lea.sflag [#allocation10], %s715
        %s717 = sand.u32 %s89, 1
        %s718 = smul.addr %s717, 8
        %s719 = scalar_lea.vmem [#allocation9], %s718
        %p720 = pneg %p102
        %p721 = pneg %p99
        %s722 = sand.u32 %s41, 1
        %s723 = scalar_lea.sflag [#allocation10], %s722
        %s724 = sand.u32 %s115, 1
        %s725 = smul.addr %s724, 8
        %s726 = scalar_lea.vmem [#allocation11], %s725
        %p727 = pneg %p128
        %p728 = pneg %p125
        %p729 = pneg %p149
        %p730 = pneg %p146
        %p731 = pneg %p170
        %p732 = pneg %p167
        %p733 = pneg %p191
        %p734 = pneg %p188
        %p735 = pneg %p212
        %p736 = pneg %p209
        %p737 = pneg %p233
        %p738 = pneg %p230
        %p739 = pneg %p254
        %p740 = pneg %p251
        %p741 = pneg %p275
        %p742 = pneg %p272
        %p743 = pneg %p296
        %p744 = pneg %p293
        %p745 = pneg %p317
        %p746 = pneg %p314
        %p747 = pneg %p338
        %p748 = pneg %p335
        %p749 = pneg %p359
        %p750 = pneg %p356
        %p751 = pneg %p380
        %p752 = pneg %p377
        %p753 = pneg %p408
        %p754 = pneg %p405
        %s755 = sand.u32 %s395, 1
        %s756 = scalar_lea.sflag [#allocation8], %s755
        %s757 = sand.u32 %s395, 1
        %s758 = smul.addr %s757, 8
        %s759 = scalar_lea.vmem [#allocation30], %s758
        %p760 = scmp.eq.s32.totalorder %s46, 0
        // Predicated region
        $region141: #{tpu_custom_call.1} parent=79 // pred_check
          %p761 = pneg %p760
        $region142: #{tpu_custom_call.1} parent=79 // pred_check_branch
          %763 = sbr.rel (%p761) target = $region144
        $region143: #{tpu_custom_call.1} parent=79 // pred_region
          %v764 = vld [vmem:[%s646] sm:$0xff]
          %v765 = vld [vmem:[#allocation15] sm:$0xff]
          %v766 = vld [vmem:[#allocation15 + $0x8] sm:$0xff]
          %v767 = vld [vmem:[#allocation15 + $0x10] sm:$0xff]
          %v768 = vld [vmem:[#allocation15 + $0x18] sm:$0xff]
          %v769 = vld [vmem:[#allocation17] sm:$0x1]
          %v771 = vlaneseq
          %v772 = vshrl.u32 %v771, 7
          %v773 = vsub.s32 0, %v772
          %v774 = vrot.slane %v769, %v773
          %vm776 = vcmask 261120
          %v778 = vsel %vm776, %v764, 0
          %780 = vmatprep.subr.mxu0 0.0
          %781 = vmatpush1.msra.mxu0 %v765
          %782 = vmatprep.subr.mxu0 0.0
          %783 = vmatpush1.msra.mxu0 %v766
          %784 = vmatprep.subr.mxu0 0.0
          %785 = vmatpush1.msra.mxu0 %v767
          %786 = vmatprep.subr.mxu0 0.0
          %787 = vmatpush1.msra.mxu0 %v768
          %788 = vmatprep.subr.mxu0 0.0
          %789 = vmatpush1.msra.mxu0 0.0
          %790 = vmatprep.subr.mxu0 0.0
          %791 = vmatpush1.msra.mxu0 0.0
          %792 = vmatprep.subr.mxu0 0.0
          %793 = vmatpush1.msra.mxu0 0.0
          %794 = vmatprep.subr.mxu0 0.0
          %795 = vmatpush1.msra.mxu0 0.0
          %796 = vmatprep.subr.mxu0 0.0
          %797 = vmatpush1.msra.mxu0 0.0
          %798 = vmatprep.subr.mxu0 0.0
          %799 = vmatpush1.msra.mxu0 0.0
          %800 = vmatprep.subr.mxu0 0.0
          %801 = vmatpush1.msra.mxu0 0.0
          %802 = vmatprep.subr.mxu0 0.0
          %803 = vmatpush1.msra.mxu0 0.0
          %804 = vmatprep.subr.mxu0 0.0
          %805 = vmatpush1.msra.mxu0 0.0
          %806 = vmatprep.subr.mxu0 0.0
          %807 = vmatpush1.msra.mxu0 0.0
          %808 = vmatprep.subr.mxu0 0.0
          %809 = vmatpush1.msra.mxu0 0.0
          %810 = vmatprep.subr.mxu0 0.0
          %811 = vmatpush1.msra.mxu0 0.0
          %812 = vmatprep.subr.mxu0 0.0
          %813 = vmatpush1.msra.mxu0 0.0
          %814 = vmatprep.subr.mxu0 0.0
          %815 = vmatpush1.msra.mxu0 0.0
          %816 = vmatprep.subr.mxu0 0.0
          %817 = vmatpush1.msra.mxu0 0.0
          %818 = vmatprep.subr.mxu0 0.0
          %819 = vmatpush1.msra.mxu0 0.0
          %820 = vmatprep.subr.mxu0 0.0
          %821 = vmatpush1.msra.mxu0 0.0
          %822 = vmatprep.subr.mxu0 0.0
          %823 = vmatpush1.msra.mxu0 0.0
          %824 = vmatprep.subr.mxu0 0.0
          %825 = vmatpush1.msra.mxu0 0.0
          %826 = vmatprep.subr.mxu0 0.0
          %827 = vmatpush1.msra.mxu0 0.0
          %828 = vmatprep.subr.mxu0 0.0
          %829 = vmatpush1.msra.mxu0 0.0
          %830 = vmatprep.subr.mxu0 0.0
          %831 = vmatpush1.msra.mxu0 0.0
          %832 = vmatprep.subr.mxu0 0.0
          %833 = vmatpush1.msra.mxu0 0.0
          %834 = vmatprep.subr.mxu0 0.0
          %835 = vmatpush1.msra.mxu0 0.0
          %836 = vmatprep.subr.mxu0 0.0
          %837 = vmatpush1.msra.mxu0 0.0
          %838 = vmatprep.subr.mxu0 0.0
          %839 = vmatpush1.msra.mxu0 0.0
          %840 = vmatprep.subr.mxu0 0.0
          %841 = vmatpush1.msra.mxu0 0.0
          %842 = vmatprep.subr.mxu0 0.0
          %843 = vmatpush1.msra.mxu0 0.0
          %844 = vmatprep.mubr.f32.mxu0 0.0
          %845 = vmatmul.mubr.f32.gmra.mrb[0].mxu0 %v778
          %v846 = vpop.f32.mrb[0].mxu0
          %v847 = vadd.f32 %v774, %v846
          %v848 = vpop.f32.mrb[0].mxu0
          %849 = vdwg.mxu0
          %850 = vst.msk [vmem:[#allocation2] sm:$0xff] %vm776, %v847
          %852 = vrot.lane.b32.xlu0 %v847, 96
          %v853 = vpop.permute.xlu0 %852
          %855 = vst.msk [vmem:[#allocation3] sm:$0xff] %vm776, %v853
          %v856 = vld [vmem:[%s655] sm:$0xff]
          %v857 = vld [vmem:[#allocation21] sm:$0xff]
          %v858 = vld [vmem:[#allocation21 + $0x8] sm:$0xff]
          %v859 = vld [vmem:[#allocation21 + $0x10] sm:$0xff]
          %v860 = vld [vmem:[#allocation21 + $0x18] sm:$0xff]
          %v861 = vld [vmem:[#allocation23] sm:$0x1]
          %v863 = vlaneseq
          %v864 = vshrl.u32 %v863, 7
          %v865 = vsub.s32 0, %v864
          %v866 = vrot.slane %v861, %v865
          %v869 = vsel %vm776, %v856, 0
          %871 = vmatprep.subr.mxu0 0.0
          %872 = vmatpush1.msra.mxu0 %v857
          %873 = vmatprep.subr.mxu0 0.0
          %874 = vmatpush1.msra.mxu0 %v858
          %875 = vmatprep.subr.mxu0 0.0
          %876 = vmatpush1.msra.mxu0 %v859
          %877 = vmatprep.subr.mxu0 0.0
          %878 = vmatpush1.msra.mxu0 %v860
          %879 = vmatprep.subr.mxu0 0.0
          %880 = vmatpush1.msra.mxu0 0.0
          %881 = vmatprep.subr.mxu0 0.0
          %882 = vmatpush1.msra.mxu0 0.0
          %883 = vmatprep.subr.mxu0 0.0
          %884 = vmatpush1.msra.mxu0 0.0
          %885 = vmatprep.subr.mxu0 0.0
          %886 = vmatpush1.msra.mxu0 0.0
          %887 = vmatprep.subr.mxu0 0.0
          %888 = vmatpush1.msra.mxu0 0.0
          %889 = vmatprep.subr.mxu0 0.0
          %890 = vmatpush1.msra.mxu0 0.0
          %891 = vmatprep.subr.mxu0 0.0
          %892 = vmatpush1.msra.mxu0 0.0
          %893 = vmatprep.subr.mxu0 0.0
          %894 = vmatpush1.msra.mxu0 0.0
          %895 = vmatprep.subr.mxu0 0.0
          %896 = vmatpush1.msra.mxu0 0.0
          %897 = vmatprep.subr.mxu0 0.0
          %898 = vmatpush1.msra.mxu0 0.0
          %899 = vmatprep.subr.mxu0 0.0
          %900 = vmatpush1.msra.mxu0 0.0
          %901 = vmatprep.subr.mxu0 0.0
          %902 = vmatpush1.msra.mxu0 0.0
          %903 = vmatprep.subr.mxu0 0.0
          %904 = vmatpush1.msra.mxu0 0.0
          %905 = vmatprep.subr.mxu0 0.0
          %906 = vmatpush1.msra.mxu0 0.0
          %907 = vmatprep.subr.mxu0 0.0
          %908 = vmatpush1.msra.mxu0 0.0
          %909 = vmatprep.subr.mxu0 0.0
          %910 = vmatpush1.msra.mxu0 0.0
          %911 = vmatprep.subr.mxu0 0.0
          %912 = vmatpush1.msra.mxu0 0.0
          %913 = vmatprep.subr.mxu0 0.0
          %914 = vmatpush1.msra.mxu0 0.0
          %915 = vmatprep.subr.mxu0 0.0
          %916 = vmatpush1.msra.mxu0 0.0
          %917 = vmatprep.subr.mxu0 0.0
          %918 = vmatpush1.msra.mxu0 0.0
          %919 = vmatprep.subr.mxu0 0.0
          %920 = vmatpush1.msra.mxu0 0.0
          %921 = vmatprep.subr.mxu0 0.0
          %922 = vmatpush1.msra.mxu0 0.0
          %923 = vmatprep.subr.mxu0 0.0
          %924 = vmatpush1.msra.mxu0 0.0
          %925 = vmatprep.subr.mxu0 0.0
          %926 = vmatpush1.msra.mxu0 0.0
          %927 = vmatprep.subr.mxu0 0.0
          %928 = vmatpush1.msra.mxu0 0.0
          %929 = vmatprep.subr.mxu0 0.0
          %930 = vmatpush1.msra.mxu0 0.0
          %931 = vmatprep.subr.mxu0 0.0
          %932 = vmatpush1.msra.mxu0 0.0
          %933 = vmatprep.subr.mxu0 0.0
          %934 = vmatpush1.msra.mxu0 0.0
          %935 = vmatprep.mubr.f32.mxu0 0.0
          %936 = vmatmul.mubr.f32.gmra.mrb[0].mxu0 %v869
          %v937 = vpop.f32.mrb[0].mxu0
          %v938 = vadd.f32 %v866, %v937
          %v939 = vpop.f32.mrb[0].mxu0
          %940 = vdwg.mxu0
          %941 = vst.msk [vmem:[#allocation4] sm:$0xff] %vm776, %v938
          %943 = vrot.lane.b32.xlu0 %v938, 96
          %v944 = vpop.permute.xlu0 %943
          %946 = vst.msk [vmem:[#allocation5] sm:$0xff] %vm776, %v944
        $region144: #{tpu_custom_call.1} parent=79 // pred_fallthru
          _
        %v947 = vld [vmem:[%s637] sm:$0xff]
        %v948 = vld [vmem:[#allocation27] sm:$0x1]
        %v949 = vld [vmem:[#allocation29] sm:$0x1]
        %v950 = vld [vmem:[#allocation12] sm:$0xff]
        %v951 = vld [vmem:[#allocation12 + $0x8] sm:$0xff]
        %v952 = vld [vmem:[#allocation12 + $0x10] sm:$0xff]
        %v953 = vld [vmem:[#allocation12 + $0x18] sm:$0xff]
        %v954 = vld [vmem:[#allocation14] sm:$0x1]
        %v956 = vlaneseq
        %v957 = vshrl.u32 %v956, 7
        %v958 = vsub.s32 0, %v957
        %v959 = vrot.slane %v954, %v958
        %vm961 = vcmask 261120
        %v963 = vsel %vm961, %v947, 0
        %965 = vmatprep.subr.mxu0 0.0
        %966 = vmatpush1.msra.mxu0 %v950
        %967 = vmatprep.subr.mxu0 0.0
        %968 = vmatpush1.msra.mxu0 %v951
        %969 = vmatprep.subr.mxu0 0.0
        %970 = vmatpush1.msra.mxu0 %v952
        %971 = vmatprep.subr.mxu0 0.0
        %972 = vmatpush1.msra.mxu0 %v953
        %973 = vmatprep.subr.mxu0 0.0
        %974 = vmatpush1.msra.mxu0 0.0
        %975 = vmatprep.subr.mxu0 0.0
        %976 = vmatpush1.msra.mxu0 0.0
        %977 = vmatprep.subr.mxu0 0.0
        %978 = vmatpush1.msra.mxu0 0.0
        %979 = vmatprep.subr.mxu0 0.0
        %980 = vmatpush1.msra.mxu0 0.0
        %981 = vmatprep.subr.mxu0 0.0
        %982 = vmatpush1.msra.mxu0 0.0
        %983 = vmatprep.subr.mxu0 0.0
        %984 = vmatpush1.msra.mxu0 0.0
        %985 = vmatprep.subr.mxu0 0.0
        %986 = vmatpush1.msra.mxu0 0.0
        %987 = vmatprep.subr.mxu0 0.0
        %988 = vmatpush1.msra.mxu0 0.0
        %989 = vmatprep.subr.mxu0 0.0
        %990 = vmatpush1.msra.mxu0 0.0
        %991 = vmatprep.subr.mxu0 0.0
        %992 = vmatpush1.msra.mxu0 0.0
        %993 = vmatprep.subr.mxu0 0.0
        %994 = vmatpush1.msra.mxu0 0.0
        %995 = vmatprep.subr.mxu0 0.0
        %996 = vmatpush1.msra.mxu0 0.0
        %997 = vmatprep.subr.mxu0 0.0
        %998 = vmatpush1.msra.mxu0 0.0
        %999 = vmatprep.subr.mxu0 0.0
        %1000 = vmatpush1.msra.mxu0 0.0
        %1001 = vmatprep.subr.mxu0 0.0
        %1002 = vmatpush1.msra.mxu0 0.0
        %1003 = vmatprep.subr.mxu0 0.0
        %1004 = vmatpush1.msra.mxu0 0.0
        %1005 = vmatprep.subr.mxu0 0.0
        %1006 = vmatpush1.msra.mxu0 0.0
        %1007 = vmatprep.subr.mxu0 0.0
        %1008 = vmatpush1.msra.mxu0 0.0
        %1009 = vmatprep.subr.mxu0 0.0
        %1010 = vmatpush1.msra.mxu0 0.0
        %1011 = vmatprep.subr.mxu0 0.0
        %1012 = vmatpush1.msra.mxu0 0.0
        %1013 = vmatprep.subr.mxu0 0.0
        %1014 = vmatpush1.msra.mxu0 0.0
        %1015 = vmatprep.subr.mxu0 0.0
        %1016 = vmatpush1.msra.mxu0 0.0
        %1017 = vmatprep.subr.mxu0 0.0
        %1018 = vmatpush1.msra.mxu0 0.0
        %1019 = vmatprep.subr.mxu0 0.0
        %1020 = vmatpush1.msra.mxu0 0.0
        %1021 = vmatprep.subr.mxu0 0.0
        %1022 = vmatpush1.msra.mxu0 0.0
        %1023 = vmatprep.subr.mxu0 0.0
        %1024 = vmatpush1.msra.mxu0 0.0
        %1025 = vmatprep.subr.mxu0 0.0
        %1026 = vmatpush1.msra.mxu0 0.0
        %1027 = vmatprep.subr.mxu0 0.0
        %1028 = vmatpush1.msra.mxu0 0.0
        %1029 = vmatprep.mubr.f32.mxu0 0.0
        %1030 = vmatmul.mubr.f32.gmra.mrb[0].mxu0 %v963
        %v1031 = vpop.f32.mrb[0].mxu0
        %v1032 = vadd.f32 %v959, %v1031
        %v1033 = vpop.f32.mrb[0].mxu0
        %1034 = vdwg.mxu0
        %v1035 = vld [vmem:[#allocation2] sm:$0xff]
        %v1036 = vld [vmem:[#allocation3] sm:$0xff]
        %v1038 = vsel %vm961, %v1032, 0
        %v1041 = vsel %vm961, %v1035, 0
        %1043 = vmatprep.subr.mxu0 0.0
        %1044 = vmatpush1.xpose.msra.mxu0 %v1041
        %1045 = vmatprep.subr.mxu0 0.0
        %1046 = vmatpush1.xpose.msra.mxu0 0.0
        %1047 = vmatprep.subr.mxu0 0.0
        %1048 = vmatpush1.xpose.msra.mxu0 0.0
        %1049 = vmatprep.subr.mxu0 0.0
        %1050 = vmatpush1.xpose.msra.mxu0 0.0
        %1051 = vmatprep.subr.mxu0 0.0
        %1052 = vmatpush1.xpose.msra.mxu0 0.0
        %1053 = vmatprep.subr.mxu0 0.0
        %1054 = vmatpush1.xpose.msra.mxu0 0.0
        %1055 = vmatprep.subr.mxu0 0.0
        %1056 = vmatpush1.xpose.msra.mxu0 0.0
        %1057 = vmatprep.subr.mxu0 0.0
        %1058 = vmatpush1.xpose.msra.mxu0 0.0
        %1059 = vmatprep.subr.mxu0 0.0
        %1060 = vmatpush1.xpose.msra.mxu0 0.0
        %1061 = vmatprep.subr.mxu0 0.0
        %1062 = vmatpush1.xpose.msra.mxu0 0.0
        %1063 = vmatprep.subr.mxu0 0.0
        %1064 = vmatpush1.xpose.msra.mxu0 0.0
        %1065 = vmatprep.subr.mxu0 0.0
        %1066 = vmatpush1.xpose.msra.mxu0 0.0
        %1067 = vmatprep.subr.mxu0 0.0
        %1068 = vmatpush1.xpose.msra.mxu0 0.0
        %1069 = vmatprep.subr.mxu0 0.0
        %1070 = vmatpush1.xpose.msra.mxu0 0.0
        %1071 = vmatprep.subr.mxu0 0.0
        %1072 = vmatpush1.xpose.msra.mxu0 0.0
        %1073 = vmatprep.subr.mxu0 0.0
        %1074 = vmatpush1.xpose.msra.mxu0 0.0
        %1075 = vmatprep.subr.mxu0 0.0
        %1076 = vmatpush1.xpose.msra.mxu0 0.0
        %1077 = vmatprep.subr.mxu0 0.0
        %1078 = vmatpush1.xpose.msra.mxu0 0.0
        %1079 = vmatprep.subr.mxu0 0.0
        %1080 = vmatpush1.xpose.msra.mxu0 0.0
        %1081 = vmatprep.subr.mxu0 0.0
        %1082 = vmatpush1.xpose.msra.mxu0 0.0
        %1083 = vmatprep.subr.mxu0 0.0
        %1084 = vmatpush1.xpose.msra.mxu0 0.0
        %1085 = vmatprep.subr.mxu0 0.0
        %1086 = vmatpush1.xpose.msra.mxu0 0.0
        %1087 = vmatprep.subr.mxu0 0.0
        %1088 = vmatpush1.xpose.msra.mxu0 0.0
        %1089 = vmatprep.subr.mxu0 0.0
        %1090 = vmatpush1.xpose.msra.mxu0 0.0
        %1091 = vmatprep.subr.mxu0 0.0
        %1092 = vmatpush1.xpose.msra.mxu0 0.0
        %1093 = vmatprep.subr.mxu0 0.0
        %1094 = vmatpush1.xpose.msra.mxu0 0.0
        %1095 = vmatprep.subr.mxu0 0.0
        %1096 = vmatpush1.xpose.msra.mxu0 0.0
        %1097 = vmatprep.subr.mxu0 0.0
        %1098 = vmatpush1.xpose.msra.mxu0 0.0
        %1099 = vmatprep.subr.mxu0 0.0
        %1100 = vmatpush1.xpose.msra.mxu0 0.0
        %1101 = vmatprep.subr.mxu0 0.0
        %1102 = vmatpush1.xpose.msra.mxu0 0.0
        %1103 = vmatprep.subr.mxu0 0.0
        %1104 = vmatpush1.xpose.msra.mxu0 0.0
        %1105 = vmatprep.subr.mxu0 0.0
        %1106 = vmatpush1.xpose.msra.mxu0 0.0
        %1107 = vmatprep.mubr.f32.mxu0 0.0
        %1108 = vmatmul.mubr.f32.gmra.mrb[0].mxu0 %v1038
        %v1109 = vpop.f32.mrb[0].mxu0
        %v1110 = vadd.f32 0.0, %v1109
        %v1111 = vpop.f32.mrb[0].mxu0
        %1112 = vdwg.mxu0
        %vm1113 = vcmask 64512
        %v1114 = vsel %vm1113, %v1110, -inf
        %1115 = vmax.xlane.f32.xlu0 %v1114
        %v1116 = vpop.xlane.xlu0 %1115
        %v1117 = vsub.f32 -inf, %v1116
        %v1118 = vmul.f32 %v1117, 1.442695
        %v1119 = vpow.pop %v1118
        %v1120 = vsub.f32 %v1110, %v1116
        %v1121 = vmul.f32 %v1120, 1.442695
        %v1122 = vpow.pop %v1121
        %v1123 = vmul.f32 %v1119, 0.0
        %v1124 = vsel %vm1113, %v1122, 0.0
        %1125 = vadd.xlane.f32.xlu0 %v1124
        %v1126 = vpop.xlane.xlu0 %1125
        %v1127 = vadd.f32 %v1123, %v1126
        %v1129 = vsel %vm1113, %v1122, 0
        %1131 = vmatprep.subr.mxu0 0.0
        %1132 = vmatpush1.msra.mxu0 %v1036
        %1133 = vmatprep.subr.mxu0 0.0
        %1134 = vmatpush1.msra.mxu0 0.0
        %1135 = vmatprep.subr.mxu0 0.0
        %1136 = vmatpush1.msra.mxu0 0.0
        %1137 = vmatprep.subr.mxu0 0.0
        %1138 = vmatpush1.msra.mxu0 0.0
        %1139 = vmatprep.subr.mxu0 0.0
        %1140 = vmatpush1.msra.mxu0 0.0
        %1141 = vmatprep.subr.mxu0 0.0
        %1142 = vmatpush1.msra.mxu0 0.0
        %1143 = vmatprep.subr.mxu0 0.0
        %1144 = vmatpush1.msra.mxu0 0.0
        %1145 = vmatprep.subr.mxu0 0.0
        %1146 = vmatpush1.msra.mxu0 0.0
        %1147 = vmatprep.subr.mxu0 0.0
        %1148 = vmatpush1.msra.mxu0 0.0
        %1149 = vmatprep.subr.mxu0 0.0
        %1150 = vmatpush1.msra.mxu0 0.0
        %1151 = vmatprep.subr.mxu0 0.0
        %1152 = vmatpush1.msra.mxu0 0.0
        %1153 = vmatprep.subr.mxu0 0.0
        %1154 = vmatpush1.msra.mxu0 0.0
        %1155 = vmatprep.subr.mxu0 0.0
        %1156 = vmatpush1.msra.mxu0 0.0
        %1157 = vmatprep.subr.mxu0 0.0
        %1158 = vmatpush1.msra.mxu0 0.0
        %1159 = vmatprep.subr.mxu0 0.0
        %1160 = vmatpush1.msra.mxu0 0.0
        %1161 = vmatprep.subr.mxu0 0.0
        %1162 = vmatpush1.msra.mxu0 0.0
        %1163 = vmatprep.subr.mxu0 0.0
        %1164 = vmatpush1.msra.mxu0 0.0
        %1165 = vmatprep.subr.mxu0 0.0
        %1166 = vmatpush1.msra.mxu0 0.0
        %1167 = vmatprep.subr.mxu0 0.0
        %1168 = vmatpush1.msra.mxu0 0.0
        %1169 = vmatprep.subr.mxu0 0.0
        %1170 = vmatpush1.msra.mxu0 0.0
        %1171 = vmatprep.subr.mxu0 0.0
        %1172 = vmatpush1.msra.mxu0 0.0
        %1173 = vmatprep.subr.mxu0 0.0
        %1174 = vmatpush1.msra.mxu0 0.0
        %1175 = vmatprep.subr.mxu0 0.0
        %1176 = vmatpush1.msra.mxu0 0.0
        %1177 = vmatprep.subr.mxu0 0.0
        %1178 = vmatpush1.msra.mxu0 0.0
        %1179 = vmatprep.subr.mxu0 0.0
        %1180 = vmatpush1.msra.mxu0 0.0
        %1181 = vmatprep.subr.mxu0 0.0
        %1182 = vmatpush1.msra.mxu0 0.0
        %1183 = vmatprep.subr.mxu0 0.0
        %1184 = vmatpush1.msra.mxu0 0.0
        %1185 = vmatprep.subr.mxu0 0.0
        %1186 = vmatpush1.msra.mxu0 0.0
        %1187 = vmatprep.subr.mxu0 0.0
        %1188 = vmatpush1.msra.mxu0 0.0
        %1189 = vmatprep.subr.mxu0 0.0
        %1190 = vmatpush1.msra.mxu0 0.0
        %1191 = vmatprep.subr.mxu0 0.0
        %1192 = vmatpush1.msra.mxu0 0.0
        %1193 = vmatprep.subr.mxu0 0.0
        %1194 = vmatpush1.msra.mxu0 0.0
        %1195 = vmatprep.mubr.f32.mxu0 0.0
        %1196 = vmatmul.mubr.f32.gmra.mrb[0].mxu0 %v1129
        %v1197 = vpop.f32.mrb[0].mxu0
        %v1198 = vadd.f32 0.0, %v1197
        %v1199 = vpop.f32.mrb[0].mxu0
        %1200 = vdwg.mxu0
        %v1201 = vadd.f32 %v1123, %v1198
        %v1202 = vrcp.pop %v1127
        %v1203 = vmul.f32 %v1201, %v1202
        %v1204 = vadd.f32 %v1203, %v947
        %v1205 = vsel %vm961, %v1204, 0.0
        %1206 = vadd.xlane.f32.xlu0 %v1205
        %v1207 = vpop.xlane.xlu0 %1206
        %v1208 = vrcp.pop 32.0
        %v1209 = vmul.f32 %v1207, %v1208
        %v1210 = vsub.f32 %v1204, %v1209
        %v1211 = vmul.f32 %v1210, %v1210
        %v1212 = vsel %vm961, %v1211, 0.0
        %1213 = vadd.xlane.f32.xlu0 %v1212
        %v1214 = vpop.xlane.xlu0 %1213
        %v1215 = vmul.f32 %v1214, %v1208
        %v1216 = vadd.f32 %v1215, 1e-05
        %v1217 = vrsqrt.pop %v1216
        %v1218 = vmul.f32 %v1210, %v1217
        %v1219 = vadd.f32 %v1218, %v947
        %v1220 = vsel %vm961, %v1219, 0.0
        %1221 = vadd.xlane.f32.xlu0 %v1220
        %v1222 = vpop.xlane.xlu0 %1221
        %v1223 = vmul.f32 %v1222, %v1208
        %v1224 = vsub.f32 %v1219, %v1223
        %v1225 = vmul.f32 %v1224, %v1224
        %v1226 = vsel %vm961, %v1225, 0.0
        %1227 = vadd.xlane.f32.xlu0 %v1226
        %v1228 = vpop.xlane.xlu0 %1227
        %v1229 = vmul.f32 %v1228, %v1208
        %v1230 = vadd.f32 %v1229, 1e-05
        %v1231 = vrsqrt.pop %v1230
        %v1232 = vmul.f32 %v1224, %v1231
        %v1234 = vlaneseq
        %v1235 = vshrl.u32 %v1234, 7
        %v1236 = vsub.s32 0, %v1235
        %v1237 = vrot.slane %v948, %v1236
        %v1239 = vmul.f32 %v1232, %v1237
        %v1241 = vlaneseq
        %v1242 = vshrl.u32 %v1241, 7
        %v1243 = vsub.s32 0, %v1242
        %v1244 = vrot.slane %v949, %v1243
        %v1246 = vadd.f32 %v1239, %v1244
        %v1247 = vld [vmem:[#allocation18] sm:$0xff]
        %v1248 = vld [vmem:[#allocation18 + $0x8] sm:$0xff]
        %v1249 = vld [vmem:[#allocation18 + $0x10] sm:$0xff]
        %v1250 = vld [vmem:[#allocation18 + $0x18] sm:$0xff]
        %v1251 = vld [vmem:[#allocation20] sm:$0x1]
        %v1253 = vlaneseq
        %v1254 = vshrl.u32 %v1253, 7
        %v1255 = vsub.s32 0, %v1254
        %v1256 = vrot.slane %v1251, %v1255
        %v1259 = vsel %vm961, %v1246, 0
        %1261 = vmatprep.subr.mxu0 0.0
        %1262 = vmatpush1.msra.mxu0 %v1247
        %1263 = vmatprep.subr.mxu0 0.0
        %1264 = vmatpush1.msra.mxu0 %v1248
        %1265 = vmatprep.subr.mxu0 0.0
        %1266 = vmatpush1.msra.mxu0 %v1249
        %1267 = vmatprep.subr.mxu0 0.0
        %1268 = vmatpush1.msra.mxu0 %v1250
        %1269 = vmatprep.subr.mxu0 0.0
        %1270 = vmatpush1.msra.mxu0 0.0
        %1271 = vmatprep.subr.mxu0 0.0
        %1272 = vmatpush1.msra.mxu0 0.0
        %1273 = vmatprep.subr.mxu0 0.0
        %1274 = vmatpush1.msra.mxu0 0.0
        %1275 = vmatprep.subr.mxu0 0.0
        %1276 = vmatpush1.msra.mxu0 0.0
        %1277 = vmatprep.subr.mxu0 0.0
        %1278 = vmatpush1.msra.mxu0 0.0
        %1279 = vmatprep.subr.mxu0 0.0
        %1280 = vmatpush1.msra.mxu0 0.0
        %1281 = vmatprep.subr.mxu0 0.0
        %1282 = vmatpush1.msra.mxu0 0.0
        %1283 = vmatprep.subr.mxu0 0.0
        %1284 = vmatpush1.msra.mxu0 0.0
        %1285 = vmatprep.subr.mxu0 0.0
        %1286 = vmatpush1.msra.mxu0 0.0
        %1287 = vmatprep.subr.mxu0 0.0
        %1288 = vmatpush1.msra.mxu0 0.0
        %1289 = vmatprep.subr.mxu0 0.0
        %1290 = vmatpush1.msra.mxu0 0.0
        %1291 = vmatprep.subr.mxu0 0.0
        %1292 = vmatpush1.msra.mxu0 0.0
        %1293 = vmatprep.subr.mxu0 0.0
        %1294 = vmatpush1.msra.mxu0 0.0
        %1295 = vmatprep.subr.mxu0 0.0
        %1296 = vmatpush1.msra.mxu0 0.0
        %1297 = vmatprep.subr.mxu0 0.0
        %1298 = vmatpush1.msra.mxu0 0.0
        %1299 = vmatprep.subr.mxu0 0.0
        %1300 = vmatpush1.msra.mxu0 0.0
        %1301 = vmatprep.subr.mxu0 0.0
        %1302 = vmatpush1.msra.mxu0 0.0
        %1303 = vmatprep.subr.mxu0 0.0
        %1304 = vmatpush1.msra.mxu0 0.0
        %1305 = vmatprep.subr.mxu0 0.0
        %1306 = vmatpush1.msra.mxu0 0.0
        %1307 = vmatprep.subr.mxu0 0.0
        %1308 = vmatpush1.msra.mxu0 0.0
        %1309 = vmatprep.subr.mxu0 0.0
        %1310 = vmatpush1.msra.mxu0 0.0
        %1311 = vmatprep.subr.mxu0 0.0
        %1312 = vmatpush1.msra.mxu0 0.0
        %1313 = vmatprep.subr.mxu0 0.0
        %1314 = vmatpush1.msra.mxu0 0.0
        %1315 = vmatprep.subr.mxu0 0.0
        %1316 = vmatpush1.msra.mxu0 0.0
        %1317 = vmatprep.subr.mxu0 0.0
        %1318 = vmatpush1.msra.mxu0 0.0
        %1319 = vmatprep.subr.mxu0 0.0
        %1320 = vmatpush1.msra.mxu0 0.0
        %1321 = vmatprep.subr.mxu0 0.0
        %1322 = vmatpush1.msra.mxu0 0.0
        %1323 = vmatprep.subr.mxu0 0.0
        %1324 = vmatpush1.msra.mxu0 0.0
        %1325 = vmatprep.mubr.f32.mxu0 0.0
        %1326 = vmatmul.mubr.f32.gmra.mrb[0].mxu0 %v1259
        %v1327 = vpop.f32.mrb[0].mxu0
        %v1328 = vadd.f32 %v1256, %v1327
        %v1329 = vpop.f32.mrb[0].mxu0
        %1330 = vdwg.mxu0
        %v1331 = vld [vmem:[#allocation4] sm:$0xff]
        %v1332 = vld [vmem:[#allocation5] sm:$0xff]
        %v1334 = vsel %vm961, %v1328, 0
        %v1337 = vsel %vm961, %v1331, 0
        %1339 = vmatprep.subr.mxu0 0.0
        %1340 = vmatpush1.xpose.msra.mxu0 %v1337
        %1341 = vmatprep.subr.mxu0 0.0
        %1342 = vmatpush1.xpose.msra.mxu0 0.0
        %1343 = vmatprep.subr.mxu0 0.0
        %1344 = vmatpush1.xpose.msra.mxu0 0.0
        %1345 = vmatprep.subr.mxu0 0.0
        %1346 = vmatpush1.xpose.msra.mxu0 0.0
        %1347 = vmatprep.subr.mxu0 0.0
        %1348 = vmatpush1.xpose.msra.mxu0 0.0
        %1349 = vmatprep.subr.mxu0 0.0
        %1350 = vmatpush1.xpose.msra.mxu0 0.0
        %1351 = vmatprep.subr.mxu0 0.0
        %1352 = vmatpush1.xpose.msra.mxu0 0.0
        %1353 = vmatprep.subr.mxu0 0.0
        %1354 = vmatpush1.xpose.msra.mxu0 0.0
        %1355 = vmatprep.subr.mxu0 0.0
        %1356 = vmatpush1.xpose.msra.mxu0 0.0
        %1357 = vmatprep.subr.mxu0 0.0
        %1358 = vmatpush1.xpose.msra.mxu0 0.0
        %1359 = vmatprep.subr.mxu0 0.0
        %1360 = vmatpush1.xpose.msra.mxu0 0.0
        %1361 = vmatprep.subr.mxu0 0.0
        %1362 = vmatpush1.xpose.msra.mxu0 0.0
        %1363 = vmatprep.subr.mxu0 0.0
        %1364 = vmatpush1.xpose.msra.mxu0 0.0
        %1365 = vmatprep.subr.mxu0 0.0
        %1366 = vmatpush1.xpose.msra.mxu0 0.0
        %1367 = vmatprep.subr.mxu0 0.0
        %1368 = vmatpush1.xpose.msra.mxu0 0.0
        %1369 = vmatprep.subr.mxu0 0.0
        %1370 = vmatpush1.xpose.msra.mxu0 0.0
        %1371 = vmatprep.subr.mxu0 0.0
        %1372 = vmatpush1.xpose.msra.mxu0 0.0
        %1373 = vmatprep.subr.mxu0 0.0
        %1374 = vmatpush1.xpose.msra.mxu0 0.0
        %1375 = vmatprep.subr.mxu0 0.0
        %1376 = vmatpush1.xpose.msra.mxu0 0.0
        %1377 = vmatprep.subr.mxu0 0.0
        %1378 = vmatpush1.xpose.msra.mxu0 0.0
        %1379 = vmatprep.subr.mxu0 0.0
        %1380 = vmatpush1.xpose.msra.mxu0 0.0
        %1381 = vmatprep.subr.mxu0 0.0
        %1382 = vmatpush1.xpose.msra.mxu0 0.0
        %1383 = vmatprep.subr.mxu0 0.0
        %1384 = vmatpush1.xpose.msra.mxu0 0.0
        %1385 = vmatprep.subr.mxu0 0.0
        %1386 = vmatpush1.xpose.msra.mxu0 0.0
        %1387 = vmatprep.subr.mxu0 0.0
        %1388 = vmatpush1.xpose.msra.mxu0 0.0
        %1389 = vmatprep.subr.mxu0 0.0
        %1390 = vmatpush1.xpose.msra.mxu0 0.0
        %1391 = vmatprep.subr.mxu0 0.0
        %1392 = vmatpush1.xpose.msra.mxu0 0.0
        %1393 = vmatprep.subr.mxu0 0.0
        %1394 = vmatpush1.xpose.msra.mxu0 0.0
        %1395 = vmatprep.subr.mxu0 0.0
        %1396 = vmatpush1.xpose.msra.mxu0 0.0
        %1397 = vmatprep.subr.mxu0 0.0
        %1398 = vmatpush1.xpose.msra.mxu0 0.0
        %1399 = vmatprep.subr.mxu0 0.0
        %1400 = vmatpush1.xpose.msra.mxu0 0.0
        %1401 = vmatprep.subr.mxu0 0.0
        %1402 = vmatpush1.xpose.msra.mxu0 0.0
        %1403 = vmatprep.mubr.f32.mxu0 0.0
        %1404 = vmatmul.mubr.f32.gmra.mrb[0].mxu0 %v1334
        %v1405 = vpop.f32.mrb[0].mxu0
        %v1406 = vadd.f32 0.0, %v1405
        %v1407 = vpop.f32.mrb[0].mxu0
        %1408 = vdwg.mxu0
        %v1409 = vsel %vm1113, %v1406, -inf
        %1410 = vmax.xlane.f32.xlu0 %v1409
        %v1411 = vpop.xlane.xlu0 %1410
        %v1412 = vsub.f32 -inf, %v1411
        %v1413 = vmul.f32 %v1412, 1.442695
        %v1414 = vpow.pop %v1413
        %v1415 = vsub.f32 %v1406, %v1411
        %v1416 = vmul.f32 %v1415, 1.442695
        %v1417 = vpow.pop %v1416
        %v1418 = vmul.f32 %v1414, 0.0
        %v1419 = vsel %vm1113, %v1417, 0.0
        %1420 = vadd.xlane.f32.xlu0 %v1419
        %v1421 = vpop.xlane.xlu0 %1420
        %v1422 = vadd.f32 %v1418, %v1421
        %v1424 = vsel %vm1113, %v1417, 0
        %1426 = vmatprep.subr.mxu0 0.0
        %1427 = vmatpush1.msra.mxu0 %v1332
        %1428 = vmatprep.subr.mxu0 0.0
        %1429 = vmatpush1.msra.mxu0 0.0
        %1430 = vmatprep.subr.mxu0 0.0
        %1431 = vmatpush1.msra.mxu0 0.0
        %1432 = vmatprep.subr.mxu0 0.0
        %1433 = vmatpush1.msra.mxu0 0.0
        %1434 = vmatprep.subr.mxu0 0.0
        %1435 = vmatpush1.msra.mxu0 0.0
        %1436 = vmatprep.subr.mxu0 0.0
        %1437 = vmatpush1.msra.mxu0 0.0
        %1438 = vmatprep.subr.mxu0 0.0
        %1439 = vmatpush1.msra.mxu0 0.0
        %1440 = vmatprep.subr.mxu0 0.0
        %1441 = vmatpush1.msra.mxu0 0.0
        %1442 = vmatprep.subr.mxu0 0.0
        %1443 = vmatpush1.msra.mxu0 0.0
        %1444 = vmatprep.subr.mxu0 0.0
        %1445 = vmatpush1.msra.mxu0 0.0
        %1446 = vmatprep.subr.mxu0 0.0
        %1447 = vmatpush1.msra.mxu0 0.0
        %1448 = vmatprep.subr.mxu0 0.0
        %1449 = vmatpush1.msra.mxu0 0.0
        %1450 = vmatprep.subr.mxu0 0.0
        %1451 = vmatpush1.msra.mxu0 0.0
        %1452 = vmatprep.subr.mxu0 0.0
        %1453 = vmatpush1.msra.mxu0 0.0
        %1454 = vmatprep.subr.mxu0 0.0
        %1455 = vmatpush1.msra.mxu0 0.0
        %1456 = vmatprep.subr.mxu0 0.0
        %1457 = vmatpush1.msra.mxu0 0.0
        %1458 = vmatprep.subr.mxu0 0.0
        %1459 = vmatpush1.msra.mxu0 0.0
        %1460 = vmatprep.subr.mxu0 0.0
        %1461 = vmatpush1.msra.mxu0 0.0
        %1462 = vmatprep.subr.mxu0 0.0
        %1463 = vmatpush1.msra.mxu0 0.0
        %1464 = vmatprep.subr.mxu0 0.0
        %1465 = vmatpush1.msra.mxu0 0.0
        %1466 = vmatprep.subr.mxu0 0.0
        %1467 = vmatpush1.msra.mxu0 0.0
        %1468 = vmatprep.subr.mxu0 0.0
        %1469 = vmatpush1.msra.mxu0 0.0
        %1470 = vmatprep.subr.mxu0 0.0
        %1471 = vmatpush1.msra.mxu0 0.0
        %1472 = vmatprep.subr.mxu0 0.0
        %1473 = vmatpush1.msra.mxu0 0.0
        %1474 = vmatprep.subr.mxu0 0.0
        %1475 = vmatpush1.msra.mxu0 0.0
        %1476 = vmatprep.subr.mxu0 0.0
        %1477 = vmatpush1.msra.mxu0 0.0
        %1478 = vmatprep.subr.mxu0 0.0
        %1479 = vmatpush1.msra.mxu0 0.0
        %1480 = vmatprep.subr.mxu0 0.0
        %1481 = vmatpush1.msra.mxu0 0.0
        %1482 = vmatprep.subr.mxu0 0.0
        %1483 = vmatpush1.msra.mxu0 0.0
        %1484 = vmatprep.subr.mxu0 0.0
        %1485 = vmatpush1.msra.mxu0 0.0
        %1486 = vmatprep.subr.mxu0 0.0
        %1487 = vmatpush1.msra.mxu0 0.0
        %1488 = vmatprep.subr.mxu0 0.0
        %1489 = vmatpush1.msra.mxu0 0.0
        %1490 = vmatprep.mubr.f32.mxu0 0.0
        %1491 = vmatmul.mubr.f32.gmra.mrb[0].mxu0 %v1424
        %v1492 = vpop.f32.mrb[0].mxu0
        %v1493 = vadd.f32 0.0, %v1492
        %v1494 = vpop.f32.mrb[0].mxu0
        %1495 = vdwg.mxu0
        %v1496 = vadd.f32 %v1418, %v1493
        %v1497 = vrcp.pop %v1422
        %v1498 = vmul.f32 %v1496, %v1497
        %v1499 = vadd.f32 %v1498, %v1246
        %v1500 = vsel %vm961, %v1499, 0.0
        %1501 = vadd.xlane.f32.xlu0 %v1500
        %v1502 = vpop.xlane.xlu0 %1501
        %v1503 = vmul.f32 %v1502, %v1208
        %v1504 = vsub.f32 %v1499, %v1503
        %v1505 = vmul.f32 %v1504, %v1504
        %v1506 = vsel %vm961, %v1505, 0.0
        %1507 = vadd.xlane.f32.xlu0 %v1506
        %v1508 = vpop.xlane.xlu0 %1507
        %v1509 = vmul.f32 %v1508, %v1208
        %v1510 = vadd.f32 %v1509, 1e-05
        %v1511 = vrsqrt.pop %v1510
        %v1512 = vmul.f32 %v1504, %v1511
        %v1513 = vadd.f32 %v1512, %v1246
        %v1514 = vsel %vm961, %v1513, 0.0
        %1515 = vadd.xlane.f32.xlu0 %v1514
        %v1516 = vpop.xlane.xlu0 %1515
        %v1517 = vmul.f32 %v1516, %v1208
        %v1518 = vsub.f32 %v1513, %v1517
        %v1519 = vmul.f32 %v1518, %v1518
        %v1520 = vsel %vm961, %v1519, 0.0
        %1521 = vadd.xlane.f32.xlu0 %v1520
        %v1522 = vpop.xlane.xlu0 %1521
        %v1523 = vmul.f32 %v1522, %v1208
        %v1524 = vadd.f32 %v1523, 1e-05
        %v1525 = vrsqrt.pop %v1524
        %v1526 = vmul.f32 %v1518, %v1525
        %v1527 = vmul.f32 %v1526, %v1237
        %v1528 = vadd.f32 %v1527, %v1244
        %v1529 = vld [vmem:[#allocation24] sm:$0xff]
        %v1530 = vld [vmem:[#allocation24 + $0x8] sm:$0xff]
        %v1531 = vld [vmem:[#allocation24 + $0x10] sm:$0xff]
        %v1532 = vld [vmem:[#allocation24 + $0x18] sm:$0xff]
        %v1533 = vld [vmem:[#allocation26] sm:$0x1]
        %v1535 = vlaneseq
        %v1536 = vshrl.u32 %v1535, 7
        %v1537 = vsub.s32 0, %v1536
        %v1538 = vrot.slane %v1533, %v1537
        %v1541 = vsel %vm961, %v1528, 0
        %1543 = vmatprep.subr.mxu0 0.0
        %1544 = vmatpush1.msra.mxu0 %v1529
        %1545 = vmatprep.subr.mxu0 0.0
        %1546 = vmatpush1.msra.mxu0 %v1530
        %1547 = vmatprep.subr.mxu0 0.0
        %1548 = vmatpush1.msra.mxu0 %v1531
        %1549 = vmatprep.subr.mxu0 0.0
        %1550 = vmatpush1.msra.mxu0 %v1532
        %1551 = vmatprep.subr.mxu0 0.0
        %1552 = vmatpush1.msra.mxu0 0.0
        %1553 = vmatprep.subr.mxu0 0.0
        %1554 = vmatpush1.msra.mxu0 0.0
        %1555 = vmatprep.subr.mxu0 0.0
        %1556 = vmatpush1.msra.mxu0 0.0
        %1557 = vmatprep.subr.mxu0 0.0
        %1558 = vmatpush1.msra.mxu0 0.0
        %1559 = vmatprep.subr.mxu0 0.0
        %1560 = vmatpush1.msra.mxu0 0.0
        %1561 = vmatprep.subr.mxu0 0.0
        %1562 = vmatpush1.msra.mxu0 0.0
        %1563 = vmatprep.subr.mxu0 0.0
        %1564 = vmatpush1.msra.mxu0 0.0
        %1565 = vmatprep.subr.mxu0 0.0
        %1566 = vmatpush1.msra.mxu0 0.0
        %1567 = vmatprep.subr.mxu0 0.0
        %1568 = vmatpush1.msra.mxu0 0.0
        %1569 = vmatprep.subr.mxu0 0.0
        %1570 = vmatpush1.msra.mxu0 0.0
        %1571 = vmatprep.subr.mxu0 0.0
        %1572 = vmatpush1.msra.mxu0 0.0
        %1573 = vmatprep.subr.mxu0 0.0
        %1574 = vmatpush1.msra.mxu0 0.0
        %1575 = vmatprep.subr.mxu0 0.0
        %1576 = vmatpush1.msra.mxu0 0.0
        %1577 = vmatprep.subr.mxu0 0.0
        %1578 = vmatpush1.msra.mxu0 0.0
        %1579 = vmatprep.subr.mxu0 0.0
        %1580 = vmatpush1.msra.mxu0 0.0
        %1581 = vmatprep.subr.mxu0 0.0
        %1582 = vmatpush1.msra.mxu0 0.0
        %1583 = vmatprep.subr.mxu0 0.0
        %1584 = vmatpush1.msra.mxu0 0.0
        %1585 = vmatprep.subr.mxu0 0.0
        %1586 = vmatpush1.msra.mxu0 0.0
        %1587 = vmatprep.subr.mxu0 0.0
        %1588 = vmatpush1.msra.mxu0 0.0
        %1589 = vmatprep.subr.mxu0 0.0
        %1590 = vmatpush1.msra.mxu0 0.0
        %1591 = vmatprep.subr.mxu0 0.0
        %1592 = vmatpush1.msra.mxu0 0.0
        %1593 = vmatprep.subr.mxu0 0.0
        %1594 = vmatpush1.msra.mxu0 0.0
        %1595 = vmatprep.subr.mxu0 0.0
        %1596 = vmatpush1.msra.mxu0 0.0
        %1597 = vmatprep.subr.mxu0 0.0
        %1598 = vmatpush1.msra.mxu0 0.0
        %1599 = vmatprep.subr.mxu0 0.0
        %1600 = vmatpush1.msra.mxu0 0.0
        %1601 = vmatprep.subr.mxu0 0.0
        %1602 = vmatpush1.msra.mxu0 0.0
        %1603 = vmatprep.subr.mxu0 0.0
        %1604 = vmatpush1.msra.mxu0 0.0
        %1605 = vmatprep.subr.mxu0 0.0
        %1606 = vmatpush1.msra.mxu0 0.0
        %1607 = vmatprep.mubr.f32.mxu0 0.0
        %1608 = vmatmul.mubr.f32.gmra.mrb[0].mxu0 %v1541
        %v1609 = vpop.f32.mrb[0].mxu0
        %v1610 = vadd.f32 %v1538, %v1609
        %v1611 = vpop.f32.mrb[0].mxu0
        %1612 = vdwg.mxu0
        %v1613 = vmul.f32 %v1610, 0.5
        %v1614 = vmul.f32 %v1610, %v1610
        %v1615 = vmul.f32 %v1614, %v1610
        %v1616 = vmul.f32 %v1615, 0.044715
        %v1617 = vadd.f32 %v1610, %v1616
        %v1618 = vmul.f32 %v1617, 0.7978846
        %v1619 = vtanh.pop %v1618
        %v1620 = vadd.f32 %v1619, 1.0
        %v1621 = vmul.f32 %v1613, %v1620
        %v1622 = vadd.f32 %v1621, %v1528
        %v1623 = vsel %vm961, %v1622, 0.0
        %1624 = vadd.xlane.f32.xlu0 %v1623
        %v1625 = vpop.xlane.xlu0 %1624
        %v1626 = vmul.f32 %v1625, %v1208
        %v1627 = vsub.f32 %v1622, %v1626
        %v1628 = vmul.f32 %v1627, %v1627
        %v1629 = vsel %vm961, %v1628, 0.0
        %1630 = vadd.xlane.f32.xlu0 %v1629
        %v1631 = vpop.xlane.xlu0 %1630
        %v1632 = vmul.f32 %v1631, %v1208
        %v1633 = vadd.f32 %v1632, 1e-05
        %v1634 = vrsqrt.pop %v1633
        %v1635 = vmul.f32 %v1627, %v1634
        %v1636 = vmul.f32 %v1635, %v1237
        %v1637 = vadd.f32 %v1636, %v1244
        %s1638 = scalar_lea.vmem [#allocation24], 32
        %v1639 = vld [vmem:[%s1638] sm:$0xff]
        %v1640 = vld [vmem:[%s1638 + $0x8] sm:$0xff]
        %v1641 = vld [vmem:[%s1638 + $0x10] sm:$0xff]
        %v1642 = vld [vmem:[%s1638 + $0x18] sm:$0xff]
        %s1643 = scalar_lea.vmem [#allocation26], 1
        %v1644 = vld [vmem:[%s1643] sm:$0x1]
        %v1646 = vlaneseq
        %v1647 = vshrl.u32 %v1646, 7
        %v1648 = vsub.s32 0, %v1647
        %v1649 = vrot.slane %v1644, %v1648
        %v1652 = vsel %vm961, %v1637, 0
        %1654 = vmatprep.subr.mxu0 0.0
        %1655 = vmatpush1.msra.mxu0 %v1639
        %1656 = vmatprep.subr.mxu0 0.0
        %1657 = vmatpush1.msra.mxu0 %v1640
        %1658 = vmatprep.subr.mxu0 0.0
        %1659 = vmatpush1.msra.mxu0 %v1641
        %1660 = vmatprep.subr.mxu0 0.0
        %1661 = vmatpush1.msra.mxu0 %v1642
        %1662 = vmatprep.subr.mxu0 0.0
        %1663 = vmatpush1.msra.mxu0 0.0
        %1664 = vmatprep.subr.mxu0 0.0
        %1665 = vmatpush1.msra.mxu0 0.0
        %1666 = vmatprep.subr.mxu0 0.0
        %1667 = vmatpush1.msra.mxu0 0.0
        %1668 = vmatprep.subr.mxu0 0.0
        %1669 = vmatpush1.msra.mxu0 0.0
        %1670 = vmatprep.subr.mxu0 0.0
        %1671 = vmatpush1.msra.mxu0 0.0
        %1672 = vmatprep.subr.mxu0 0.0
        %1673 = vmatpush1.msra.mxu0 0.0
        %1674 = vmatprep.subr.mxu0 0.0
        %1675 = vmatpush1.msra.mxu0 0.0
        %1676 = vmatprep.subr.mxu0 0.0
        %1677 = vmatpush1.msra.mxu0 0.0
        %1678 = vmatprep.subr.mxu0 0.0
        %1679 = vmatpush1.msra.mxu0 0.0
        %1680 = vmatprep.subr.mxu0 0.0
        %1681 = vmatpush1.msra.mxu0 0.0
        %1682 = vmatprep.subr.mxu0 0.0
        %1683 = vmatpush1.msra.mxu0 0.0
        %1684 = vmatprep.subr.mxu0 0.0
        %1685 = vmatpush1.msra.mxu0 0.0
        %1686 = vmatprep.subr.mxu0 0.0
        %1687 = vmatpush1.msra.mxu0 0.0
        %1688 = vmatprep.subr.mxu0 0.0
        %1689 = vmatpush1.msra.mxu0 0.0
        %1690 = vmatprep.subr.mxu0 0.0
        %1691 = vmatpush1.msra.mxu0 0.0
        %1692 = vmatprep.subr.mxu0 0.0
        %1693 = vmatpush1.msra.mxu0 0.0
        %1694 = vmatprep.subr.mxu0 0.0
        %1695 = vmatpush1.msra.mxu0 0.0
        %1696 = vmatprep.subr.mxu0 0.0
        %1697 = vmatpush1.msra.mxu0 0.0
        %1698 = vmatprep.subr.mxu0 0.0
        %1699 = vmatpush1.msra.mxu0 0.0
        %1700 = vmatprep.subr.mxu0 0.0
        %1701 = vmatpush1.msra.mxu0 0.0
        %1702 = vmatprep.subr.mxu0 0.0
        %1703 = vmatpush1.msra.mxu0 0.0
        %1704 = vmatprep.subr.mxu0 0.0
        %1705 = vmatpush1.msra.mxu0 0.0
        %1706 = vmatprep.subr.mxu0 0.0
        %1707 = vmatpush1.msra.mxu0 0.0
        %1708 = vmatprep.subr.mxu0 0.0
        %1709 = vmatpush1.msra.mxu0 0.0
        %1710 = vmatprep.subr.mxu0 0.0
        %1711 = vmatpush1.msra.mxu0 0.0
        %1712 = vmatprep.subr.mxu0 0.0
        %1713 = vmatpush1.msra.mxu0 0.0
        %1714 = vmatprep.subr.mxu0 0.0
        %1715 = vmatpush1.msra.mxu0 0.0
        %1716 = vmatprep.subr.mxu0 0.0
        %1717 = vmatpush1.msra.mxu0 0.0
        %1718 = vmatprep.mubr.f32.mxu0 0.0
        %1719 = vmatmul.mubr.f32.gmra.mrb[0].mxu0 %v1652
        %v1720 = vpop.f32.mrb[0].mxu0
        %v1721 = vadd.f32 %v1649, %v1720
        %v1722 = vpop.f32.mrb[0].mxu0
        %1723 = vdwg.mxu0
        %v1724 = vmul.f32 %v1721, 0.5
        %v1725 = vmul.f32 %v1721, %v1721
        %v1726 = vmul.f32 %v1725, %v1721
        %v1727 = vmul.f32 %v1726, 0.044715
        %v1728 = vadd.f32 %v1721, %v1727
        %v1729 = vmul.f32 %v1728, 0.7978846
        %v1730 = vtanh.pop %v1729
        %v1731 = vadd.f32 %v1730, 1.0
        %v1732 = vmul.f32 %v1724, %v1731
        %v1733 = vadd.f32 %v1732, %v1637
        %v1734 = vsel %vm961, %v1733, 0.0
        %1735 = vadd.xlane.f32.xlu0 %v1734
        %v1736 = vpop.xlane.xlu0 %1735
        %v1737 = vmul.f32 %v1736, %v1208
        %v1738 = vsub.f32 %v1733, %v1737
        %v1739 = vmul.f32 %v1738, %v1738
        %v1740 = vsel %vm961, %v1739, 0.0
        %1741 = vadd.xlane.f32.xlu0 %v1740
        %v1742 = vpop.xlane.xlu0 %1741
        %v1743 = vmul.f32 %v1742, %v1208
        %v1744 = vadd.f32 %v1743, 1e-05
        %v1745 = vrsqrt.pop %v1744
        %v1746 = vmul.f32 %v1738, %v1745
        %v1747 = vmul.f32 %v1746, %v1237
        %v1748 = vadd.f32 %v1747, %v1244
        %v1749 = vadd.f32 %v1748, %v1637
        %v1750 = vsel %vm961, %v1749, 0.0
        %1751 = vadd.xlane.f32.xlu0 %v1750
        %v1752 = vpop.xlane.xlu0 %1751
        %v1753 = vmul.f32 %v1752, %v1208
        %v1754 = vsub.f32 %v1749, %v1753
        %v1755 = vmul.f32 %v1754, %v1754
        %v1756 = vsel %vm961, %v1755, 0.0
        %1757 = vadd.xlane.f32.xlu0 %v1756
        %v1758 = vpop.xlane.xlu0 %1757
        %v1759 = vmul.f32 %v1758, %v1208
        %v1760 = vadd.f32 %v1759, 1e-05
        %v1761 = vrsqrt.pop %v1760
        %v1762 = vmul.f32 %v1754, %v1761
        %v1763 = vmul.f32 %v1762, %v1237
        %v1764 = vadd.f32 %v1763, %v1244
        %1765 = vst.msk [vmem:[%s759] sm:$0xff] %vm961, %v1764
        %s1766 = sand.u32 %s395, 1
        %s1767 = scalar_lea.sflag [#allocation8], %s1766
        %s1768 = sand.u32 %s395, 1
        %s1769 = smul.addr %s1768, 8
        %s1770 = scalar_lea.vmem [#allocation30], %s1769
        // Predicated region
        $region145: #{tpu_custom_call.1} parent=79 // pred_check
          %p1771 = pneg %p405
        $region146: #{tpu_custom_call.1} parent=79 // pred_check_branch
          %1773 = sbr.rel (%p1771) target = $region148
        $region147: #{tpu_custom_call.1} parent=79 // pred_region
          %s1775 = ssub.s32 128, 128
          %1776 = vsyncadd %s1767, %s1775
          %s1777 = sadd.s32 %s46, %s45
          %s1778 = smul.addr %s1777, 128
          %s1779 = scalar_lea.hbm %s15, %s1778
          %s1781 = sshll.u32 %s1770, 4
          %s1782 = int_to_ptr.vmem [resolvable:$true] %s1781
          %1784 = dma.vmem_to_hbm [thread:$0]  %s1782, 128, %s1779, %s1767
        $region148: #{tpu_custom_call.1} parent=79 // pred_fallthru
          _
      $region80: #{tpu_custom_call.1} parent=5 // pred_fallthru
        _
      %p1785 = scmp.le.s32.totalorder 2, %s36
      // Predicated region
      $region149: #{tpu_custom_call.1} parent=5 // pred_check
        %p1786 = pneg %p1785
      $region150: #{tpu_custom_call.1} parent=5 // pred_check_branch
        %1788 = sbr.rel (%p1786) target = $region152
      $region151: #{tpu_custom_call.1} parent=5 // pred_region
        %s1789 = ssub.s32 %s36, 2
        // Predicated region
        $region153: #{tpu_custom_call.1} parent=151 // pred_check
          %p1790 = pneg %p411
        $region154: #{tpu_custom_call.1} parent=151 // pred_check_branch
          %1792 = sbr.rel (%p1790) target = $region156
        $region155: #{tpu_custom_call.1} parent=151 // pred_region
          %s1793 = sand.u32 %s396, 1
          %s1794 = scalar_lea.sflag [#allocation8], %s1793
          %s1795 = sand.u32 %s396, 1
          %s1796 = smul.addr %s1795, 8
          %s1797 = scalar_lea.vmem [#allocation30], %s1796
          %1798 = dma.done %s1794, 128
        $region156: #{tpu_custom_call.1} parent=151 // pred_fallthru
          _
      $region152: #{tpu_custom_call.1} parent=5 // pred_fallthru
        _
    $region6: #{tpu_custom_call.1} parent=1 // loop_footer
      %s40 = sadd.s32 1, %s36
    $region7: #{tpu_custom_call.1} parent=1 // loop_footer_branch
      %35 = sbr.rel target = $region3
    $region8: #{tpu_custom_call.1} parent=1 // loop_exit
      _
    %1799 = vsyncpa [#allocation7], 1
    %s1800 = scalar_lea.sflag [#allocation7], 1
    %1801 = vsyncpa %s1800, 1
    %1802 = vsyncpa [#allocation10], 1
    %s1803 = scalar_lea.sflag [#allocation10], 1
    %1804 = vsyncpa %s1803, 1
    %1805 = vsyncpa [#allocation13], 1
    %1806 = vsyncpa [#allocation16], 1
    %1807 = vsyncpa [#allocation19], 1
    %1808 = vsyncpa [#allocation22], 1
    %1809 = vsyncpa [#allocation25], 1
    %1810 = vsyncpa [#allocation28], 1
    %1811 = vsyncpa [#allocation8], 1
    %s1812 = scalar_lea.sflag [#allocation8], 1
    %1813 = vsyncpa %s1812, 1

// kernel: tpu_custom_call.1
$region0: #{tpu_custom_call.1}
  #allocation0 [shape = 'u32[]', space=smem, size = 0x4, offset = 0x4, fixed_abs, tag = 'smem constant byte address 0x4 - core index']
  #allocation1 [shape = 'u32[144,128]{1,0:T(1,128)}', space=vmem, size = 0x12000, scoped, tag = 'internal scratch']
  #allocation2 [shape = 'f32[8,32]{1,0:T(8,128)}', space=vmem, size = 0x1000, scoped, tag = 'scratch operand']
  #allocation3 [shape = 'f32[8,32]{1,0:T(8,128)}', space=vmem, size = 0x1000, scoped, tag = 'scratch operand']
  #allocation4 [shape = 'f32[8,32]{1,0:T(8,128)}', space=vmem, size = 0x1000, scoped, tag = 'scratch operand']
  #allocation5 [shape = 'f32[8,32]{1,0:T(8,128)}', space=vmem, size = 0x1000, scoped, tag = 'scratch operand']
  %s0 = inlined_call_operand.hbm [shape: f32[2,8,32], index: 0, kind: input, shape index: {}]
  %s1 = inlined_call_operand.hbm [shape: f32[2,8,32], index: 1, kind: input, shape index: {}]
  %s2 = inlined_call_operand.hbm [shape: f32[2,8,32], index: 2, kind: input, shape index: {}]
  %s3 = inlined_call_operand.hbm [shape: f32[32,32], index: 3, kind: input, shape index: {}]
  %s4 = inlined_call_operand.hbm [shape: f32[1,32], index: 4, kind: input, shape index: {}]
  %s5 = inlined_call_operand.hbm [shape: f32[32,64], index: 5, kind: input, shape index: {}]
  %s6 = inlined_call_operand.hbm [shape: f32[1,64], index: 6, kind: input, shape index: {}]
  %s7 = inlined_call_operand.hbm [shape: f32[32,32], index: 7, kind: input, shape index: {}]
  %s8 = inlined_call_operand.hbm [shape: f32[1,32], index: 8, kind: input, shape index: {}]
  %s9 = inlined_call_operand.vmem [shape: f32[32,64], index: 9, kind: input, shape index: {}]
  %s10 = inlined_call_operand.vmem [shape: f32[1,64], index: 10, kind: input, shape index: {}]
  %s11 = inlined_call_operand.hbm [shape: f32[2,32,32], index: 11, kind: input, shape index: {}]
  %s12 = inlined_call_operand.vmem [shape: f32[2,1,32], index: 12, kind: input, shape index: {}]
  %s13 = inlined_call_operand.vmem [shape: f32[1,32], index: 13, kind: input, shape index: {}]
  %s14 = inlined_call_operand.vmem [shape: f32[1,32], index: 14, kind: input, shape index: {}]
  %s15 = inlined_call_operand.hbm [shape: f32[2,8,32], index: 15, kind: output, shape index: {}]
  %s16 = sld [smem:[#allocation0]]
  $region137: #{tpu_custom_call.1} parent=0
    _
  %s18 = ssub.s32 1, %s16
  %s19 = scalar_select 0, %s18, %s16
  $region1: #{tpu_custom_call.1} parent=0
    #allocation6 [shape = 'u8[8192]{0}', space=vmem, size = 0x2000, scoped, tag = 'input window, operand 0']
    #allocation7 [shape = 's32[2]{0}', space=sflag, size = 0x8, scoped, tag = 'scoped memory for tpu_custom_call.1']
    #allocation8 [shape = 's32[2]{0}', space=sflag, size = 0x8, scoped, tag = 'scoped memory for tpu_custom_call.1']
    #allocation9 [shape = 'u8[8192]{0}', space=vmem, size = 0x2000, scoped, tag = 'input window, operand 1']
    #allocation10 [shape = 's32[2]{0}', space=sflag, size = 0x8, scoped, tag = 'scoped memory for tpu_custom_call.1']
    #allocation11 [shape = 'u8[8192]{0}', space=vmem, size = 0x2000, scoped, tag = 'input window, operand 2']
    #allocation12 [shape = 'u8[16384]{0}', space=vmem, size = 0x4000, scoped, tag = 'input window, operand 3, single buffered']
    #allocation13 [shape = 's32[1]{0}', space=sflag, size = 0x4, scoped, tag = 'scoped memory for tpu_custom_call.1']
    #allocation14 [shape = 'u8[512]{0}', space=vmem, size = 0x400, scoped, tag = 'input window, operand 4, single buffered']
    #allocation15 [shape = 'u8[16384]{0}', space=vmem, size = 0x4000, scoped, tag = 'input window, operand 5, single buffered']
    #allocation16 [shape = 's32[1]{0}', space=sflag, size = 0x4, scoped, tag = 'scoped memory for tpu_custom_call.1']
    #allocation17 [shape = 'u8[512]{0}', space=vmem, size = 0x400, scoped, tag = 'input window, operand 6, single buffered']
    #allocation18 [shape = 'u8[16384]{0}', space=vmem, size = 0x4000, scoped, tag = 'input window, operand 7, single buffered']
    #allocation19 [shape = 's32[1]{0}', space=sflag, size = 0x4, scoped, tag = 'scoped memory for tpu_custom_call.1']
    #allocation20 [shape = 'u8[512]{0}', space=vmem, size = 0x400, scoped, tag = 'input window, operand 8, single buffered']
    #allocation21 [shape = 'u8[32768]{0}', space=vmem, size = 0x8000, scoped, tag = 'input window, operand 11, single buffered']
    #allocation22 [shape = 's32[1]{0}', space=sflag, size = 0x4, scoped, tag = 'scoped memory for tpu_custom_call.1']
    #allocation23 [shape = 'u8[8192]{0}', space=vmem, size = 0x2000, scoped, tag = 'output window, operand 0']
    %20 = vsyncpa [#allocation7], 0
    %s21 = scalar_lea.sflag [#allocation7], 1
    %22 = vsyncpa %s21, 0
    %23 = vsyncpa [#allocation10], 0
    %s24 = scalar_lea.sflag [#allocation10], 1
    %25 = vsyncpa %s24, 0
    %26 = vsyncpa [#allocation13], 0
    %27 = vsyncpa [#allocation16], 0
    %28 = vsyncpa [#allocation19], 0
    %29 = vsyncpa [#allocation22], 0
    %30 = vsyncpa [#allocation8], 0
    %s31 = scalar_lea.sflag [#allocation8], 1
    %32 = vsyncpa %s31, 0
    loop: start=0, step=1, limit=4
    $region2: #{tpu_custom_call.1} parent=1 // loop_pre_header
      _
    $region3: #{tpu_custom_call.1} parent=1 // loop_header
      %s34 = sphi 0, %s38
      %p35 = scmp.ge.s32.totalorder %s34, 4
      %s41 = sphi 0, %s53
      %s42 = sphi 0, %s49
      %s43 = sphi 0, %s41
      %s44 = sphi 0, %s42
      %s45 = sphi 0, %s43
      %s46 = sphi 0, %s44
      %s58 = sphi 0, %s60
      %s61 = sphi 0, %s58
      %s62 = sphi 0, %s61
      %s78 = sphi 0, %s62
      %s84 = sphi 0, %s86
      %s87 = sphi 0, %s84
      %s88 = sphi 0, %s87
      %s104 = sphi 0, %s88
      %s110 = sphi 0, %s112
      %s113 = sphi 0, %s110
      %s114 = sphi 0, %s113
      %s130 = sphi 0, %s114
      %s134 = sphi 0, %s134
      %s136 = sphi 0, %s134
      %s137 = sphi 0, %s136
      %s151 = sphi 0, %s137
      %s155 = sphi 0, %s155
      %s157 = sphi 0, %s155
      %s158 = sphi 0, %s157
      %s172 = sphi 0, %s158
      %s176 = sphi 0, %s176
      %s178 = sphi 0, %s176
      %s179 = sphi 0, %s178
      %s193 = sphi 0, %s179
      %s197 = sphi 0, %s197
      %s199 = sphi 0, %s197
      %s200 = sphi 0, %s199
      %s214 = sphi 0, %s200
      %s218 = sphi 0, %s218
      %s220 = sphi 0, %s218
      %s221 = sphi 0, %s220
      %s235 = sphi 0, %s221
      %s239 = sphi 0, %s239
      %s241 = sphi 0, %s239
      %s242 = sphi 0, %s241
      %s256 = sphi 0, %s242
      %s260 = sphi 0, %s260
      %s262 = sphi 0, %s260
      %s263 = sphi 0, %s262
      %s277 = sphi 0, %s263
      %s281 = sphi 0, %s281
      %s283 = sphi 0, %s281
      %s284 = sphi 0, %s283
      %s298 = sphi 0, %s284
      %s302 = sphi 0, %s302
      %s304 = sphi 0, %s302
      %s305 = sphi 0, %s304
      %s319 = sphi 0, %s305
      %s323 = sphi 0, %s323
      %s325 = sphi 0, %s323
      %s326 = sphi 0, %s325
      %s340 = sphi 0, %s326
      %s344 = sphi 0, %s344
      %s346 = sphi 0, %s344
      %s347 = sphi 0, %s346
      %s361 = sphi 0, %s347
      %s365 = sphi 0, %s365
      %s367 = sphi 0, %s365
      %s368 = sphi 0, %s367
      %s382 = sphi 0, %s368
      %s390 = sphi 0, %s392
      %s393 = sphi 0, %s390
      %s394 = sphi 0, %s393
      %s410 = sphi 0, %s394
    $region4: #{tpu_custom_call.1} parent=1 // loop_header_branch
      %37 = sbr.rel (%p35) target = $region8
    $region5: #{tpu_custom_call.1} parent=1 // loop_body
      %s39 = ssub.s32 %s34, 1
      %s40 = ssub.s32 %s34, 2
      %s47 = sadd.s32 1, %s42
      %p48 = scmp.ge.s32.totalorder %s47, 1
      %s49 = scalar_select %p48, 0, %s47
      %s50 = sadd.s32 1, %s41
      %s51 = scalar_select %p48, %s50, %s41
      %p52 = scmp.ge.s32.totalorder %s51, 2
      %s53 = scalar_select %p52, 0, %s51
      %s54 = ssub.s32 %s41, %s53
      %s55 = ssub.s32 %s42, %s49
      %s56 = sor.u32 %s54, %s55
      %p57 = scmp.eq.s32.totalorder %s56, 0
      %s59 = sadd.s32 %s58, 1
      %s60 = scalar_select %p57, %s58, %s59
      %p63 = pneg %p57
      %p64 = scmp.eq.s32.totalorder %s34, 1
      %p65 = por %p63, %p64
      %p66 = scmp.ne.s32.totalorder %s58, %s61
      %p67 = scmp.eq.s32.totalorder %s34, 0
      %p68 = por %p66, %p67
      %p69 = scmp.ne.s32.totalorder %s58, %s61
      %p70 = scmp.eq.s32.totalorder %s39, 1
      %p71 = por %p69, %p70
      %p72 = scmp.ne.s32.totalorder %s61, %s62
      %p73 = scmp.eq.s32.totalorder %s39, 0
      %p74 = por %p72, %p73
      %p75 = scmp.ne.s32.totalorder %s61, %s62
      %p76 = scmp.eq.s32.totalorder %s40, 1
      %p77 = por %p75, %p76
      %p79 = scmp.ne.s32.totalorder %s62, %s78
      %p80 = scmp.eq.s32.totalorder %s40, 0
      %p81 = por %p79, %p80
      %s82 = ssub.s32 %s41, %s53
      %p83 = scmp.eq.s32.totalorder %s82, 0
      %s85 = sadd.s32 %s84, 1
      %s86 = scalar_select %p83, %s84, %s85
      %p89 = pneg %p83
      %p90 = scmp.eq.s32.totalorder %s34, 1
      %p91 = por %p89, %p90
      %p92 = scmp.ne.s32.totalorder %s84, %s87
      %p93 = scmp.eq.s32.totalorder %s34, 0
      %p94 = por %p92, %p93
      %p95 = scmp.ne.s32.totalorder %s84, %s87
      %p96 = scmp.eq.s32.totalorder %s39, 1
      %p97 = por %p95, %p96
      %p98 = scmp.ne.s32.totalorder %s87, %s88
      %p99 = scmp.eq.s32.totalorder %s39, 0
      %p100 = por %p98, %p99
      %p101 = scmp.ne.s32.totalorder %s87, %s88
      %p102 = scmp.eq.s32.totalorder %s40, 1
      %p103 = por %p101, %p102
      %p105 = scmp.ne.s32.totalorder %s88, %s104
      %p106 = scmp.eq.s32.totalorder %s40, 0
      %p107 = por %p105, %p106
      %s108 = ssub.s32 %s41, %s53
      %p109 = scmp.eq.s32.totalorder %s108, 0
      %s111 = sadd.s32 %s110, 1
      %s112 = scalar_select %p109, %s110, %s111
      %p115 = pneg %p109
      %p116 = scmp.eq.s32.totalorder %s34, 1
      %p117 = por %p115, %p116
      %p118 = scmp.ne.s32.totalorder %s110, %s113
      %p119 = scmp.eq.s32.totalorder %s34, 0
      %p120 = por %p118, %p119
      %p121 = scmp.ne.s32.totalorder %s110, %s113
      %p122 = scmp.eq.s32.totalorder %s39, 1
      %p123 = por %p121, %p122
      %p124 = scmp.ne.s32.totalorder %s113, %s114
      %p125 = scmp.eq.s32.totalorder %s39, 0
      %p126 = por %p124, %p125
      %p127 = scmp.ne.s32.totalorder %s113, %s114
      %p128 = scmp.eq.s32.totalorder %s40, 1
      %p129 = por %p127, %p128
      %p131 = scmp.ne.s32.totalorder %s114, %s130
      %p132 = scmp.eq.s32.totalorder %s40, 0
      %p133 = por %p131, %p132
      %s135 = sadd.s32 %s134, 1
      %p138 = scmp.eq.s32.totalorder %s34, 1
      %p139 = scmp.ne.s32.totalorder %s134, %s136
      %p140 = scmp.eq.s32.totalorder %s34, 0
      %p141 = por %p139, %p140
      %p142 = scmp.ne.s32.totalorder %s134, %s136
      %p143 = scmp.eq.s32.totalorder %s39, 1
      %p144 = por %p142, %p143
      %p145 = scmp.ne.s32.totalorder %s136, %s137
      %p146 = scmp.eq.s32.totalorder %s39, 0
      %p147 = por %p145, %p146
      %p148 = scmp.ne.s32.totalorder %s136, %s137
      %p149 = scmp.eq.s32.totalorder %s40, 1
      %p150 = por %p148, %p149
      %p152 = scmp.ne.s32.totalorder %s137, %s151
      %p153 = scmp.eq.s32.totalorder %s40, 0
      %p154 = por %p152, %p153
      %s156 = sadd.s32 %s155, 1
      %p159 = scmp.eq.s32.totalorder %s34, 1
      %p160 = scmp.ne.s32.totalorder %s155, %s157
      %p161 = scmp.eq.s32.totalorder %s34, 0
      %p162 = por %p160, %p161
      %p163 = scmp.ne.s32.totalorder %s155, %s157
      %p164 = scmp.eq.s32.totalorder %s39, 1
      %p165 = por %p163, %p164
      %p166 = scmp.ne.s32.totalorder %s157, %s158
      %p167 = scmp.eq.s32.totalorder %s39, 0
      %p168 = por %p166, %p167
      %p169 = scmp.ne.s32.totalorder %s157, %s158
      %p170 = scmp.eq.s32.totalorder %s40, 1
      %p171 = por %p169, %p170
      %p173 = scmp.ne.s32.totalorder %s158, %s172
      %p174 = scmp.eq.s32.totalorder %s40, 0
      %p175 = por %p173, %p174
      %s177 = sadd.s32 %s176, 1
      %p180 = scmp.eq.s32.totalorder %s34, 1
      %p181 = scmp.ne.s32.totalorder %s176, %s178
      %p182 = scmp.eq.s32.totalorder %s34, 0
      %p183 = por %p181, %p182
      %p184 = scmp.ne.s32.totalorder %s176, %s178
      %p185 = scmp.eq.s32.totalorder %s39, 1
      %p186 = por %p184, %p185
      %p187 = scmp.ne.s32.totalorder %s178, %s179
      %p188 = scmp.eq.s32.totalorder %s39, 0
      %p189 = por %p187, %p188
      %p190 = scmp.ne.s32.totalorder %s178, %s179
      %p191 = scmp.eq.s32.totalorder %s40, 1
      %p192 = por %p190, %p191
      %p194 = scmp.ne.s32.totalorder %s179, %s193
      %p195 = scmp.eq.s32.totalorder %s40, 0
      %p196 = por %p194, %p195
      %s198 = sadd.s32 %s197, 1
      %p201 = scmp.eq.s32.totalorder %s34, 1
      %p202 = scmp.ne.s32.totalorder %s197, %s199
      %p203 = scmp.eq.s32.totalorder %s34, 0
      %p204 = por %p202, %p203
      %p205 = scmp.ne.s32.totalorder %s197, %s199
      %p206 = scmp.eq.s32.totalorder %s39, 1
      %p207 = por %p205, %p206
      %p208 = scmp.ne.s32.totalorder %s199, %s200
      %p209 = scmp.eq.s32.totalorder %s39, 0
      %p210 = por %p208, %p209
      %p211 = scmp.ne.s32.totalorder %s199, %s200
      %p212 = scmp.eq.s32.totalorder %s40, 1
      %p213 = por %p211, %p212
      %p215 = scmp.ne.s32.totalorder %s200, %s214
      %p216 = scmp.eq.s32.totalorder %s40, 0
      %p217 = por %p215, %p216
      %s219 = sadd.s32 %s218, 1
      %p222 = scmp.eq.s32.totalorder %s34, 1
      %p223 = scmp.ne.s32.totalorder %s218, %s220
      %p224 = scmp.eq.s32.totalorder %s34, 0
      %p225 = por %p223, %p224
      %p226 = scmp.ne.s32.totalorder %s218, %s220
      %p227 = scmp.eq.s32.totalorder %s39, 1
      %p228 = por %p226, %p227
      %p229 = scmp.ne.s32.totalorder %s220, %s221
      %p230 = scmp.eq.s32.totalorder %s39, 0
      %p231 = por %p229, %p230
      %p232 = scmp.ne.s32.totalorder %s220, %s221
      %p233 = scmp.eq.s32.totalorder %s40, 1
      %p234 = por %p232, %p233
      %p236 = scmp.ne.s32.totalorder %s221, %s235
      %p237 = scmp.eq.s32.totalorder %s40, 0
      %p238 = por %p236, %p237
      %s240 = sadd.s32 %s239, 1
      %p243 = scmp.eq.s32.totalorder %s34, 1
      %p244 = scmp.ne.s32.totalorder %s239, %s241
      %p245 = scmp.eq.s32.totalorder %s34, 0
      %p246 = por %p244, %p245
      %p247 = scmp.ne.s32.totalorder %s239, %s241
      %p248 = scmp.eq.s32.totalorder %s39, 1
      %p249 = por %p247, %p248
      %p250 = scmp.ne.s32.totalorder %s241, %s242
      %p251 = scmp.eq.s32.totalorder %s39, 0
      %p252 = por %p250, %p251
      %p253 = scmp.ne.s32.totalorder %s241, %s242
      %p254 = scmp.eq.s32.totalorder %s40, 1
      %p255 = por %p253, %p254
      %p257 = scmp.ne.s32.totalorder %s242, %s256
      %p258 = scmp.eq.s32.totalorder %s40, 0
      %p259 = por %p257, %p258
      %s261 = sadd.s32 %s260, 1
      %p264 = scmp.eq.s32.totalorder %s34, 1
      %p265 = scmp.ne.s32.totalorder %s260, %s262
      %p266 = scmp.eq.s32.totalorder %s34, 0
      %p267 = por %p265, %p266
      %p268 = scmp.ne.s32.totalorder %s260, %s262
      %p269 = scmp.eq.s32.totalorder %s39, 1
      %p270 = por %p268, %p269
      %p271 = scmp.ne.s32.totalorder %s262, %s263
      %p272 = scmp.eq.s32.totalorder %s39, 0
      %p273 = por %p271, %p272
      %p274 = scmp.ne.s32.totalorder %s262, %s263
      %p275 = scmp.eq.s32.totalorder %s40, 1
      %p276 = por %p274, %p275
      %p278 = scmp.ne.s32.totalorder %s263, %s277
      %p279 = scmp.eq.s32.totalorder %s40, 0
      %p280 = por %p278, %p279
      %s282 = sadd.s32 %s281, 1
      %p285 = scmp.eq.s32.totalorder %s34, 1
      %p286 = scmp.ne.s32.totalorder %s281, %s283
      %p287 = scmp.eq.s32.totalorder %s34, 0
      %p288 = por %p286, %p287
      %p289 = scmp.ne.s32.totalorder %s281, %s283
      %p290 = scmp.eq.s32.totalorder %s39, 1
      %p291 = por %p289, %p290
      %p292 = scmp.ne.s32.totalorder %s283, %s284
      %p293 = scmp.eq.s32.totalorder %s39, 0
      %p294 = por %p292, %p293
      %p295 = scmp.ne.s32.totalorder %s283, %s284
      %p296 = scmp.eq.s32.totalorder %s40, 1
      %p297 = por %p295, %p296
      %p299 = scmp.ne.s32.totalorder %s284, %s298
      %p300 = scmp.eq.s32.totalorder %s40, 0
      %p301 = por %p299, %p300
      %s303 = sadd.s32 %s302, 1
      %p306 = scmp.eq.s32.totalorder %s34, 1
      %p307 = scmp.ne.s32.totalorder %s302, %s304
      %p308 = scmp.eq.s32.totalorder %s34, 0
      %p309 = por %p307, %p308
      %p310 = scmp.ne.s32.totalorder %s302, %s304
      %p311 = scmp.eq.s32.totalorder %s39, 1
      %p312 = por %p310, %p311
      %p313 = scmp.ne.s32.totalorder %s304, %s305
      %p314 = scmp.eq.s32.totalorder %s39, 0
      %p315 = por %p313, %p314
      %p316 = scmp.ne.s32.totalorder %s304, %s305
      %p317 = scmp.eq.s32.totalorder %s40, 1
      %p318 = por %p316, %p317
      %p320 = scmp.ne.s32.totalorder %s305, %s319
      %p321 = scmp.eq.s32.totalorder %s40, 0
      %p322 = por %p320, %p321
      %s324 = sadd.s32 %s323, 1
      %p327 = scmp.eq.s32.totalorder %s34, 1
      %p328 = scmp.ne.s32.totalorder %s323, %s325
      %p329 = scmp.eq.s32.totalorder %s34, 0
      %p330 = por %p328, %p329
      %p331 = scmp.ne.s32.totalorder %s323, %s325
      %p332 = scmp.eq.s32.totalorder %s39, 1
      %p333 = por %p331, %p332
      %p334 = scmp.ne.s32.totalorder %s325, %s326
      %p335 = scmp.eq.s32.totalorder %s39, 0
      %p336 = por %p334, %p335
      %p337 = scmp.ne.s32.totalorder %s325, %s326
      %p338 = scmp.eq.s32.totalorder %s40, 1
      %p339 = por %p337, %p338
      %p341 = scmp.ne.s32.totalorder %s326, %s340
      %p342 = scmp.eq.s32.totalorder %s40, 0
      %p343 = por %p341, %p342
      %s345 = sadd.s32 %s344, 1
      %p348 = scmp.eq.s32.totalorder %s34, 1
      %p349 = scmp.ne.s32.totalorder %s344, %s346
      %p350 = scmp.eq.s32.totalorder %s34, 0
      %p351 = por %p349, %p350
      %p352 = scmp.ne.s32.totalorder %s344, %s346
      %p353 = scmp.eq.s32.totalorder %s39, 1
      %p354 = por %p352, %p353
      %p355 = scmp.ne.s32.totalorder %s346, %s347
      %p356 = scmp.eq.s32.totalorder %s39, 0
      %p357 = por %p355, %p356
      %p358 = scmp.ne.s32.totalorder %s346, %s347
      %p359 = scmp.eq.s32.totalorder %s40, 1
      %p360 = por %p358, %p359
      %p362 = scmp.ne.s32.totalorder %s347, %s361
      %p363 = scmp.eq.s32.totalorder %s40, 0
      %p364 = por %p362, %p363
      %s366 = sadd.s32 %s365, 1
      %p369 = scmp.eq.s32.totalorder %s34, 1
      %p370 = scmp.ne.s32.totalorder %s365, %s367
      %p371 = scmp.eq.s32.totalorder %s34, 0
      %p372 = por %p370, %p371
      %p373 = scmp.ne.s32.totalorder %s365, %s367
      %p374 = scmp.eq.s32.totalorder %s39, 1
      %p375 = por %p373, %p374
      %p376 = scmp.ne.s32.totalorder %s367, %s368
      %p377 = scmp.eq.s32.totalorder %s39, 0
      %p378 = por %p376, %p377
      %p379 = scmp.ne.s32.totalorder %s367, %s368
      %p380 = scmp.eq.s32.totalorder %s40, 1
      %p381 = por %p379, %p380
      %p383 = scmp.ne.s32.totalorder %s368, %s382
      %p384 = scmp.eq.s32.totalorder %s40, 0
      %p385 = por %p383, %p384
      %s386 = ssub.s32 %s41, %s53
      %s387 = ssub.s32 %s42, %s49
      %s388 = sor.u32 %s386, %s387
      %p389 = scmp.eq.s32.totalorder %s388, 0
      %s391 = sadd.s32 %s390, 1
      %s392 = scalar_select %p389, %s390, %s391
      %p395 = pneg %p389
      %p396 = scmp.eq.s32.totalorder %s34, 1
      %p397 = por %p395, %p396
      %p398 = scmp.ne.s32.totalorder %s390, %s393
      %p399 = scmp.eq.s32.totalorder %s34, 0
      %p400 = por %p398, %p399
      %p401 = scmp.ne.s32.totalorder %s390, %s393
      %p402 = scmp.eq.s32.totalorder %s39, 1
      %p403 = por %p401, %p402
      %p404 = scmp.ne.s32.totalorder %s393, %s394
      %p405 = scmp.eq.s32.totalorder %s39, 0
      %p406 = por %p404, %p405
      %p407 = scmp.ne.s32.totalorder %s393, %s394
      %p408 = scmp.eq.s32.totalorder %s40, 1
      %p409 = por %p407, %p408
      %p411 = scmp.ne.s32.totalorder %s394, %s410
      %p412 = scmp.eq.s32.totalorder %s40, 0
      %p413 = por %p411, %p412
      %p414 = scmp.le.s32.totalorder 1, %s34
      %p415 = scmp.lt.s32.totalorder %s34, 3
      %p416 = pnand %p414, %p415
      %p417 = pneg %p416
      // Predicated region
      $region9: #{tpu_custom_call.1} parent=5 // pred_check
        _
      $region10: #{tpu_custom_call.1} parent=5 // pred_check_branch
        %419 = sbr.rel (%p416) target = $region12
      $region11: #{tpu_custom_call.1} parent=5 // pred_region
        %s420 = ssub.s32 %s34, 1
        // Predicated region
        $region13: #{tpu_custom_call.1} parent=11 // pred_check
          %p421 = pneg %p147
        $region14: #{tpu_custom_call.1} parent=11 // pred_check_branch
          %423 = sbr.rel (%p421) target = $region16
        $region15: #{tpu_custom_call.1} parent=11 // pred_region
          %s425 = ssub.s32 512, 512
          %426 = vsyncadd [#allocation13], %s425
          %s427 = sshll.u32 [#allocation12], 4
          %s428 = int_to_ptr.vmem [resolvable:$true] %s427
          %433 = dma.hbm_to_vmem [thread:$0]  %s3, 512, %s428, [#allocation13], 128, 128, 8
        $region16: #{tpu_custom_call.1} parent=11 // pred_fallthru
          _
        // Predicated region
        $region17: #{tpu_custom_call.1} parent=11 // pred_check
          %p434 = pneg %p168
        $region18: #{tpu_custom_call.1} parent=11 // pred_check_branch
          %436 = sbr.rel (%p434) target = $region20
        $region19: #{tpu_custom_call.1} parent=11 // pred_region
          %s438 = ssub.s32 16, 16
          %439 = vsyncadd [#allocation13], %s438
          %s441 = sshll.u32 [#allocation14], 4
          %s442 = int_to_ptr.vmem [resolvable:$true] %s441
          %444 = dma.hbm_to_vmem [thread:$0]  %s4, 16, %s442, [#allocation13]
        $region20: #{tpu_custom_call.1} parent=11 // pred_fallthru
          _
        // Predicated region
        $region21: #{tpu_custom_call.1} parent=11 // pred_check
          %p445 = pneg %p189
        $region22: #{tpu_custom_call.1} parent=11 // pred_check_branch
          %447 = sbr.rel (%p445) target = $region24
        $region23: #{tpu_custom_call.1} parent=11 // pred_region
          %s449 = ssub.s32 512, 512
          %450 = vsyncadd [#allocation16], %s449
          %s451 = sshll.u32 [#allocation15], 4
          %s452 = int_to_ptr.vmem [resolvable:$true] %s451
          %457 = dma.hbm_to_vmem [thread:$0]  %s5, 512, %s452, [#allocation16], 128, 128, 8
        $region24: #{tpu_custom_call.1} parent=11 // pred_fallthru
          _
        // Predicated region
        $region25: #{tpu_custom_call.1} parent=11 // pred_check
          %p458 = pneg %p210
        $region26: #{tpu_custom_call.1} parent=11 // pred_check_branch
          %460 = sbr.rel (%p458) target = $region28
        $region27: #{tpu_custom_call.1} parent=11 // pred_region
          %s462 = ssub.s32 16, 16
          %463 = vsyncadd [#allocation16], %s462
          %s465 = sshll.u32 [#allocation17], 4
          %s466 = int_to_ptr.vmem [resolvable:$true] %s465
          %468 = dma.hbm_to_vmem [thread:$0]  %s6, 16, %s466, [#allocation16]
        $region28: #{tpu_custom_call.1} parent=11 // pred_fallthru
          _
        // Predicated region
        $region29: #{tpu_custom_call.1} parent=11 // pred_check
          %p469 = pneg %p231
        $region30: #{tpu_custom_call.1} parent=11 // pred_check_branch
          %471 = sbr.rel (%p469) target = $region32
        $region31: #{tpu_custom_call.1} parent=11 // pred_region
          %s473 = ssub.s32 512, 512
          %474 = vsyncadd [#allocation19], %s473
          %s475 = sshll.u32 [#allocation18], 4
          %s476 = int_to_ptr.vmem [resolvable:$true] %s475
          %481 = dma.hbm_to_vmem [thread:$0]  %s7, 512, %s476, [#allocation19], 128, 128, 8
        $region32: #{tpu_custom_call.1} parent=11 // pred_fallthru
          _
        // Predicated region
        $region33: #{tpu_custom_call.1} parent=11 // pred_check
          %p482 = pneg %p252
        $region34: #{tpu_custom_call.1} parent=11 // pred_check_branch
          %484 = sbr.rel (%p482) target = $region36
        $region35: #{tpu_custom_call.1} parent=11 // pred_region
          %s486 = ssub.s32 16, 16
          %487 = vsyncadd [#allocation19], %s486
          %s489 = sshll.u32 [#allocation20], 4
          %s490 = int_to_ptr.vmem [resolvable:$true] %s489
          %492 = dma.hbm_to_vmem [thread:$0]  %s8, 16, %s490, [#allocation19]
        $region36: #{tpu_custom_call.1} parent=11 // pred_fallthru
          _
        // Predicated region
        $region37: #{tpu_custom_call.1} parent=11 // pred_check
          %p493 = pneg %p273
        $region38: #{tpu_custom_call.1} parent=11 // pred_check_branch
          %495 = sbr.rel (%p493) target = $region40
        $region39: #{tpu_custom_call.1} parent=11 // pred_region
          _
        $region40: #{tpu_custom_call.1} parent=11 // pred_fallthru
          _
        // Predicated region
        $region41: #{tpu_custom_call.1} parent=11 // pred_check
          %p496 = pneg %p294
        $region42: #{tpu_custom_call.1} parent=11 // pred_check_branch
          %498 = sbr.rel (%p496) target = $region44
        $region43: #{tpu_custom_call.1} parent=11 // pred_region
          _
        $region44: #{tpu_custom_call.1} parent=11 // pred_fallthru
          _
        // Predicated region
        $region45: #{tpu_custom_call.1} parent=11 // pred_check
          %p499 = pneg %p315
        $region46: #{tpu_custom_call.1} parent=11 // pred_check_branch
          %501 = sbr.rel (%p499) target = $region48
        $region47: #{tpu_custom_call.1} parent=11 // pred_region
          %s503 = ssub.s32 1024, 1024
          %504 = vsyncadd [#allocation22], %s503
          %s505 = sshll.u32 [#allocation21], 4
          %s506 = int_to_ptr.vmem [resolvable:$true] %s505
          %511 = dma.hbm_to_vmem [thread:$0]  %s11, 1024, %s506, [#allocation22], 128, 128, 8
        $region48: #{tpu_custom_call.1} parent=11 // pred_fallthru
          _
        // Predicated region
        $region49: #{tpu_custom_call.1} parent=11 // pred_check
          %p512 = pneg %p336
        $region50: #{tpu_custom_call.1} parent=11 // pred_check_branch
          %514 = sbr.rel (%p512) target = $region52
        $region51: #{tpu_custom_call.1} parent=11 // pred_region
          _
        $region52: #{tpu_custom_call.1} parent=11 // pred_fallthru
          _
        // Predicated region
        $region53: #{tpu_custom_call.1} parent=11 // pred_check
          %p515 = pneg %p357
        $region54: #{tpu_custom_call.1} parent=11 // pred_check_branch
          %517 = sbr.rel (%p515) target = $region56
        $region55: #{tpu_custom_call.1} parent=11 // pred_region
          _
        $region56: #{tpu_custom_call.1} parent=11 // pred_fallthru
          _
        // Predicated region
        $region57: #{tpu_custom_call.1} parent=11 // pred_check
          %p518 = pneg %p378
        $region58: #{tpu_custom_call.1} parent=11 // pred_check_branch
          %520 = sbr.rel (%p518) target = $region60
        $region59: #{tpu_custom_call.1} parent=11 // pred_region
          _
        $region60: #{tpu_custom_call.1} parent=11 // pred_fallthru
          _
      $region12: #{tpu_custom_call.1} parent=5 // pred_fallthru
        _
      %p521 = scmp.lt.s32.totalorder %s34, 2
      // Predicated region
      $region61: #{tpu_custom_call.1} parent=5 // pred_check
        %p522 = pneg %p521
      $region62: #{tpu_custom_call.1} parent=5 // pred_check_branch
        %524 = sbr.rel (%p522) target = $region64
      $region63: #{tpu_custom_call.1} parent=5 // pred_region
        // Predicated region
        $region65: #{tpu_custom_call.1} parent=63 // pred_check
          %p525 = pneg %p68
        $region66: #{tpu_custom_call.1} parent=63 // pred_check_branch
          %527 = sbr.rel (%p525) target = $region68
        $region67: #{tpu_custom_call.1} parent=63 // pred_region
          %s528 = sand.u32 %s58, 1
          %s529 = scalar_lea.sflag [#allocation7], %s528
          %s530 = sand.u32 %s58, 1
          %s531 = smul.addr %s530, 8
          %s532 = scalar_lea.vmem [#allocation6], %s531
          %s534 = ssub.s32 128, 128
          %535 = vsyncadd %s529, %s534
          %s536 = sadd.s32 %s42, %s41
          %s537 = smul.addr %s536, 128
          %s538 = scalar_lea.hbm %s0, %s537
          %s540 = sshll.u32 %s532, 4
          %s541 = int_to_ptr.vmem [resolvable:$true] %s540
          %543 = dma.hbm_to_vmem [thread:$0]  %s538, 128, %s541, %s529
        $region68: #{tpu_custom_call.1} parent=63 // pred_fallthru
          _
        // Predicated region
        $region69: #{tpu_custom_call.1} parent=63 // pred_check
          %p544 = pneg %p94
        $region70: #{tpu_custom_call.1} parent=63 // pred_check_branch
          %546 = sbr.rel (%p544) target = $region72
        $region71: #{tpu_custom_call.1} parent=63 // pred_region
          %s547 = sand.u32 %s34, 1
          %s548 = scalar_lea.sflag [#allocation10], %s547
          %s549 = sand.u32 %s84, 1
          %s550 = smul.addr %s549, 8
          %s551 = scalar_lea.vmem [#allocation9], %s550
          %s553 = ssub.s32 128, 128
          %554 = vsyncadd %s548, %s553
          %s555 = smul.addr %s41, 128
          %s556 = scalar_lea.hbm %s1, %s555
          %s558 = sshll.u32 %s551, 4
          %s559 = int_to_ptr.vmem [resolvable:$true] %s558
          %561 = dma.hbm_to_vmem [thread:$0]  %s556, 128, %s559, %s548
        $region72: #{tpu_custom_call.1} parent=63 // pred_fallthru
          _
        // Predicated region
        $region73: #{tpu_custom_call.1} parent=63 // pred_check
          %p562 = pneg %p120
        $region74: #{tpu_custom_call.1} parent=63 // pred_check_branch
          %564 = sbr.rel (%p562) target = $region76
        $region75: #{tpu_custom_call.1} parent=63 // pred_region
          %s565 = sand.u32 %s34, 1
          %s566 = scalar_lea.sflag [#allocation10], %s565
          %s567 = sand.u32 %s110, 1
          %s568 = smul.addr %s567, 8
          %s569 = scalar_lea.vmem [#allocation11], %s568
          %s571 = ssub.s32 128, 128
          %572 = vsyncadd %s566, %s571
          %s573 = smul.addr %s41, 128
          %s574 = scalar_lea.hbm %s2, %s573
          %s576 = sshll.u32 %s569, 4
          %s577 = int_to_ptr.vmem [resolvable:$true] %s576
          %579 = dma.hbm_to_vmem [thread:$0]  %s574, 128, %s577, %s566
        $region76: #{tpu_custom_call.1} parent=63 // pred_fallthru
          _
      $region64: #{tpu_custom_call.1} parent=5 // pred_fallthru
        _
      %p580 = scmp.le.s32.totalorder 1, %s34
      %p581 = scmp.lt.s32.totalorder %s34, 3
      %p582 = pnand %p580, %p581
      %p583 = pneg %p582
      // Predicated region
      $region77: #{tpu_custom_call.1} parent=5 // pred_check
        _
      $region78: #{tpu_custom_call.1} parent=5 // pred_check_branch
        %585 = sbr.rel (%p582) target = $region80
      $region79: #{tpu_custom_call.1} parent=5 // pred_region
        %s586 = ssub.s32 %s34, 1
        %s587 = sand.u32 %s61, 1
        %s588 = scalar_lea.sflag [#allocation7], %s587
        %s589 = sand.u32 %s61, 1
        %s590 = smul.addr %s589, 8
        %s591 = scalar_lea.vmem [#allocation6], %s590
        // Predicated region
        $region81: #{tpu_custom_call.1} parent=79 // pred_check
          %p592 = pneg %p74
        $region82: #{tpu_custom_call.1} parent=79 // pred_check_branch
          %594 = sbr.rel (%p592) target = $region84
        $region83: #{tpu_custom_call.1} parent=79 // pred_region
          %595 = dma.done %s588, 128
        $region84: #{tpu_custom_call.1} parent=79 // pred_fallthru
          _
        %s596 = sand.u32 %s39, 1
        %s597 = scalar_lea.sflag [#allocation10], %s596
        %s598 = sand.u32 %s87, 1
        %s599 = smul.addr %s598, 8
        %s600 = scalar_lea.vmem [#allocation9], %s599
        // Predicated region
        $region85: #{tpu_custom_call.1} parent=79 // pred_check
          %p601 = pneg %p100
        $region86: #{tpu_custom_call.1} parent=79 // pred_check_branch
          %603 = sbr.rel (%p601) target = $region88
        $region87: #{tpu_custom_call.1} parent=79 // pred_region
          %604 = dma.done %s597, 128
        $region88: #{tpu_custom_call.1} parent=79 // pred_fallthru
          _
        %s605 = sand.u32 %s39, 1
        %s606 = scalar_lea.sflag [#allocation10], %s605
        %s607 = sand.u32 %s113, 1
        %s608 = smul.addr %s607, 8
        %s609 = scalar_lea.vmem [#allocation11], %s608
        // Predicated region
        $region89: #{tpu_custom_call.1} parent=79 // pred_check
          %p610 = pneg %p126
        $region90: #{tpu_custom_call.1} parent=79 // pred_check_branch
          %612 = sbr.rel (%p610) target = $region92
        $region91: #{tpu_custom_call.1} parent=79 // pred_region
          %613 = dma.done %s606, 128
        $region92: #{tpu_custom_call.1} parent=79 // pred_fallthru
          _
        // Predicated region
        $region93: #{tpu_custom_call.1} parent=79 // pred_check
          %p614 = pneg %p147
        $region94: #{tpu_custom_call.1} parent=79 // pred_check_branch
          %616 = sbr.rel (%p614) target = $region96
        $region95: #{tpu_custom_call.1} parent=79 // pred_region
          %617 = dma.done [#allocation13], 512
        $region96: #{tpu_custom_call.1} parent=79 // pred_fallthru
          _
        // Predicated region
        $region97: #{tpu_custom_call.1} parent=79 // pred_check
          %p618 = pneg %p168
        $region98: #{tpu_custom_call.1} parent=79 // pred_check_branch
          %620 = sbr.rel (%p618) target = $region100
        $region99: #{tpu_custom_call.1} parent=79 // pred_region
          %621 = dma.done [#allocation13], 16
        $region100: #{tpu_custom_call.1} parent=79 // pred_fallthru
          _
        // Predicated region
        $region101: #{tpu_custom_call.1} parent=79 // pred_check
          %p622 = pneg %p189
        $region102: #{tpu_custom_call.1} parent=79 // pred_check_branch
          %624 = sbr.rel (%p622) target = $region104
        $region103: #{tpu_custom_call.1} parent=79 // pred_region
          %625 = dma.done [#allocation16], 512
        $region104: #{tpu_custom_call.1} parent=79 // pred_fallthru
          _
        // Predicated region
        $region105: #{tpu_custom_call.1} parent=79 // pred_check
          %p626 = pneg %p210
        $region106: #{tpu_custom_call.1} parent=79 // pred_check_branch
          %628 = sbr.rel (%p626) target = $region108
        $region107: #{tpu_custom_call.1} parent=79 // pred_region
          %629 = dma.done [#allocation16], 16
        $region108: #{tpu_custom_call.1} parent=79 // pred_fallthru
          _
        // Predicated region
        $region109: #{tpu_custom_call.1} parent=79 // pred_check
          %p630 = pneg %p231
        $region110: #{tpu_custom_call.1} parent=79 // pred_check_branch
          %632 = sbr.rel (%p630) target = $region112
        $region111: #{tpu_custom_call.1} parent=79 // pred_region
          %633 = dma.done [#allocation19], 512
        $region112: #{tpu_custom_call.1} parent=79 // pred_fallthru
          _
        // Predicated region
        $region113: #{tpu_custom_call.1} parent=79 // pred_check
          %p634 = pneg %p252
        $region114: #{tpu_custom_call.1} parent=79 // pred_check_branch
          %636 = sbr.rel (%p634) target = $region116
        $region115: #{tpu_custom_call.1} parent=79 // pred_region
          %637 = dma.done [#allocation19], 16
        $region116: #{tpu_custom_call.1} parent=79 // pred_fallthru
          _
        // Predicated region
        $region117: #{tpu_custom_call.1} parent=79 // pred_check
          %p638 = pneg %p315
        $region118: #{tpu_custom_call.1} parent=79 // pred_check_branch
          %640 = sbr.rel (%p638) target = $region120
        $region119: #{tpu_custom_call.1} parent=79 // pred_region
          %641 = dma.done [#allocation22], 1024
        $region120: #{tpu_custom_call.1} parent=79 // pred_fallthru
          _
        %s642 = sand.u32 %s61, 1
        %s643 = scalar_lea.sflag [#allocation7], %s642
        %s644 = sand.u32 %s61, 1
        %s645 = smul.addr %s644, 8
        %s646 = scalar_lea.vmem [#allocation6], %s645
        %p647 = pneg %p74
        %p648 = pneg %p71
        %s649 = sand.u32 %s39, 1
        %s650 = scalar_lea.sflag [#allocation10], %s649
        %s651 = sand.u32 %s87, 1
        %s652 = smul.addr %s651, 8
        %s653 = scalar_lea.vmem [#allocation9], %s652
        %p654 = pneg %p100
        %p655 = pneg %p97
        %s656 = sand.u32 %s39, 1
        %s657 = scalar_lea.sflag [#allocation10], %s656
        %s658 = sand.u32 %s113, 1
        %s659 = smul.addr %s658, 8
        %s660 = scalar_lea.vmem [#allocation11], %s659
        %p661 = pneg %p126
        %p662 = pneg %p123
        %p663 = pneg %p147
        %p664 = pneg %p144
        %p665 = pneg %p168
        %p666 = pneg %p165
        %p667 = pneg %p189
        %p668 = pneg %p186
        %p669 = pneg %p210
        %p670 = pneg %p207
        %p671 = pneg %p231
        %p672 = pneg %p228
        %p673 = pneg %p252
        %p674 = pneg %p249
        %p675 = pneg %p273
        %p676 = pneg %p270
        %p677 = pneg %p294
        %p678 = pneg %p291
        %p679 = pneg %p315
        %p680 = pneg %p312
        %p681 = pneg %p336
        %p682 = pneg %p333
        %p683 = pneg %p357
        %p684 = pneg %p354
        %p685 = pneg %p378
        %p686 = pneg %p375
        %p687 = pneg %p406
        %p688 = pneg %p403
        %s689 = sand.u32 %s393, 1
        %s690 = scalar_lea.sflag [#allocation8], %s689
        %s691 = sand.u32 %s393, 1
        %s692 = smul.addr %s691, 8
        %s693 = scalar_lea.vmem [#allocation23], %s692
        %p694 = scmp.eq.s32.totalorder %s44, 0
        // Predicated region
        $region121: #{tpu_custom_call.1} parent=79 // pred_check
          %p695 = pneg %p694
        $region122: #{tpu_custom_call.1} parent=79 // pred_check_branch
          %697 = sbr.rel (%p695) target = $region124
        $region123: #{tpu_custom_call.1} parent=79 // pred_region
          %v698 = vld [vmem:[%s600] sm:$0xff]
          %v699 = vld [vmem:[#allocation15] sm:$0xff]
          %v700 = vld [vmem:[#allocation15 + $0x8] sm:$0xff]
          %v701 = vld [vmem:[#allocation15 + $0x10] sm:$0xff]
          %v702 = vld [vmem:[#allocation15 + $0x18] sm:$0xff]
          %v703 = vld [vmem:[#allocation17] sm:$0x1]
          %v705 = vlaneseq
          %v706 = vshrl.u32 %v705, 7
          %v707 = vsub.s32 0, %v706
          %v708 = vrot.slane %v703, %v707
          %vm710 = vcmask 261120
          %v712 = vsel %vm710, %v698, 0
          %714 = vmatprep.subr.mxu0 0.0
          %715 = vmatpush1.msra.mxu0 %v699
          %716 = vmatprep.subr.mxu0 0.0
          %717 = vmatpush1.msra.mxu0 %v700
          %718 = vmatprep.subr.mxu0 0.0
          %719 = vmatpush1.msra.mxu0 %v701
          %720 = vmatprep.subr.mxu0 0.0
          %721 = vmatpush1.msra.mxu0 %v702
          %722 = vmatprep.subr.mxu0 0.0
          %723 = vmatpush1.msra.mxu0 0.0
          %724 = vmatprep.subr.mxu0 0.0
          %725 = vmatpush1.msra.mxu0 0.0
          %726 = vmatprep.subr.mxu0 0.0
          %727 = vmatpush1.msra.mxu0 0.0
          %728 = vmatprep.subr.mxu0 0.0
          %729 = vmatpush1.msra.mxu0 0.0
          %730 = vmatprep.subr.mxu0 0.0
          %731 = vmatpush1.msra.mxu0 0.0
          %732 = vmatprep.subr.mxu0 0.0
          %733 = vmatpush1.msra.mxu0 0.0
          %734 = vmatprep.subr.mxu0 0.0
          %735 = vmatpush1.msra.mxu0 0.0
          %736 = vmatprep.subr.mxu0 0.0
          %737 = vmatpush1.msra.mxu0 0.0
          %738 = vmatprep.subr.mxu0 0.0
          %739 = vmatpush1.msra.mxu0 0.0
          %740 = vmatprep.subr.mxu0 0.0
          %741 = vmatpush1.msra.mxu0 0.0
          %742 = vmatprep.subr.mxu0 0.0
          %743 = vmatpush1.msra.mxu0 0.0
          %744 = vmatprep.subr.mxu0 0.0
          %745 = vmatpush1.msra.mxu0 0.0
          %746 = vmatprep.subr.mxu0 0.0
          %747 = vmatpush1.msra.mxu0 0.0
          %748 = vmatprep.subr.mxu0 0.0
          %749 = vmatpush1.msra.mxu0 0.0
          %750 = vmatprep.subr.mxu0 0.0
          %751 = vmatpush1.msra.mxu0 0.0
          %752 = vmatprep.subr.mxu0 0.0
          %753 = vmatpush1.msra.mxu0 0.0
          %754 = vmatprep.subr.mxu0 0.0
          %755 = vmatpush1.msra.mxu0 0.0
          %756 = vmatprep.subr.mxu0 0.0
          %757 = vmatpush1.msra.mxu0 0.0
          %758 = vmatprep.subr.mxu0 0.0
          %759 = vmatpush1.msra.mxu0 0.0
          %760 = vmatprep.subr.mxu0 0.0
          %761 = vmatpush1.msra.mxu0 0.0
          %762 = vmatprep.subr.mxu0 0.0
          %763 = vmatpush1.msra.mxu0 0.0
          %764 = vmatprep.subr.mxu0 0.0
          %765 = vmatpush1.msra.mxu0 0.0
          %766 = vmatprep.subr.mxu0 0.0
          %767 = vmatpush1.msra.mxu0 0.0
          %768 = vmatprep.subr.mxu0 0.0
          %769 = vmatpush1.msra.mxu0 0.0
          %770 = vmatprep.subr.mxu0 0.0
          %771 = vmatpush1.msra.mxu0 0.0
          %772 = vmatprep.subr.mxu0 0.0
          %773 = vmatpush1.msra.mxu0 0.0
          %774 = vmatprep.subr.mxu0 0.0
          %775 = vmatpush1.msra.mxu0 0.0
          %776 = vmatprep.subr.mxu0 0.0
          %777 = vmatpush1.msra.mxu0 0.0
          %778 = vmatprep.mubr.f32.mxu0 0.0
          %779 = vmatmul.mubr.f32.gmra.mrb[0].mxu0 %v712
          %v780 = vpop.f32.mrb[0].mxu0
          %v781 = vadd.f32 %v708, %v780
          %v782 = vpop.f32.mrb[0].mxu0
          %783 = vdwg.mxu0
          %784 = vst.msk [vmem:[#allocation2] sm:$0xff] %vm710, %v781
          %786 = vrot.lane.b32.xlu0 %v781, 96
          %v787 = vpop.permute.xlu0 %786
          %789 = vst.msk [vmem:[#allocation3] sm:$0xff] %vm710, %v787
          %v790 = vld [vmem:[%s609] sm:$0xff]
          %v791 = vld [vmem:[%s9] sm:$0xff]
          %v792 = vld [vmem:[%s9 + $0x8] sm:$0xff]
          %v793 = vld [vmem:[%s9 + $0x10] sm:$0xff]
          %v794 = vld [vmem:[%s9 + $0x18] sm:$0xff]
          %v795 = vld [vmem:[%s10] sm:$0x1]
          %v797 = vlaneseq
          %v798 = vshrl.u32 %v797, 7
          %v799 = vsub.s32 0, %v798
          %v800 = vrot.slane %v795, %v799
          %v803 = vsel %vm710, %v790, 0
          %805 = vmatprep.subr.mxu0 0.0
          %806 = vmatpush1.msra.mxu0 %v791
          %807 = vmatprep.subr.mxu0 0.0
          %808 = vmatpush1.msra.mxu0 %v792
          %809 = vmatprep.subr.mxu0 0.0
          %810 = vmatpush1.msra.mxu0 %v793
          %811 = vmatprep.subr.mxu0 0.0
          %812 = vmatpush1.msra.mxu0 %v794
          %813 = vmatprep.subr.mxu0 0.0
          %814 = vmatpush1.msra.mxu0 0.0
          %815 = vmatprep.subr.mxu0 0.0
          %816 = vmatpush1.msra.mxu0 0.0
          %817 = vmatprep.subr.mxu0 0.0
          %818 = vmatpush1.msra.mxu0 0.0
          %819 = vmatprep.subr.mxu0 0.0
          %820 = vmatpush1.msra.mxu0 0.0
          %821 = vmatprep.subr.mxu0 0.0
          %822 = vmatpush1.msra.mxu0 0.0
          %823 = vmatprep.subr.mxu0 0.0
          %824 = vmatpush1.msra.mxu0 0.0
          %825 = vmatprep.subr.mxu0 0.0
          %826 = vmatpush1.msra.mxu0 0.0
          %827 = vmatprep.subr.mxu0 0.0
          %828 = vmatpush1.msra.mxu0 0.0
          %829 = vmatprep.subr.mxu0 0.0
          %830 = vmatpush1.msra.mxu0 0.0
          %831 = vmatprep.subr.mxu0 0.0
          %832 = vmatpush1.msra.mxu0 0.0
          %833 = vmatprep.subr.mxu0 0.0
          %834 = vmatpush1.msra.mxu0 0.0
          %835 = vmatprep.subr.mxu0 0.0
          %836 = vmatpush1.msra.mxu0 0.0
          %837 = vmatprep.subr.mxu0 0.0
          %838 = vmatpush1.msra.mxu0 0.0
          %839 = vmatprep.subr.mxu0 0.0
          %840 = vmatpush1.msra.mxu0 0.0
          %841 = vmatprep.subr.mxu0 0.0
          %842 = vmatpush1.msra.mxu0 0.0
          %843 = vmatprep.subr.mxu0 0.0
          %844 = vmatpush1.msra.mxu0 0.0
          %845 = vmatprep.subr.mxu0 0.0
          %846 = vmatpush1.msra.mxu0 0.0
          %847 = vmatprep.subr.mxu0 0.0
          %848 = vmatpush1.msra.mxu0 0.0
          %849 = vmatprep.subr.mxu0 0.0
          %850 = vmatpush1.msra.mxu0 0.0
          %851 = vmatprep.subr.mxu0 0.0
          %852 = vmatpush1.msra.mxu0 0.0
          %853 = vmatprep.subr.mxu0 0.0
          %854 = vmatpush1.msra.mxu0 0.0
          %855 = vmatprep.subr.mxu0 0.0
          %856 = vmatpush1.msra.mxu0 0.0
          %857 = vmatprep.subr.mxu0 0.0
          %858 = vmatpush1.msra.mxu0 0.0
          %859 = vmatprep.subr.mxu0 0.0
          %860 = vmatpush1.msra.mxu0 0.0
          %861 = vmatprep.subr.mxu0 0.0
          %862 = vmatpush1.msra.mxu0 0.0
          %863 = vmatprep.subr.mxu0 0.0
          %864 = vmatpush1.msra.mxu0 0.0
          %865 = vmatprep.subr.mxu0 0.0
          %866 = vmatpush1.msra.mxu0 0.0
          %867 = vmatprep.subr.mxu0 0.0
          %868 = vmatpush1.msra.mxu0 0.0
          %869 = vmatprep.mubr.f32.mxu0 0.0
          %870 = vmatmul.mubr.f32.gmra.mrb[0].mxu0 %v803
          %v871 = vpop.f32.mrb[0].mxu0
          %v872 = vadd.f32 %v800, %v871
          %v873 = vpop.f32.mrb[0].mxu0
          %874 = vdwg.mxu0
          %875 = vst.msk [vmem:[#allocation4] sm:$0xff] %vm710, %v872
          %877 = vrot.lane.b32.xlu0 %v872, 96
          %v878 = vpop.permute.xlu0 %877
          %880 = vst.msk [vmem:[#allocation5] sm:$0xff] %vm710, %v878
        $region124: #{tpu_custom_call.1} parent=79 // pred_fallthru
          _
        %v881 = vld [vmem:[%s591] sm:$0xff]
        %v882 = vld [vmem:[%s13] sm:$0x1]
        %v883 = vld [vmem:[%s14] sm:$0x1]
        %v884 = vld [vmem:[#allocation12] sm:$0xff]
        %v885 = vld [vmem:[#allocation12 + $0x8] sm:$0xff]
        %v886 = vld [vmem:[#allocation12 + $0x10] sm:$0xff]
        %v887 = vld [vmem:[#allocation12 + $0x18] sm:$0xff]
        %v888 = vld [vmem:[#allocation14] sm:$0x1]
        %v890 = vlaneseq
        %v891 = vshrl.u32 %v890, 7
        %v892 = vsub.s32 0, %v891
        %v893 = vrot.slane %v888, %v892
        %vm895 = vcmask 261120
        %v897 = vsel %vm895, %v881, 0
        %899 = vmatprep.subr.mxu0 0.0
        %900 = vmatpush1.msra.mxu0 %v884
        %901 = vmatprep.subr.mxu0 0.0
        %902 = vmatpush1.msra.mxu0 %v885
        %903 = vmatprep.subr.mxu0 0.0
        %904 = vmatpush1.msra.mxu0 %v886
        %905 = vmatprep.subr.mxu0 0.0
        %906 = vmatpush1.msra.mxu0 %v887
        %907 = vmatprep.subr.mxu0 0.0
        %908 = vmatpush1.msra.mxu0 0.0
        %909 = vmatprep.subr.mxu0 0.0
        %910 = vmatpush1.msra.mxu0 0.0
        %911 = vmatprep.subr.mxu0 0.0
        %912 = vmatpush1.msra.mxu0 0.0
        %913 = vmatprep.subr.mxu0 0.0
        %914 = vmatpush1.msra.mxu0 0.0
        %915 = vmatprep.subr.mxu0 0.0
        %916 = vmatpush1.msra.mxu0 0.0
        %917 = vmatprep.subr.mxu0 0.0
        %918 = vmatpush1.msra.mxu0 0.0
        %919 = vmatprep.subr.mxu0 0.0
        %920 = vmatpush1.msra.mxu0 0.0
        %921 = vmatprep.subr.mxu0 0.0
        %922 = vmatpush1.msra.mxu0 0.0
        %923 = vmatprep.subr.mxu0 0.0
        %924 = vmatpush1.msra.mxu0 0.0
        %925 = vmatprep.subr.mxu0 0.0
        %926 = vmatpush1.msra.mxu0 0.0
        %927 = vmatprep.subr.mxu0 0.0
        %928 = vmatpush1.msra.mxu0 0.0
        %929 = vmatprep.subr.mxu0 0.0
        %930 = vmatpush1.msra.mxu0 0.0
        %931 = vmatprep.subr.mxu0 0.0
        %932 = vmatpush1.msra.mxu0 0.0
        %933 = vmatprep.subr.mxu0 0.0
        %934 = vmatpush1.msra.mxu0 0.0
        %935 = vmatprep.subr.mxu0 0.0
        %936 = vmatpush1.msra.mxu0 0.0
        %937 = vmatprep.subr.mxu0 0.0
        %938 = vmatpush1.msra.mxu0 0.0
        %939 = vmatprep.subr.mxu0 0.0
        %940 = vmatpush1.msra.mxu0 0.0
        %941 = vmatprep.subr.mxu0 0.0
        %942 = vmatpush1.msra.mxu0 0.0
        %943 = vmatprep.subr.mxu0 0.0
        %944 = vmatpush1.msra.mxu0 0.0
        %945 = vmatprep.subr.mxu0 0.0
        %946 = vmatpush1.msra.mxu0 0.0
        %947 = vmatprep.subr.mxu0 0.0
        %948 = vmatpush1.msra.mxu0 0.0
        %949 = vmatprep.subr.mxu0 0.0
        %950 = vmatpush1.msra.mxu0 0.0
        %951 = vmatprep.subr.mxu0 0.0
        %952 = vmatpush1.msra.mxu0 0.0
        %953 = vmatprep.subr.mxu0 0.0
        %954 = vmatpush1.msra.mxu0 0.0
        %955 = vmatprep.subr.mxu0 0.0
        %956 = vmatpush1.msra.mxu0 0.0
        %957 = vmatprep.subr.mxu0 0.0
        %958 = vmatpush1.msra.mxu0 0.0
        %959 = vmatprep.subr.mxu0 0.0
        %960 = vmatpush1.msra.mxu0 0.0
        %961 = vmatprep.subr.mxu0 0.0
        %962 = vmatpush1.msra.mxu0 0.0
        %963 = vmatprep.mubr.f32.mxu0 0.0
        %964 = vmatmul.mubr.f32.gmra.mrb[0].mxu0 %v897
        %v965 = vpop.f32.mrb[0].mxu0
        %v966 = vadd.f32 %v893, %v965
        %v967 = vpop.f32.mrb[0].mxu0
        %968 = vdwg.mxu0
        %v969 = vld [vmem:[#allocation2] sm:$0xff]
        %v970 = vld [vmem:[#allocation3] sm:$0xff]
        %v972 = vsel %vm895, %v966, 0
        %v975 = vsel %vm895, %v969, 0
        %977 = vmatprep.subr.mxu0 0.0
        %978 = vmatpush1.xpose.msra.mxu0 %v975
        %979 = vmatprep.subr.mxu0 0.0
        %980 = vmatpush1.xpose.msra.mxu0 0.0
        %981 = vmatprep.subr.mxu0 0.0
        %982 = vmatpush1.xpose.msra.mxu0 0.0
        %983 = vmatprep.subr.mxu0 0.0
        %984 = vmatpush1.xpose.msra.mxu0 0.0
        %985 = vmatprep.subr.mxu0 0.0
        %986 = vmatpush1.xpose.msra.mxu0 0.0
        %987 = vmatprep.subr.mxu0 0.0
        %988 = vmatpush1.xpose.msra.mxu0 0.0
        %989 = vmatprep.subr.mxu0 0.0
        %990 = vmatpush1.xpose.msra.mxu0 0.0
        %991 = vmatprep.subr.mxu0 0.0
        %992 = vmatpush1.xpose.msra.mxu0 0.0
        %993 = vmatprep.subr.mxu0 0.0
        %994 = vmatpush1.xpose.msra.mxu0 0.0
        %995 = vmatprep.subr.mxu0 0.0
        %996 = vmatpush1.xpose.msra.mxu0 0.0
        %997 = vmatprep.subr.mxu0 0.0
        %998 = vmatpush1.xpose.msra.mxu0 0.0
        %999 = vmatprep.subr.mxu0 0.0
        %1000 = vmatpush1.xpose.msra.mxu0 0.0
        %1001 = vmatprep.subr.mxu0 0.0
        %1002 = vmatpush1.xpose.msra.mxu0 0.0
        %1003 = vmatprep.subr.mxu0 0.0
        %1004 = vmatpush1.xpose.msra.mxu0 0.0
        %1005 = vmatprep.subr.mxu0 0.0
        %1006 = vmatpush1.xpose.msra.mxu0 0.0
        %1007 = vmatprep.subr.mxu0 0.0
        %1008 = vmatpush1.xpose.msra.mxu0 0.0
        %1009 = vmatprep.subr.mxu0 0.0
        %1010 = vmatpush1.xpose.msra.mxu0 0.0
        %1011 = vmatprep.subr.mxu0 0.0
        %1012 = vmatpush1.xpose.msra.mxu0 0.0
        %1013 = vmatprep.subr.mxu0 0.0
        %1014 = vmatpush1.xpose.msra.mxu0 0.0
        %1015 = vmatprep.subr.mxu0 0.0
        %1016 = vmatpush1.xpose.msra.mxu0 0.0
        %1017 = vmatprep.subr.mxu0 0.0
        %1018 = vmatpush1.xpose.msra.mxu0 0.0
        %1019 = vmatprep.subr.mxu0 0.0
        %1020 = vmatpush1.xpose.msra.mxu0 0.0
        %1021 = vmatprep.subr.mxu0 0.0
        %1022 = vmatpush1.xpose.msra.mxu0 0.0
        %1023 = vmatprep.subr.mxu0 0.0
        %1024 = vmatpush1.xpose.msra.mxu0 0.0
        %1025 = vmatprep.subr.mxu0 0.0
        %1026 = vmatpush1.xpose.msra.mxu0 0.0
        %1027 = vmatprep.subr.mxu0 0.0
        %1028 = vmatpush1.xpose.msra.mxu0 0.0
        %1029 = vmatprep.subr.mxu0 0.0
        %1030 = vmatpush1.xpose.msra.mxu0 0.0
        %1031 = vmatprep.subr.mxu0 0.0
        %1032 = vmatpush1.xpose.msra.mxu0 0.0
        %1033 = vmatprep.subr.mxu0 0.0
        %1034 = vmatpush1.xpose.msra.mxu0 0.0
        %1035 = vmatprep.subr.mxu0 0.0
        %1036 = vmatpush1.xpose.msra.mxu0 0.0
        %1037 = vmatprep.subr.mxu0 0.0
        %1038 = vmatpush1.xpose.msra.mxu0 0.0
        %1039 = vmatprep.subr.mxu0 0.0
        %1040 = vmatpush1.xpose.msra.mxu0 0.0
        %1041 = vmatprep.mubr.f32.mxu0 0.0
        %1042 = vmatmul.mubr.f32.gmra.mrb[0].mxu0 %v972
        %v1043 = vpop.f32.mrb[0].mxu0
        %v1044 = vadd.f32 0.0, %v1043
        %v1045 = vpop.f32.mrb[0].mxu0
        %1046 = vdwg.mxu0
        %vm1047 = vcmask 64512
        %v1048 = vsel %vm1047, %v1044, -inf
        %1049 = vmax.xlane.f32.xlu0 %v1048
        %v1050 = vpop.xlane.xlu0 %1049
        %v1051 = vsub.f32 -inf, %v1050
        %v1052 = vmul.f32 %v1051, 1.442695
        %v1053 = vpow.pop %v1052
        %v1054 = vsub.f32 %v1044, %v1050
        %v1055 = vmul.f32 %v1054, 1.442695
        %v1056 = vpow.pop %v1055
        %v1057 = vmul.f32 %v1053, 0.0
        %v1058 = vsel %vm1047, %v1056, 0.0
        %1059 = vadd.xlane.f32.xlu0 %v1058
        %v1060 = vpop.xlane.xlu0 %1059
        %v1061 = vadd.f32 %v1057, %v1060
        %v1063 = vsel %vm1047, %v1056, 0
        %1065 = vmatprep.subr.mxu0 0.0
        %1066 = vmatpush1.msra.mxu0 %v970
        %1067 = vmatprep.subr.mxu0 0.0
        %1068 = vmatpush1.msra.mxu0 0.0
        %1069 = vmatprep.subr.mxu0 0.0
        %1070 = vmatpush1.msra.mxu0 0.0
        %1071 = vmatprep.subr.mxu0 0.0
        %1072 = vmatpush1.msra.mxu0 0.0
        %1073 = vmatprep.subr.mxu0 0.0
        %1074 = vmatpush1.msra.mxu0 0.0
        %1075 = vmatprep.subr.mxu0 0.0
        %1076 = vmatpush1.msra.mxu0 0.0
        %1077 = vmatprep.subr.mxu0 0.0
        %1078 = vmatpush1.msra.mxu0 0.0
        %1079 = vmatprep.subr.mxu0 0.0
        %1080 = vmatpush1.msra.mxu0 0.0
        %1081 = vmatprep.subr.mxu0 0.0
        %1082 = vmatpush1.msra.mxu0 0.0
        %1083 = vmatprep.subr.mxu0 0.0
        %1084 = vmatpush1.msra.mxu0 0.0
        %1085 = vmatprep.subr.mxu0 0.0
        %1086 = vmatpush1.msra.mxu0 0.0
        %1087 = vmatprep.subr.mxu0 0.0
        %1088 = vmatpush1.msra.mxu0 0.0
        %1089 = vmatprep.subr.mxu0 0.0
        %1090 = vmatpush1.msra.mxu0 0.0
        %1091 = vmatprep.subr.mxu0 0.0
        %1092 = vmatpush1.msra.mxu0 0.0
        %1093 = vmatprep.subr.mxu0 0.0
        %1094 = vmatpush1.msra.mxu0 0.0
        %1095 = vmatprep.subr.mxu0 0.0
        %1096 = vmatpush1.msra.mxu0 0.0
        %1097 = vmatprep.subr.mxu0 0.0
        %1098 = vmatpush1.msra.mxu0 0.0
        %1099 = vmatprep.subr.mxu0 0.0
        %1100 = vmatpush1.msra.mxu0 0.0
        %1101 = vmatprep.subr.mxu0 0.0
        %1102 = vmatpush1.msra.mxu0 0.0
        %1103 = vmatprep.subr.mxu0 0.0
        %1104 = vmatpush1.msra.mxu0 0.0
        %1105 = vmatprep.subr.mxu0 0.0
        %1106 = vmatpush1.msra.mxu0 0.0
        %1107 = vmatprep.subr.mxu0 0.0
        %1108 = vmatpush1.msra.mxu0 0.0
        %1109 = vmatprep.subr.mxu0 0.0
        %1110 = vmatpush1.msra.mxu0 0.0
        %1111 = vmatprep.subr.mxu0 0.0
        %1112 = vmatpush1.msra.mxu0 0.0
        %1113 = vmatprep.subr.mxu0 0.0
        %1114 = vmatpush1.msra.mxu0 0.0
        %1115 = vmatprep.subr.mxu0 0.0
        %1116 = vmatpush1.msra.mxu0 0.0
        %1117 = vmatprep.subr.mxu0 0.0
        %1118 = vmatpush1.msra.mxu0 0.0
        %1119 = vmatprep.subr.mxu0 0.0
        %1120 = vmatpush1.msra.mxu0 0.0
        %1121 = vmatprep.subr.mxu0 0.0
        %1122 = vmatpush1.msra.mxu0 0.0
        %1123 = vmatprep.subr.mxu0 0.0
        %1124 = vmatpush1.msra.mxu0 0.0
        %1125 = vmatprep.subr.mxu0 0.0
        %1126 = vmatpush1.msra.mxu0 0.0
        %1127 = vmatprep.subr.mxu0 0.0
        %1128 = vmatpush1.msra.mxu0 0.0
        %1129 = vmatprep.mubr.f32.mxu0 0.0
        %1130 = vmatmul.mubr.f32.gmra.mrb[0].mxu0 %v1063
        %v1131 = vpop.f32.mrb[0].mxu0
        %v1132 = vadd.f32 0.0, %v1131
        %v1133 = vpop.f32.mrb[0].mxu0
        %1134 = vdwg.mxu0
        %v1135 = vadd.f32 %v1057, %v1132
        %v1136 = vrcp.pop %v1061
        %v1137 = vmul.f32 %v1135, %v1136
        %v1138 = vadd.f32 %v1137, %v881
        %v1139 = vsel %vm895, %v1138, 0.0
        %1140 = vadd.xlane.f32.xlu0 %v1139
        %v1141 = vpop.xlane.xlu0 %1140
        %v1142 = vrcp.pop 32.0
        %v1143 = vmul.f32 %v1141, %v1142
        %v1144 = vsub.f32 %v1138, %v1143
        %v1145 = vmul.f32 %v1144, %v1144
        %v1146 = vsel %vm895, %v1145, 0.0
        %1147 = vadd.xlane.f32.xlu0 %v1146
        %v1148 = vpop.xlane.xlu0 %1147
        %v1149 = vmul.f32 %v1148, %v1142
        %v1150 = vadd.f32 %v1149, 1e-05
        %v1151 = vrsqrt.pop %v1150
        %v1152 = vmul.f32 %v1144, %v1151
        %v1153 = vadd.f32 %v1152, %v881
        %v1154 = vsel %vm895, %v1153, 0.0
        %1155 = vadd.xlane.f32.xlu0 %v1154
        %v1156 = vpop.xlane.xlu0 %1155
        %v1157 = vmul.f32 %v1156, %v1142
        %v1158 = vsub.f32 %v1153, %v1157
        %v1159 = vmul.f32 %v1158, %v1158
        %v1160 = vsel %vm895, %v1159, 0.0
        %1161 = vadd.xlane.f32.xlu0 %v1160
        %v1162 = vpop.xlane.xlu0 %1161
        %v1163 = vmul.f32 %v1162, %v1142
        %v1164 = vadd.f32 %v1163, 1e-05
        %v1165 = vrsqrt.pop %v1164
        %v1166 = vmul.f32 %v1158, %v1165
        %v1168 = vlaneseq
        %v1169 = vshrl.u32 %v1168, 7
        %v1170 = vsub.s32 0, %v1169
        %v1171 = vrot.slane %v882, %v1170
        %v1173 = vmul.f32 %v1166, %v1171
        %v1175 = vlaneseq
        %v1176 = vshrl.u32 %v1175, 7
        %v1177 = vsub.s32 0, %v1176
        %v1178 = vrot.slane %v883, %v1177
        %v1180 = vadd.f32 %v1173, %v1178
        %v1181 = vld [vmem:[#allocation18] sm:$0xff]
        %v1182 = vld [vmem:[#allocation18 + $0x8] sm:$0xff]
        %v1183 = vld [vmem:[#allocation18 + $0x10] sm:$0xff]
        %v1184 = vld [vmem:[#allocation18 + $0x18] sm:$0xff]
        %v1185 = vld [vmem:[#allocation20] sm:$0x1]
        %v1187 = vlaneseq
        %v1188 = vshrl.u32 %v1187, 7
        %v1189 = vsub.s32 0, %v1188
        %v1190 = vrot.slane %v1185, %v1189
        %v1193 = vsel %vm895, %v1180, 0
        %1195 = vmatprep.subr.mxu0 0.0
        %1196 = vmatpush1.msra.mxu0 %v1181
        %1197 = vmatprep.subr.mxu0 0.0
        %1198 = vmatpush1.msra.mxu0 %v1182
        %1199 = vmatprep.subr.mxu0 0.0
        %1200 = vmatpush1.msra.mxu0 %v1183
        %1201 = vmatprep.subr.mxu0 0.0
        %1202 = vmatpush1.msra.mxu0 %v1184
        %1203 = vmatprep.subr.mxu0 0.0
        %1204 = vmatpush1.msra.mxu0 0.0
        %1205 = vmatprep.subr.mxu0 0.0
        %1206 = vmatpush1.msra.mxu0 0.0
        %1207 = vmatprep.subr.mxu0 0.0
        %1208 = vmatpush1.msra.mxu0 0.0
        %1209 = vmatprep.subr.mxu0 0.0
        %1210 = vmatpush1.msra.mxu0 0.0
        %1211 = vmatprep.subr.mxu0 0.0
        %1212 = vmatpush1.msra.mxu0 0.0
        %1213 = vmatprep.subr.mxu0 0.0
        %1214 = vmatpush1.msra.mxu0 0.0
        %1215 = vmatprep.subr.mxu0 0.0
        %1216 = vmatpush1.msra.mxu0 0.0
        %1217 = vmatprep.subr.mxu0 0.0
        %1218 = vmatpush1.msra.mxu0 0.0
        %1219 = vmatprep.subr.mxu0 0.0
        %1220 = vmatpush1.msra.mxu0 0.0
        %1221 = vmatprep.subr.mxu0 0.0
        %1222 = vmatpush1.msra.mxu0 0.0
        %1223 = vmatprep.subr.mxu0 0.0
        %1224 = vmatpush1.msra.mxu0 0.0
        %1225 = vmatprep.subr.mxu0 0.0
        %1226 = vmatpush1.msra.mxu0 0.0
        %1227 = vmatprep.subr.mxu0 0.0
        %1228 = vmatpush1.msra.mxu0 0.0
        %1229 = vmatprep.subr.mxu0 0.0
        %1230 = vmatpush1.msra.mxu0 0.0
        %1231 = vmatprep.subr.mxu0 0.0
        %1232 = vmatpush1.msra.mxu0 0.0
        %1233 = vmatprep.subr.mxu0 0.0
        %1234 = vmatpush1.msra.mxu0 0.0
        %1235 = vmatprep.subr.mxu0 0.0
        %1236 = vmatpush1.msra.mxu0 0.0
        %1237 = vmatprep.subr.mxu0 0.0
        %1238 = vmatpush1.msra.mxu0 0.0
        %1239 = vmatprep.subr.mxu0 0.0
        %1240 = vmatpush1.msra.mxu0 0.0
        %1241 = vmatprep.subr.mxu0 0.0
        %1242 = vmatpush1.msra.mxu0 0.0
        %1243 = vmatprep.subr.mxu0 0.0
        %1244 = vmatpush1.msra.mxu0 0.0
        %1245 = vmatprep.subr.mxu0 0.0
        %1246 = vmatpush1.msra.mxu0 0.0
        %1247 = vmatprep.subr.mxu0 0.0
        %1248 = vmatpush1.msra.mxu0 0.0
        %1249 = vmatprep.subr.mxu0 0.0
        %1250 = vmatpush1.msra.mxu0 0.0
        %1251 = vmatprep.subr.mxu0 0.0
        %1252 = vmatpush1.msra.mxu0 0.0
        %1253 = vmatprep.subr.mxu0 0.0
        %1254 = vmatpush1.msra.mxu0 0.0
        %1255 = vmatprep.subr.mxu0 0.0
        %1256 = vmatpush1.msra.mxu0 0.0
        %1257 = vmatprep.subr.mxu0 0.0
        %1258 = vmatpush1.msra.mxu0 0.0
        %1259 = vmatprep.mubr.f32.mxu0 0.0
        %1260 = vmatmul.mubr.f32.gmra.mrb[0].mxu0 %v1193
        %v1261 = vpop.f32.mrb[0].mxu0
        %v1262 = vadd.f32 %v1190, %v1261
        %v1263 = vpop.f32.mrb[0].mxu0
        %1264 = vdwg.mxu0
        %v1265 = vld [vmem:[#allocation4] sm:$0xff]
        %v1266 = vld [vmem:[#allocation5] sm:$0xff]
        %v1268 = vsel %vm895, %v1262, 0
        %v1271 = vsel %vm895, %v1265, 0
        %1273 = vmatprep.subr.mxu0 0.0
        %1274 = vmatpush1.xpose.msra.mxu0 %v1271
        %1275 = vmatprep.subr.mxu0 0.0
        %1276 = vmatpush1.xpose.msra.mxu0 0.0
        %1277 = vmatprep.subr.mxu0 0.0
        %1278 = vmatpush1.xpose.msra.mxu0 0.0
        %1279 = vmatprep.subr.mxu0 0.0
        %1280 = vmatpush1.xpose.msra.mxu0 0.0
        %1281 = vmatprep.subr.mxu0 0.0
        %1282 = vmatpush1.xpose.msra.mxu0 0.0
        %1283 = vmatprep.subr.mxu0 0.0
        %1284 = vmatpush1.xpose.msra.mxu0 0.0
        %1285 = vmatprep.subr.mxu0 0.0
        %1286 = vmatpush1.xpose.msra.mxu0 0.0
        %1287 = vmatprep.subr.mxu0 0.0
        %1288 = vmatpush1.xpose.msra.mxu0 0.0
        %1289 = vmatprep.subr.mxu0 0.0
        %1290 = vmatpush1.xpose.msra.mxu0 0.0
        %1291 = vmatprep.subr.mxu0 0.0
        %1292 = vmatpush1.xpose.msra.mxu0 0.0
        %1293 = vmatprep.subr.mxu0 0.0
        %1294 = vmatpush1.xpose.msra.mxu0 0.0
        %1295 = vmatprep.subr.mxu0 0.0
        %1296 = vmatpush1.xpose.msra.mxu0 0.0
        %1297 = vmatprep.subr.mxu0 0.0
        %1298 = vmatpush1.xpose.msra.mxu0 0.0
        %1299 = vmatprep.subr.mxu0 0.0
        %1300 = vmatpush1.xpose.msra.mxu0 0.0
        %1301 = vmatprep.subr.mxu0 0.0
        %1302 = vmatpush1.xpose.msra.mxu0 0.0
        %1303 = vmatprep.subr.mxu0 0.0
        %1304 = vmatpush1.xpose.msra.mxu0 0.0
        %1305 = vmatprep.subr.mxu0 0.0
        %1306 = vmatpush1.xpose.msra.mxu0 0.0
        %1307 = vmatprep.subr.mxu0 0.0
        %1308 = vmatpush1.xpose.msra.mxu0 0.0
        %1309 = vmatprep.subr.mxu0 0.0
        %1310 = vmatpush1.xpose.msra.mxu0 0.0
        %1311 = vmatprep.subr.mxu0 0.0
        %1312 = vmatpush1.xpose.msra.mxu0 0.0
        %1313 = vmatprep.subr.mxu0 0.0
        %1314 = vmatpush1.xpose.msra.mxu0 0.0
        %1315 = vmatprep.subr.mxu0 0.0
        %1316 = vmatpush1.xpose.msra.mxu0 0.0
        %1317 = vmatprep.subr.mxu0 0.0
        %1318 = vmatpush1.xpose.msra.mxu0 0.0
        %1319 = vmatprep.subr.mxu0 0.0
        %1320 = vmatpush1.xpose.msra.mxu0 0.0
        %1321 = vmatprep.subr.mxu0 0.0
        %1322 = vmatpush1.xpose.msra.mxu0 0.0
        %1323 = vmatprep.subr.mxu0 0.0
        %1324 = vmatpush1.xpose.msra.mxu0 0.0
        %1325 = vmatprep.subr.mxu0 0.0
        %1326 = vmatpush1.xpose.msra.mxu0 0.0
        %1327 = vmatprep.subr.mxu0 0.0
        %1328 = vmatpush1.xpose.msra.mxu0 0.0
        %1329 = vmatprep.subr.mxu0 0.0
        %1330 = vmatpush1.xpose.msra.mxu0 0.0
        %1331 = vmatprep.subr.mxu0 0.0
        %1332 = vmatpush1.xpose.msra.mxu0 0.0
        %1333 = vmatprep.subr.mxu0 0.0
        %1334 = vmatpush1.xpose.msra.mxu0 0.0
        %1335 = vmatprep.subr.mxu0 0.0
        %1336 = vmatpush1.xpose.msra.mxu0 0.0
        %1337 = vmatprep.mubr.f32.mxu0 0.0
        %1338 = vmatmul.mubr.f32.gmra.mrb[0].mxu0 %v1268
        %v1339 = vpop.f32.mrb[0].mxu0
        %v1340 = vadd.f32 0.0, %v1339
        %v1341 = vpop.f32.mrb[0].mxu0
        %1342 = vdwg.mxu0
        %v1343 = vsel %vm1047, %v1340, -inf
        %1344 = vmax.xlane.f32.xlu0 %v1343
        %v1345 = vpop.xlane.xlu0 %1344
        %v1346 = vsub.f32 -inf, %v1345
        %v1347 = vmul.f32 %v1346, 1.442695
        %v1348 = vpow.pop %v1347
        %v1349 = vsub.f32 %v1340, %v1345
        %v1350 = vmul.f32 %v1349, 1.442695
        %v1351 = vpow.pop %v1350
        %v1352 = vmul.f32 %v1348, 0.0
        %v1353 = vsel %vm1047, %v1351, 0.0
        %1354 = vadd.xlane.f32.xlu0 %v1353
        %v1355 = vpop.xlane.xlu0 %1354
        %v1356 = vadd.f32 %v1352, %v1355
        %v1358 = vsel %vm1047, %v1351, 0
        %1360 = vmatprep.subr.mxu0 0.0
        %1361 = vmatpush1.msra.mxu0 %v1266
        %1362 = vmatprep.subr.mxu0 0.0
        %1363 = vmatpush1.msra.mxu0 0.0
        %1364 = vmatprep.subr.mxu0 0.0
        %1365 = vmatpush1.msra.mxu0 0.0
        %1366 = vmatprep.subr.mxu0 0.0
        %1367 = vmatpush1.msra.mxu0 0.0
        %1368 = vmatprep.subr.mxu0 0.0
        %1369 = vmatpush1.msra.mxu0 0.0
        %1370 = vmatprep.subr.mxu0 0.0
        %1371 = vmatpush1.msra.mxu0 0.0
        %1372 = vmatprep.subr.mxu0 0.0
        %1373 = vmatpush1.msra.mxu0 0.0
        %1374 = vmatprep.subr.mxu0 0.0
        %1375 = vmatpush1.msra.mxu0 0.0
        %1376 = vmatprep.subr.mxu0 0.0
        %1377 = vmatpush1.msra.mxu0 0.0
        %1378 = vmatprep.subr.mxu0 0.0
        %1379 = vmatpush1.msra.mxu0 0.0
        %1380 = vmatprep.subr.mxu0 0.0
        %1381 = vmatpush1.msra.mxu0 0.0
        %1382 = vmatprep.subr.mxu0 0.0
        %1383 = vmatpush1.msra.mxu0 0.0
        %1384 = vmatprep.subr.mxu0 0.0
        %1385 = vmatpush1.msra.mxu0 0.0
        %1386 = vmatprep.subr.mxu0 0.0
        %1387 = vmatpush1.msra.mxu0 0.0
        %1388 = vmatprep.subr.mxu0 0.0
        %1389 = vmatpush1.msra.mxu0 0.0
        %1390 = vmatprep.subr.mxu0 0.0
        %1391 = vmatpush1.msra.mxu0 0.0
        %1392 = vmatprep.subr.mxu0 0.0
        %1393 = vmatpush1.msra.mxu0 0.0
        %1394 = vmatprep.subr.mxu0 0.0
        %1395 = vmatpush1.msra.mxu0 0.0
        %1396 = vmatprep.subr.mxu0 0.0
        %1397 = vmatpush1.msra.mxu0 0.0
        %1398 = vmatprep.subr.mxu0 0.0
        %1399 = vmatpush1.msra.mxu0 0.0
        %1400 = vmatprep.subr.mxu0 0.0
        %1401 = vmatpush1.msra.mxu0 0.0
        %1402 = vmatprep.subr.mxu0 0.0
        %1403 = vmatpush1.msra.mxu0 0.0
        %1404 = vmatprep.subr.mxu0 0.0
        %1405 = vmatpush1.msra.mxu0 0.0
        %1406 = vmatprep.subr.mxu0 0.0
        %1407 = vmatpush1.msra.mxu0 0.0
        %1408 = vmatprep.subr.mxu0 0.0
        %1409 = vmatpush1.msra.mxu0 0.0
        %1410 = vmatprep.subr.mxu0 0.0
        %1411 = vmatpush1.msra.mxu0 0.0
        %1412 = vmatprep.subr.mxu0 0.0
        %1413 = vmatpush1.msra.mxu0 0.0
        %1414 = vmatprep.subr.mxu0 0.0
        %1415 = vmatpush1.msra.mxu0 0.0
        %1416 = vmatprep.subr.mxu0 0.0
        %1417 = vmatpush1.msra.mxu0 0.0
        %1418 = vmatprep.subr.mxu0 0.0
        %1419 = vmatpush1.msra.mxu0 0.0
        %1420 = vmatprep.subr.mxu0 0.0
        %1421 = vmatpush1.msra.mxu0 0.0
        %1422 = vmatprep.subr.mxu0 0.0
        %1423 = vmatpush1.msra.mxu0 0.0
        %1424 = vmatprep.mubr.f32.mxu0 0.0
        %1425 = vmatmul.mubr.f32.gmra.mrb[0].mxu0 %v1358
        %v1426 = vpop.f32.mrb[0].mxu0
        %v1427 = vadd.f32 0.0, %v1426
        %v1428 = vpop.f32.mrb[0].mxu0
        %1429 = vdwg.mxu0
        %v1430 = vadd.f32 %v1352, %v1427
        %v1431 = vrcp.pop %v1356
        %v1432 = vmul.f32 %v1430, %v1431
        %v1433 = vadd.f32 %v1432, %v1180
        %v1434 = vsel %vm895, %v1433, 0.0
        %1435 = vadd.xlane.f32.xlu0 %v1434
        %v1436 = vpop.xlane.xlu0 %1435
        %v1437 = vmul.f32 %v1436, %v1142
        %v1438 = vsub.f32 %v1433, %v1437
        %v1439 = vmul.f32 %v1438, %v1438
        %v1440 = vsel %vm895, %v1439, 0.0
        %1441 = vadd.xlane.f32.xlu0 %v1440
        %v1442 = vpop.xlane.xlu0 %1441
        %v1443 = vmul.f32 %v1442, %v1142
        %v1444 = vadd.f32 %v1443, 1e-05
        %v1445 = vrsqrt.pop %v1444
        %v1446 = vmul.f32 %v1438, %v1445
        %v1447 = vadd.f32 %v1446, %v1180
        %v1448 = vsel %vm895, %v1447, 0.0
        %1449 = vadd.xlane.f32.xlu0 %v1448
        %v1450 = vpop.xlane.xlu0 %1449
        %v1451 = vmul.f32 %v1450, %v1142
        %v1452 = vsub.f32 %v1447, %v1451
        %v1453 = vmul.f32 %v1452, %v1452
        %v1454 = vsel %vm895, %v1453, 0.0
        %1455 = vadd.xlane.f32.xlu0 %v1454
        %v1456 = vpop.xlane.xlu0 %1455
        %v1457 = vmul.f32 %v1456, %v1142
        %v1458 = vadd.f32 %v1457, 1e-05
        %v1459 = vrsqrt.pop %v1458
        %v1460 = vmul.f32 %v1452, %v1459
        %v1461 = vmul.f32 %v1460, %v1171
        %v1462 = vadd.f32 %v1461, %v1178
        %v1463 = vld [vmem:[#allocation21] sm:$0xff]
        %v1464 = vld [vmem:[#allocation21 + $0x8] sm:$0xff]
        %v1465 = vld [vmem:[#allocation21 + $0x10] sm:$0xff]
        %v1466 = vld [vmem:[#allocation21 + $0x18] sm:$0xff]
        %v1467 = vld [vmem:[%s12] sm:$0x1]
        %v1469 = vlaneseq
        %v1470 = vshrl.u32 %v1469, 7
        %v1471 = vsub.s32 0, %v1470
        %v1472 = vrot.slane %v1467, %v1471
        %v1475 = vsel %vm895, %v1462, 0
        %1477 = vmatprep.subr.mxu0 0.0
        %1478 = vmatpush1.msra.mxu0 %v1463
        %1479 = vmatprep.subr.mxu0 0.0
        %1480 = vmatpush1.msra.mxu0 %v1464
        %1481 = vmatprep.subr.mxu0 0.0
        %1482 = vmatpush1.msra.mxu0 %v1465
        %1483 = vmatprep.subr.mxu0 0.0
        %1484 = vmatpush1.msra.mxu0 %v1466
        %1485 = vmatprep.subr.mxu0 0.0
        %1486 = vmatpush1.msra.mxu0 0.0
        %1487 = vmatprep.subr.mxu0 0.0
        %1488 = vmatpush1.msra.mxu0 0.0
        %1489 = vmatprep.subr.mxu0 0.0
        %1490 = vmatpush1.msra.mxu0 0.0
        %1491 = vmatprep.subr.mxu0 0.0
        %1492 = vmatpush1.msra.mxu0 0.0
        %1493 = vmatprep.subr.mxu0 0.0
        %1494 = vmatpush1.msra.mxu0 0.0
        %1495 = vmatprep.subr.mxu0 0.0
        %1496 = vmatpush1.msra.mxu0 0.0
        %1497 = vmatprep.subr.mxu0 0.0
        %1498 = vmatpush1.msra.mxu0 0.0
        %1499 = vmatprep.subr.mxu0 0.0
        %1500 = vmatpush1.msra.mxu0 0.0
        %1501 = vmatprep.subr.mxu0 0.0
        %1502 = vmatpush1.msra.mxu0 0.0
        %1503 = vmatprep.subr.mxu0 0.0
        %1504 = vmatpush1.msra.mxu0 0.0
        %1505 = vmatprep.subr.mxu0 0.0
        %1506 = vmatpush1.msra.mxu0 0.0
        %1507 = vmatprep.subr.mxu0 0.0
        %1508 = vmatpush1.msra.mxu0 0.0
        %1509 = vmatprep.subr.mxu0 0.0
        %1510 = vmatpush1.msra.mxu0 0.0
        %1511 = vmatprep.subr.mxu0 0.0
        %1512 = vmatpush1.msra.mxu0 0.0
        %1513 = vmatprep.subr.mxu0 0.0
        %1514 = vmatpush1.msra.mxu0 0.0
        %1515 = vmatprep.subr.mxu0 0.0
        %1516 = vmatpush1.msra.mxu0 0.0
        %1517 = vmatprep.subr.mxu0 0.0
        %1518 = vmatpush1.msra.mxu0 0.0
        %1519 = vmatprep.subr.mxu0 0.0
        %1520 = vmatpush1.msra.mxu0 0.0
        %1521 = vmatprep.subr.mxu0 0.0
        %1522 = vmatpush1.msra.mxu0 0.0
        %1523 = vmatprep.subr.mxu0 0.0
        %1524 = vmatpush1.msra.mxu0 0.0
        %1525 = vmatprep.subr.mxu0 0.0
        %1526 = vmatpush1.msra.mxu0 0.0
        %1527 = vmatprep.subr.mxu0 0.0
        %1528 = vmatpush1.msra.mxu0 0.0
        %1529 = vmatprep.subr.mxu0 0.0
        %1530 = vmatpush1.msra.mxu0 0.0
        %1531 = vmatprep.subr.mxu0 0.0
        %1532 = vmatpush1.msra.mxu0 0.0
        %1533 = vmatprep.subr.mxu0 0.0
        %1534 = vmatpush1.msra.mxu0 0.0
        %1535 = vmatprep.subr.mxu0 0.0
        %1536 = vmatpush1.msra.mxu0 0.0
        %1537 = vmatprep.subr.mxu0 0.0
        %1538 = vmatpush1.msra.mxu0 0.0
        %1539 = vmatprep.subr.mxu0 0.0
        %1540 = vmatpush1.msra.mxu0 0.0
        %1541 = vmatprep.mubr.f32.mxu0 0.0
        %1542 = vmatmul.mubr.f32.gmra.mrb[0].mxu0 %v1475
        %v1543 = vpop.f32.mrb[0].mxu0
        %v1544 = vadd.f32 %v1472, %v1543
        %v1545 = vpop.f32.mrb[0].mxu0
        %1546 = vdwg.mxu0
        %v1547 = vmul.f32 %v1544, 0.5
        %v1548 = vmul.f32 %v1544, %v1544
        %v1549 = vmul.f32 %v1548, %v1544
        %v1550 = vmul.f32 %v1549, 0.044715
        %v1551 = vadd.f32 %v1544, %v1550
        %v1552 = vmul.f32 %v1551, 0.7978846
        %v1553 = vtanh.pop %v1552
        %v1554 = vadd.f32 %v1553, 1.0
        %v1555 = vmul.f32 %v1547, %v1554
        %v1556 = vadd.f32 %v1555, %v1462
        %v1557 = vsel %vm895, %v1556, 0.0
        %1558 = vadd.xlane.f32.xlu0 %v1557
        %v1559 = vpop.xlane.xlu0 %1558
        %v1560 = vmul.f32 %v1559, %v1142
        %v1561 = vsub.f32 %v1556, %v1560
        %v1562 = vmul.f32 %v1561, %v1561
        %v1563 = vsel %vm895, %v1562, 0.0
        %1564 = vadd.xlane.f32.xlu0 %v1563
        %v1565 = vpop.xlane.xlu0 %1564
        %v1566 = vmul.f32 %v1565, %v1142
        %v1567 = vadd.f32 %v1566, 1e-05
        %v1568 = vrsqrt.pop %v1567
        %v1569 = vmul.f32 %v1561, %v1568
        %v1570 = vmul.f32 %v1569, %v1171
        %v1571 = vadd.f32 %v1570, %v1178
        %s1572 = scalar_lea.vmem [#allocation21], 32
        %v1573 = vld [vmem:[%s1572] sm:$0xff]
        %v1574 = vld [vmem:[%s1572 + $0x8] sm:$0xff]
        %v1575 = vld [vmem:[%s1572 + $0x10] sm:$0xff]
        %v1576 = vld [vmem:[%s1572 + $0x18] sm:$0xff]
        %s1577 = scalar_lea.vmem %s12, 1
        %v1578 = vld [vmem:[%s1577] sm:$0x1]
        %v1580 = vlaneseq
        %v1581 = vshrl.u32 %v1580, 7
        %v1582 = vsub.s32 0, %v1581
        %v1583 = vrot.slane %v1578, %v1582
        %v1586 = vsel %vm895, %v1571, 0
        %1588 = vmatprep.subr.mxu0 0.0
        %1589 = vmatpush1.msra.mxu0 %v1573
        %1590 = vmatprep.subr.mxu0 0.0
        %1591 = vmatpush1.msra.mxu0 %v1574
        %1592 = vmatprep.subr.mxu0 0.0
        %1593 = vmatpush1.msra.mxu0 %v1575
        %1594 = vmatprep.subr.mxu0 0.0
        %1595 = vmatpush1.msra.mxu0 %v1576
        %1596 = vmatprep.subr.mxu0 0.0
        %1597 = vmatpush1.msra.mxu0 0.0
        %1598 = vmatprep.subr.mxu0 0.0
        %1599 = vmatpush1.msra.mxu0 0.0
        %1600 = vmatprep.subr.mxu0 0.0
        %1601 = vmatpush1.msra.mxu0 0.0
        %1602 = vmatprep.subr.mxu0 0.0
        %1603 = vmatpush1.msra.mxu0 0.0
        %1604 = vmatprep.subr.mxu0 0.0
        %1605 = vmatpush1.msra.mxu0 0.0
        %1606 = vmatprep.subr.mxu0 0.0
        %1607 = vmatpush1.msra.mxu0 0.0
        %1608 = vmatprep.subr.mxu0 0.0
        %1609 = vmatpush1.msra.mxu0 0.0
        %1610 = vmatprep.subr.mxu0 0.0
        %1611 = vmatpush1.msra.mxu0 0.0
        %1612 = vmatprep.subr.mxu0 0.0
        %1613 = vmatpush1.msra.mxu0 0.0
        %1614 = vmatprep.subr.mxu0 0.0
        %1615 = vmatpush1.msra.mxu0 0.0
        %1616 = vmatprep.subr.mxu0 0.0
        %1617 = vmatpush1.msra.mxu0 0.0
        %1618 = vmatprep.subr.mxu0 0.0
        %1619 = vmatpush1.msra.mxu0 0.0
        %1620 = vmatprep.subr.mxu0 0.0
        %1621 = vmatpush1.msra.mxu0 0.0
        %1622 = vmatprep.subr.mxu0 0.0
        %1623 = vmatpush1.msra.mxu0 0.0
        %1624 = vmatprep.subr.mxu0 0.0
        %1625 = vmatpush1.msra.mxu0 0.0
        %1626 = vmatprep.subr.mxu0 0.0
        %1627 = vmatpush1.msra.mxu0 0.0
        %1628 = vmatprep.subr.mxu0 0.0
        %1629 = vmatpush1.msra.mxu0 0.0
        %1630 = vmatprep.subr.mxu0 0.0
        %1631 = vmatpush1.msra.mxu0 0.0
        %1632 = vmatprep.subr.mxu0 0.0
        %1633 = vmatpush1.msra.mxu0 0.0
        %1634 = vmatprep.subr.mxu0 0.0
        %1635 = vmatpush1.msra.mxu0 0.0
        %1636 = vmatprep.subr.mxu0 0.0
        %1637 = vmatpush1.msra.mxu0 0.0
        %1638 = vmatprep.subr.mxu0 0.0
        %1639 = vmatpush1.msra.mxu0 0.0
        %1640 = vmatprep.subr.mxu0 0.0
        %1641 = vmatpush1.msra.mxu0 0.0
        %1642 = vmatprep.subr.mxu0 0.0
        %1643 = vmatpush1.msra.mxu0 0.0
        %1644 = vmatprep.subr.mxu0 0.0
        %1645 = vmatpush1.msra.mxu0 0.0
        %1646 = vmatprep.subr.mxu0 0.0
        %1647 = vmatpush1.msra.mxu0 0.0
        %1648 = vmatprep.subr.mxu0 0.0
        %1649 = vmatpush1.msra.mxu0 0.0
        %1650 = vmatprep.subr.mxu0 0.0
        %1651 = vmatpush1.msra.mxu0 0.0
        %1652 = vmatprep.mubr.f32.mxu0 0.0
        %1653 = vmatmul.mubr.f32.gmra.mrb[0].mxu0 %v1586
        %v1654 = vpop.f32.mrb[0].mxu0
        %v1655 = vadd.f32 %v1583, %v1654
        %v1656 = vpop.f32.mrb[0].mxu0
        %1657 = vdwg.mxu0
        %v1658 = vmul.f32 %v1655, 0.5
        %v1659 = vmul.f32 %v1655, %v1655
        %v1660 = vmul.f32 %v1659, %v1655
        %v1661 = vmul.f32 %v1660, 0.044715
        %v1662 = vadd.f32 %v1655, %v1661
        %v1663 = vmul.f32 %v1662, 0.7978846
        %v1664 = vtanh.pop %v1663
        %v1665 = vadd.f32 %v1664, 1.0
        %v1666 = vmul.f32 %v1658, %v1665
        %v1667 = vadd.f32 %v1666, %v1571
        %v1668 = vsel %vm895, %v1667, 0.0
        %1669 = vadd.xlane.f32.xlu0 %v1668
        %v1670 = vpop.xlane.xlu0 %1669
        %v1671 = vmul.f32 %v1670, %v1142
        %v1672 = vsub.f32 %v1667, %v1671
        %v1673 = vmul.f32 %v1672, %v1672
        %v1674 = vsel %vm895, %v1673, 0.0
        %1675 = vadd.xlane.f32.xlu0 %v1674
        %v1676 = vpop.xlane.xlu0 %1675
        %v1677 = vmul.f32 %v1676, %v1142
        %v1678 = vadd.f32 %v1677, 1e-05
        %v1679 = vrsqrt.pop %v1678
        %v1680 = vmul.f32 %v1672, %v1679
        %v1681 = vmul.f32 %v1680, %v1171
        %v1682 = vadd.f32 %v1681, %v1178
        %v1683 = vadd.f32 %v1682, %v1571
        %v1684 = vsel %vm895, %v1683, 0.0
        %1685 = vadd.xlane.f32.xlu0 %v1684
        %v1686 = vpop.xlane.xlu0 %1685
        %v1687 = vmul.f32 %v1686, %v1142
        %v1688 = vsub.f32 %v1683, %v1687
        %v1689 = vmul.f32 %v1688, %v1688
        %v1690 = vsel %vm895, %v1689, 0.0
        %1691 = vadd.xlane.f32.xlu0 %v1690
        %v1692 = vpop.xlane.xlu0 %1691
        %v1693 = vmul.f32 %v1692, %v1142
        %v1694 = vadd.f32 %v1693, 1e-05
        %v1695 = vrsqrt.pop %v1694
        %v1696 = vmul.f32 %v1688, %v1695
        %v1697 = vmul.f32 %v1696, %v1171
        %v1698 = vadd.f32 %v1697, %v1178
        %1699 = vst.msk [vmem:[%s693] sm:$0xff] %vm895, %v1698
        %s1700 = sand.u32 %s393, 1
        %s1701 = scalar_lea.sflag [#allocation8], %s1700
        %s1702 = sand.u32 %s393, 1
        %s1703 = smul.addr %s1702, 8
        %s1704 = scalar_lea.vmem [#allocation23], %s1703
        // Predicated region
        $region125: #{tpu_custom_call.1} parent=79 // pred_check
          %p1705 = pneg %p403
        $region126: #{tpu_custom_call.1} parent=79 // pred_check_branch
          %1707 = sbr.rel (%p1705) target = $region128
        $region127: #{tpu_custom_call.1} parent=79 // pred_region
          %s1709 = ssub.s32 128, 128
          %1710 = vsyncadd %s1701, %s1709
          %s1711 = sadd.s32 %s44, %s43
          %s1712 = smul.addr %s1711, 128
          %s1713 = scalar_lea.hbm %s15, %s1712
          %s1715 = sshll.u32 %s1704, 4
          %s1716 = int_to_ptr.vmem [resolvable:$true] %s1715
          %1718 = dma.vmem_to_hbm [thread:$0]  %s1716, 128, %s1713, %s1701
        $region128: #{tpu_custom_call.1} parent=79 // pred_fallthru
          _
      $region80: #{tpu_custom_call.1} parent=5 // pred_fallthru
        _
      %p1719 = scmp.le.s32.totalorder 2, %s34
      // Predicated region
      $region129: #{tpu_custom_call.1} parent=5 // pred_check
        %p1720 = pneg %p1719
      $region130: #{tpu_custom_call.1} parent=5 // pred_check_branch
        %1722 = sbr.rel (%p1720) target = $region132
      $region131: #{tpu_custom_call.1} parent=5 // pred_region
        %s1723 = ssub.s32 %s34, 2
        // Predicated region
        $region133: #{tpu_custom_call.1} parent=131 // pred_check
          %p1724 = pneg %p409
        $region134: #{tpu_custom_call.1} parent=131 // pred_check_branch
          %1726 = sbr.rel (%p1724) target = $region136
        $region135: #{tpu_custom_call.1} parent=131 // pred_region
          %s1727 = sand.u32 %s394, 1
          %s1728 = scalar_lea.sflag [#allocation8], %s1727
          %s1729 = sand.u32 %s394, 1
          %s1730 = smul.addr %s1729, 8
          %s1731 = scalar_lea.vmem [#allocation23], %s1730
          %1732 = dma.done %s1728, 128
        $region136: #{tpu_custom_call.1} parent=131 // pred_fallthru
          _
      $region132: #{tpu_custom_call.1} parent=5 // pred_fallthru
        _
    $region6: #{tpu_custom_call.1} parent=1 // loop_footer
      %s38 = sadd.s32 1, %s34
    $region7: #{tpu_custom_call.1} parent=1 // loop_footer_branch
      %33 = sbr.rel target = $region3
    $region8: #{tpu_custom_call.1} parent=1 // loop_exit
      _
    %1733 = vsyncpa [#allocation7], 1
    %s1734 = scalar_lea.sflag [#allocation7], 1
    %1735 = vsyncpa %s1734, 1
    %1736 = vsyncpa [#allocation10], 1
    %s1737 = scalar_lea.sflag [#allocation10], 1
    %1738 = vsyncpa %s1737, 1
    %1739 = vsyncpa [#allocation13], 1
    %1740 = vsyncpa [#allocation16], 1
    %1741 = vsyncpa [#allocation19], 1
    %1742 = vsyncpa [#allocation22], 1
    %1743 = vsyncpa [#allocation8], 1
    %s1744 = scalar_lea.sflag [#allocation8], 1
    %1745 = vsyncpa %s1744, 1

</llo_original>
